<compile_context>
chip_gen: v5e
topology: v5e:2x2
jax: 0.10.0
libtpu: 0.0.40
codegen_flags: <defaults>
</compile_context>

<pallas_src>
import jax
import jax.numpy as jnp
from jax.experimental import pallas as pl
from jax.experimental.pallas import tpu as pltpu

CLASSES = 10
CHANNELS = 1
IMG_SIZE = 28
LATENT_DIM = 100
IMG_PIXELS = CHANNELS * IMG_SIZE * IMG_SIZE  # 784

PAD_IN = 128     # 110 -> 128 (lane-dense input width)
PAD_OUT = 896    # 784 -> 896 = 7 * 128 (lane-dense output width)

BN_EPS = 1e-5
LEAKY_SLOPE = 0.2

# Packed per-layer vector layout (all offsets/sizes are multiples of 128, so
# in-kernel static slices never cross an (8,128) tile boundary).
_VEC_FIELDS = (("b1", 128), ("g2", 256), ("be2", 256), ("g3", 512),
               ("be3", 512), ("g4", 1024), ("be4", 1024), ("b5", PAD_OUT))
_VEC_OFFSETS = {}
_off = 0
for _name, _n in _VEC_FIELDS:
    _VEC_OFFSETS[_name] = _off
    _off += _n
VEC_TOTAL = _off  # 4608 = 36 * 128


def _leaky_relu(x):
    # max(x, 0.2*x) == LeakyReLU(0.2) for slope < 1; 2 VALU ops vs 3.
    return jnp.maximum(x, LEAKY_SLOPE * x)


def _batchnorm_train(x, gamma, beta):
    # nn.BatchNorm1d in training mode: biased batch statistics over the batch
    # dim, fused into a single scale/shift (one-pass moments, rsqrt on EUP).
    mean = jnp.mean(x, axis=0, keepdims=True)
    mean_sq = jnp.mean(x * x, axis=0, keepdims=True)
    var = mean_sq - mean * mean
    scale = gamma * jax.lax.rsqrt(var + BN_EPS)
    shift = beta - mean * scale
    return x * scale + shift


def _mm(h_f32, w_bf16):
    # bf16 x bf16 matmul on the MXU with f32 accumulation.
    return jnp.dot(h_f32.astype(jnp.bfloat16), w_bf16,
                   preferred_element_type=jnp.float32)


def generator_kernel(z_ref, vec_ref, w1_ref, w2_ref, w3_ref, w4_hbm, w5_hbm,
                     out_ref, w4_vmem, w5_vmem, sem):
    # Kick off the two big weight DMAs immediately so they overlap with
    # blocks 1-3 compute (kernel is otherwise weight-DMA latency bound).
    w4_copy = pltpu.make_async_copy(w4_hbm, w4_vmem, sem.at[0])
    w5_copy = pltpu.make_async_copy(w5_hbm, w5_vmem, sem.at[1])
    w4_copy.start()
    w5_copy.start()

    def vec(name):
        o = _VEC_OFFSETS[name]
        n = dict(_VEC_FIELDS)[name]
        return vec_ref[:, o:o + n]            # static slice: zero-cost view

    z = z_ref[...]                             # [B, 128] f32

    # Block 1: Linear(110 -> 128, padded) + bias + LeakyReLU (no BatchNorm)
    h = _leaky_relu(_mm(z, w1_ref[...]) + vec("b1"))

    # Blocks 2-3: Linear + BatchNorm1d(train) + LeakyReLU.
    # Linear biases are omitted: the batch mean cancels them exactly.
    h = _leaky_relu(_batchnorm_train(_mm(h, w2_ref[...]), vec("g2"), vec("be2")))
    h = _leaky_relu(_batchnorm_train(_mm(h, w3_ref[...]), vec("g3"), vec("be3")))

    # Block 4: wait only for w4 (w5 keeps streaming behind this block).
    w4_copy.wait()
    h = _leaky_relu(_batchnorm_train(_mm(h, w4_vmem[...]), vec("g4"), vec("be4")))

    # Head: Linear(1024 -> 784, padded to 896) + bias + Tanh, lane-dense store.
    w5_copy.wait()
    out_ref[...] = jnp.tanh(_mm(h, w5_vmem[...]) + vec("b5"))


def init_params(key):
    """Deterministic init mimicking PyTorch defaults; weights stored bf16 + padded."""
    sizes = [(LATENT_DIM + CLASSES, 128), (128, 256), (256, 512), (512, 1024),
             (1024, IMG_PIXELS)]
    pads = [(PAD_IN, 128), (128, 256), (256, 512), (512, 1024), (1024, PAD_OUT)]
    keys = jax.random.split(key, 1 + 2 * len(sizes))
    params = {}
    # nn.Embedding(classes, classes): N(0, 1)
    params["emb"] = jax.random.normal(keys[0], (CLASSES, CLASSES), jnp.float32)
    for idx, ((fan_in, fan_out), (pi, po)) in enumerate(zip(sizes, pads), start=1):
        bound = 1.0 / (fan_in ** 0.5)
        w = jax.random.uniform(keys[2 * idx - 1], (fan_in, fan_out),
                               jnp.float32, -bound, bound)
        b = jax.random.uniform(keys[2 * idx], (1, fan_out),
                               jnp.float32, -bound, bound)
        # zero-pad to lane-dense shapes (math unchanged), store weights as bf16
        params[f"w{idx}"] = jnp.pad(w, ((0, pi - fan_in),
                                        (0, po - fan_out))).astype(jnp.bfloat16)
        params[f"b{idx}"] = jnp.pad(b, ((0, 0), (0, po - fan_out)))
    # BatchNorm affine params for blocks 2..4 (gamma=1, beta=0 at init)
    for idx, n in zip((2, 3, 4), (256, 512, 1024)):
        params[f"g{idx}"] = jnp.ones((1, n), jnp.float32)
        params[f"be{idx}"] = jnp.zeros((1, n), jnp.float32)
    return params


def _pack_vec(params):
    # One lane-dense [1, 4608] f32 slab holding every small per-layer vector.
    parts = [params["b1"], params["g2"], params["be2"], params["g3"],
             params["be3"], params["g4"], params["be4"], params["b5"]]
    vec = jnp.concatenate(parts, axis=-1)
    assert vec.shape == (1, VEC_TOTAL), vec.shape
    return vec


def generator_forward(params, noise, labels):
    # Glue: embedding lookup + concat (same as torch.cat((emb(labels), noise), -1))
    emb = jnp.take(params["emb"], labels, axis=0)               # [B, classes]
    z = jnp.concatenate([emb, noise], axis=-1)                  # [B, 110]
    B = z.shape[0]
    z = jnp.pad(z, ((0, 0), (0, PAD_IN - z.shape[1])))          # [B, 128]

    vec = _pack_vec(params)

    inputs = (z, vec, params["w1"], params["w2"], params["w3"],
              params["w4"], params["w5"])

    vmem = pl.BlockSpec(memory_space=pltpu.MemorySpace.VMEM)
    hbm = pl.BlockSpec(memory_space=pl.ANY)   # w4/w5: DMA'd manually in-kernel

    flat = pl.pallas_call(
        generator_kernel,
        out_shape=jax.ShapeDtypeStruct((B, PAD_OUT), jnp.float32),
        in_specs=[vmem, vmem, vmem, vmem, vmem, hbm, hbm],
        out_specs=vmem,
        scratch_shapes=[
            pltpu.VMEM((512, 1024), jnp.bfloat16),     # w4 landing buffer
            pltpu.VMEM((1024, PAD_OUT), jnp.bfloat16),  # w5 landing buffer
            pltpu.SemaphoreType.DMA((2,)),
        ],
        compiler_params=pltpu.CompilerParams(vmem_limit_bytes=32 << 20),
    )(*inputs)

    # TODO(synk): at large B this slice is an extra HBM pass; fuse into the
    # consumer or emit bf16 output if the downstream tolerates it.
    return flat[:, :IMG_PIXELS].reshape(B, CHANNELS, IMG_SIZE, IMG_SIZE)


def generator_reference(params, noise, labels):
    """Pure-JAX reference of the same (bf16-weight, f32-accum) forward pass.

    Deliberately KEEPS the b2/b3/b4 bias adds before BatchNorm to validate
    that dropping them inside the kernel is numerically a no-op.
    """
    emb = jnp.take(params["emb"], labels, axis=0)
    z = jnp.concatenate([emb, noise], axis=-1)
    z = jnp.pad(z, ((0, 0), (0, PAD_IN - z.shape[1])))

    def mm(a, w):
        return jnp.dot(a.astype(jnp.bfloat16), w,
                       preferred_element_type=jnp.float32)

    h = _leaky_relu(mm(z, params["w1"]) + params["b1"])
    h = mm(h, params["w2"]) + params["b2"]
    h = _leaky_relu(_batchnorm_train(h, params["g2"], params["be2"]))
    h = mm(h, params["w3"]) + params["b3"]
    h = _leaky_relu(_batchnorm_train(h, params["g3"], params["be3"]))
    h = mm(h, params["w4"]) + params["b4"]
    h = _leaky_relu(_batchnorm_train(h, params["g4"], params["be4"]))
    h = jnp.tanh(mm(h, params["w5"]) + params["b5"])
    return h[:, :IMG_PIXELS].reshape(h.shape[0], CHANNELS, IMG_SIZE, IMG_SIZE)


if __name__ == "__main__":
    key = jax.random.PRNGKey(0)
    k_params, k_noise, k_labels = jax.random.split(key, 3)

    B = 4
    params = init_params(k_params)
    noise = jax.random.normal(k_noise, (B, LATENT_DIM), jnp.float32)
    labels = jax.random.randint(k_labels, (B,), 0, CLASSES, jnp.int32)

    out = generator_forward(params, noise, labels)
    out = jax.block_until_ready(out)

    assert out.shape == (B, CHANNELS, IMG_SIZE, IMG_SIZE), out.shape
    assert out.dtype == jnp.float32

    ref = jax.block_until_ready(generator_reference(params, noise, labels))
    assert jnp.allclose(out, ref, atol=2e-3, rtol=2e-3), \
        float(jnp.max(jnp.abs(out - ref)))

    print("KERNEL_OK")
</pallas_src>

<mosaic_0001>
module attributes {stable_mosaic.version = 11 : i64} {
  func.func @generator_kernel(%arg0: memref<4x128xf32, #tpu.memory_space<vmem>>, %arg1: memref<1x4608xf32, #tpu.memory_space<vmem>>, %arg2: memref<128x128xbf16, #tpu.memory_space<vmem>>, %arg3: memref<128x256xbf16, #tpu.memory_space<vmem>>, %arg4: memref<256x512xbf16, #tpu.memory_space<vmem>>, %arg5: memref<512x1024xbf16, #tpu.memory_space<any>>, %arg6: memref<1024x896xbf16, #tpu.memory_space<any>>, %arg7: memref<4x896xf32, #tpu.memory_space<vmem>>, %arg8: memref<512x1024xbf16, #tpu.memory_space<vmem>>, %arg9: memref<1024x896xbf16, #tpu.memory_space<vmem>>, %arg10: memref<2x!tpu.dma_semaphore, #tpu.memory_space<semaphore_mem>>) attributes {dimension_semantics = [], scalar_prefetch = 0 : i64, scratch_operands = 3 : i64, tpu.core_type = #tpu.core_type<tc>} {
    %c0_i32 = arith.constant 0 : i32
    %0 = tpu.memref_slice %arg10[%c0_i32] : memref<2x!tpu.dma_semaphore, #tpu.memory_space<semaphore_mem>> -> memref<1x!tpu.dma_semaphore, #tpu.memory_space<semaphore_mem>>
    %1 = tpu.memref_squeeze %0 : memref<1x!tpu.dma_semaphore, #tpu.memory_space<semaphore_mem>> -> memref<!tpu.dma_semaphore, #tpu.memory_space<semaphore_mem>>
    tpu.enqueue_dma source(%arg5 : memref<512x1024xbf16, #tpu.memory_space<any>>) target(%arg8 : memref<512x1024xbf16, #tpu.memory_space<vmem>>) target_semaphore(%1 : memref<!tpu.dma_semaphore, #tpu.memory_space<semaphore_mem>>)
    %c1_i32 = arith.constant 1 : i32
    %2 = tpu.memref_slice %arg10[%c1_i32] : memref<2x!tpu.dma_semaphore, #tpu.memory_space<semaphore_mem>> -> memref<1x!tpu.dma_semaphore, #tpu.memory_space<semaphore_mem>>
    %3 = tpu.memref_squeeze %2 : memref<1x!tpu.dma_semaphore, #tpu.memory_space<semaphore_mem>> -> memref<!tpu.dma_semaphore, #tpu.memory_space<semaphore_mem>>
    tpu.enqueue_dma source(%arg6 : memref<1024x896xbf16, #tpu.memory_space<any>>) target(%arg9 : memref<1024x896xbf16, #tpu.memory_space<vmem>>) target_semaphore(%3 : memref<!tpu.dma_semaphore, #tpu.memory_space<semaphore_mem>>)
    %c0 = arith.constant 0 : index
    %c0_0 = arith.constant 0 : index
    %4 = vector.load %arg0[%c0, %c0_0] : memref<4x128xf32, #tpu.memory_space<vmem>>, vector<4x128xf32>
    %c0_1 = arith.constant 0 : index
    %c0_2 = arith.constant 0 : index
    %5 = vector.load %arg2[%c0_1, %c0_2] : memref<128x128xbf16, #tpu.memory_space<vmem>>, vector<128x128xbf16>
    %6 = arith.truncf %4 : vector<4x128xf32> to vector<4x128xbf16>
    %cst = arith.constant dense<0.000000e+00> : vector<4x128xf32>
    %7 = tpu.matmul %6, %5, %cst {dimension_numbers = #tpu.dot_dimension_numbers<[1], [0], [0], [1], [0, 0, 1, 1], [], []>} : vector<4x128xbf16>, vector<128x128xbf16>, vector<4x128xf32> -> vector<4x128xf32>
    %c0_3 = arith.constant 0 : index
    %c0_4 = arith.constant 0 : index
    %8 = vector.load %arg1[%c0_3, %c0_4] : memref<1x4608xf32, #tpu.memory_space<vmem>>, vector<1x128xf32>
    %9 = vector.broadcast %8 : vector<1x128xf32> to vector<4x128xf32>
    %10 = arith.addf %7, %9 : vector<4x128xf32>
    %cst_5 = arith.constant 2.000000e-01 : f32
    %11 = vector.broadcast %cst_5 : f32 to vector<4x128xf32>
    %12 = arith.mulf %11, %10 : vector<4x128xf32>
    %13 = arith.maximumf %10, %12 : vector<4x128xf32>
    %c0_6 = arith.constant 0 : index
    %c0_7 = arith.constant 0 : index
    %14 = vector.load %arg3[%c0_6, %c0_7] : memref<128x256xbf16, #tpu.memory_space<vmem>>, vector<128x256xbf16>
    %15 = arith.truncf %13 : vector<4x128xf32> to vector<4x128xbf16>
    %cst_8 = arith.constant dense<0.000000e+00> : vector<4x256xf32>
    %16 = tpu.matmul %15, %14, %cst_8 {dimension_numbers = #tpu.dot_dimension_numbers<[1], [0], [0], [1], [0, 0, 1, 1], [], []>} : vector<4x128xbf16>, vector<128x256xbf16>, vector<4x256xf32> -> vector<4x256xf32>
    %c0_9 = arith.constant 0 : index
    %c128 = arith.constant 128 : index
    %17 = vector.load %arg1[%c0_9, %c128] : memref<1x4608xf32, #tpu.memory_space<vmem>>, vector<1x256xf32>
    %c0_10 = arith.constant 0 : index
    %c384 = arith.constant 384 : index
    %18 = vector.load %arg1[%c0_10, %c384] : memref<1x4608xf32, #tpu.memory_space<vmem>>, vector<1x256xf32>
    %cst_11 = arith.constant dense<0.000000e+00> : vector<256xf32>
    %19 = vector.multi_reduction <add>, %16, %cst_11 [0] : vector<4x256xf32> to vector<256xf32>
    %20 = vector.shape_cast %19 : vector<256xf32> to vector<1x256xf32>
    %cst_12 = arith.constant 4.000000e+00 : f32
    %21 = vector.broadcast %cst_12 : f32 to vector<1x256xf32>
    %22 = arith.divf %20, %21 : vector<1x256xf32>
    %23 = arith.mulf %16, %16 : vector<4x256xf32>
    %cst_13 = arith.constant dense<0.000000e+00> : vector<256xf32>
    %24 = vector.multi_reduction <add>, %23, %cst_13 [0] : vector<4x256xf32> to vector<256xf32>
    %25 = vector.shape_cast %24 : vector<256xf32> to vector<1x256xf32>
    %cst_14 = arith.constant 4.000000e+00 : f32
    %26 = vector.broadcast %cst_14 : f32 to vector<1x256xf32>
    %27 = arith.divf %25, %26 : vector<1x256xf32>
    %28 = arith.mulf %22, %22 : vector<1x256xf32>
    %29 = arith.subf %27, %28 : vector<1x256xf32>
    %cst_15 = arith.constant 9.99999974E-6 : f32
    %30 = vector.broadcast %cst_15 : f32 to vector<1x256xf32>
    %31 = arith.addf %29, %30 : vector<1x256xf32>
    %32 = math.rsqrt %31 : vector<1x256xf32>
    %33 = arith.mulf %17, %32 : vector<1x256xf32>
    %34 = arith.mulf %22, %33 : vector<1x256xf32>
    %35 = arith.subf %18, %34 : vector<1x256xf32>
    %36 = vector.broadcast %33 : vector<1x256xf32> to vector<4x256xf32>
    %37 = arith.mulf %16, %36 : vector<4x256xf32>
    %38 = vector.broadcast %35 : vector<1x256xf32> to vector<4x256xf32>
    %39 = arith.addf %37, %38 : vector<4x256xf32>
    %cst_16 = arith.constant 2.000000e-01 : f32
    %40 = vector.broadcast %cst_16 : f32 to vector<4x256xf32>
    %41 = arith.mulf %40, %39 : vector<4x256xf32>
    %42 = arith.maximumf %39, %41 : vector<4x256xf32>
    %c0_17 = arith.constant 0 : index
    %c0_18 = arith.constant 0 : index
    %43 = vector.load %arg4[%c0_17, %c0_18] : memref<256x512xbf16, #tpu.memory_space<vmem>>, vector<256x512xbf16>
    %44 = arith.truncf %42 : vector<4x256xf32> to vector<4x256xbf16>
    %cst_19 = arith.constant dense<0.000000e+00> : vector<4x512xf32>
    %45 = tpu.matmul %44, %43, %cst_19 {dimension_numbers = #tpu.dot_dimension_numbers<[1], [0], [0], [1], [0, 0, 1, 1], [], []>} : vector<4x256xbf16>, vector<256x512xbf16>, vector<4x512xf32> -> vector<4x512xf32>
    %c0_20 = arith.constant 0 : index
    %c640 = arith.constant 640 : index
    %46 = vector.load %arg1[%c0_20, %c640] : memref<1x4608xf32, #tpu.memory_space<vmem>>, vector<1x512xf32>
    %c0_21 = arith.constant 0 : index
    %c1152 = arith.constant 1152 : index
    %47 = vector.load %arg1[%c0_21, %c1152] : memref<1x4608xf32, #tpu.memory_space<vmem>>, vector<1x512xf32>
    %cst_22 = arith.constant dense<0.000000e+00> : vector<512xf32>
    %48 = vector.multi_reduction <add>, %45, %cst_22 [0] : vector<4x512xf32> to vector<512xf32>
    %49 = vector.shape_cast %48 : vector<512xf32> to vector<1x512xf32>
    %cst_23 = arith.constant 4.000000e+00 : f32
    %50 = vector.broadcast %cst_23 : f32 to vector<1x512xf32>
    %51 = arith.divf %49, %50 : vector<1x512xf32>
    %52 = arith.mulf %45, %45 : vector<4x512xf32>
    %cst_24 = arith.constant dense<0.000000e+00> : vector<512xf32>
    %53 = vector.multi_reduction <add>, %52, %cst_24 [0] : vector<4x512xf32> to vector<512xf32>
    %54 = vector.shape_cast %53 : vector<512xf32> to vector<1x512xf32>
    %cst_25 = arith.constant 4.000000e+00 : f32
    %55 = vector.broadcast %cst_25 : f32 to vector<1x512xf32>
    %56 = arith.divf %54, %55 : vector<1x512xf32>
    %57 = arith.mulf %51, %51 : vector<1x512xf32>
    %58 = arith.subf %56, %57 : vector<1x512xf32>
    %cst_26 = arith.constant 9.99999974E-6 : f32
    %59 = vector.broadcast %cst_26 : f32 to vector<1x512xf32>
    %60 = arith.addf %58, %59 : vector<1x512xf32>
    %61 = math.rsqrt %60 : vector<1x512xf32>
    %62 = arith.mulf %46, %61 : vector<1x512xf32>
    %63 = arith.mulf %51, %62 : vector<1x512xf32>
    %64 = arith.subf %47, %63 : vector<1x512xf32>
    %65 = vector.broadcast %62 : vector<1x512xf32> to vector<4x512xf32>
    %66 = arith.mulf %45, %65 : vector<4x512xf32>
    %67 = vector.broadcast %64 : vector<1x512xf32> to vector<4x512xf32>
    %68 = arith.addf %66, %67 : vector<4x512xf32>
    %cst_27 = arith.constant 2.000000e-01 : f32
    %69 = vector.broadcast %cst_27 : f32 to vector<4x512xf32>
    %70 = arith.mulf %69, %68 : vector<4x512xf32>
    %71 = arith.maximumf %68, %70 : vector<4x512xf32>
    %c0_i32_28 = arith.constant 0 : i32
    %72 = tpu.memref_slice %arg10[%c0_i32_28] : memref<2x!tpu.dma_semaphore, #tpu.memory_space<semaphore_mem>> -> memref<1x!tpu.dma_semaphore, #tpu.memory_space<semaphore_mem>>
    %73 = tpu.memref_squeeze %72 : memref<1x!tpu.dma_semaphore, #tpu.memory_space<semaphore_mem>> -> memref<!tpu.dma_semaphore, #tpu.memory_space<semaphore_mem>>
    tpu.wait_dma2 semaphore(%73 : memref<!tpu.dma_semaphore, #tpu.memory_space<semaphore_mem>>) src(%arg5 : memref<512x1024xbf16, #tpu.memory_space<any>>) dst(%arg8 : memref<512x1024xbf16, #tpu.memory_space<vmem>>)
    %c0_29 = arith.constant 0 : index
    %c0_30 = arith.constant 0 : index
    %74 = vector.load %arg8[%c0_29, %c0_30] : memref<512x1024xbf16, #tpu.memory_space<vmem>>, vector<512x1024xbf16>
    %75 = arith.truncf %71 : vector<4x512xf32> to vector<4x512xbf16>
    %cst_31 = arith.constant dense<0.000000e+00> : vector<4x1024xf32>
    %76 = tpu.matmul %75, %74, %cst_31 {dimension_numbers = #tpu.dot_dimension_numbers<[1], [0], [0], [1], [0, 0, 1, 1], [], []>} : vector<4x512xbf16>, vector<512x1024xbf16>, vector<4x1024xf32> -> vector<4x1024xf32>
    %c0_32 = arith.constant 0 : index
    %c1664 = arith.constant 1664 : index
    %77 = vector.load %arg1[%c0_32, %c1664] : memref<1x4608xf32, #tpu.memory_space<vmem>>, vector<1x1024xf32>
    %c0_33 = arith.constant 0 : index
    %c2688 = arith.constant 2688 : index
    %78 = vector.load %arg1[%c0_33, %c2688] : memref<1x4608xf32, #tpu.memory_space<vmem>>, vector<1x1024xf32>
    %cst_34 = arith.constant dense<0.000000e+00> : vector<1024xf32>
    %79 = vector.multi_reduction <add>, %76, %cst_34 [0] : vector<4x1024xf32> to vector<1024xf32>
    %80 = vector.shape_cast %79 : vector<1024xf32> to vector<1x1024xf32>
    %cst_35 = arith.constant 4.000000e+00 : f32
    %81 = vector.broadcast %cst_35 : f32 to vector<1x1024xf32>
    %82 = arith.divf %80, %81 : vector<1x1024xf32>
    %83 = arith.mulf %76, %76 : vector<4x1024xf32>
    %cst_36 = arith.constant dense<0.000000e+00> : vector<1024xf32>
    %84 = vector.multi_reduction <add>, %83, %cst_36 [0] : vector<4x1024xf32> to vector<1024xf32>
    %85 = vector.shape_cast %84 : vector<1024xf32> to vector<1x1024xf32>
    %cst_37 = arith.constant 4.000000e+00 : f32
    %86 = vector.broadcast %cst_37 : f32 to vector<1x1024xf32>
    %87 = arith.divf %85, %86 : vector<1x1024xf32>
    %88 = arith.mulf %82, %82 : vector<1x1024xf32>
    %89 = arith.subf %87, %88 : vector<1x1024xf32>
    %cst_38 = arith.constant 9.99999974E-6 : f32
    %90 = vector.broadcast %cst_38 : f32 to vector<1x1024xf32>
    %91 = arith.addf %89, %90 : vector<1x1024xf32>
    %92 = math.rsqrt %91 : vector<1x1024xf32>
    %93 = arith.mulf %77, %92 : vector<1x1024xf32>
    %94 = arith.mulf %82, %93 : vector<1x1024xf32>
    %95 = arith.subf %78, %94 : vector<1x1024xf32>
    %96 = vector.broadcast %93 : vector<1x1024xf32> to vector<4x1024xf32>
    %97 = arith.mulf %76, %96 : vector<4x1024xf32>
    %98 = vector.broadcast %95 : vector<1x1024xf32> to vector<4x1024xf32>
    %99 = arith.addf %97, %98 : vector<4x1024xf32>
    %cst_39 = arith.constant 2.000000e-01 : f32
    %100 = vector.broadcast %cst_39 : f32 to vector<4x1024xf32>
    %101 = arith.mulf %100, %99 : vector<4x1024xf32>
    %102 = arith.maximumf %99, %101 : vector<4x1024xf32>
    %c1_i32_40 = arith.constant 1 : i32
    %103 = tpu.memref_slice %arg10[%c1_i32_40] : memref<2x!tpu.dma_semaphore, #tpu.memory_space<semaphore_mem>> -> memref<1x!tpu.dma_semaphore, #tpu.memory_space<semaphore_mem>>
    %104 = tpu.memref_squeeze %103 : memref<1x!tpu.dma_semaphore, #tpu.memory_space<semaphore_mem>> -> memref<!tpu.dma_semaphore, #tpu.memory_space<semaphore_mem>>
    tpu.wait_dma2 semaphore(%104 : memref<!tpu.dma_semaphore, #tpu.memory_space<semaphore_mem>>) src(%arg6 : memref<1024x896xbf16, #tpu.memory_space<any>>) dst(%arg9 : memref<1024x896xbf16, #tpu.memory_space<vmem>>)
    %c0_41 = arith.constant 0 : index
    %c0_42 = arith.constant 0 : index
    %105 = vector.load %arg9[%c0_41, %c0_42] : memref<1024x896xbf16, #tpu.memory_space<vmem>>, vector<1024x896xbf16>
    %106 = arith.truncf %102 : vector<4x1024xf32> to vector<4x1024xbf16>
    %cst_43 = arith.constant dense<0.000000e+00> : vector<4x896xf32>
    %107 = tpu.matmul %106, %105, %cst_43 {dimension_numbers = #tpu.dot_dimension_numbers<[1], [0], [0], [1], [0, 0, 1, 1], [], []>} : vector<4x1024xbf16>, vector<1024x896xbf16>, vector<4x896xf32> -> vector<4x896xf32>
    %c0_44 = arith.constant 0 : index
    %c3712 = arith.constant 3712 : index
    %108 = vector.load %arg1[%c0_44, %c3712] : memref<1x4608xf32, #tpu.memory_space<vmem>>, vector<1x896xf32>
    %109 = vector.broadcast %108 : vector<1x896xf32> to vector<4x896xf32>
    %110 = arith.addf %107, %109 : vector<4x896xf32>
    %111 = math.tanh %110 : vector<4x896xf32>
    %c0_45 = arith.constant 0 : index
    %c0_46 = arith.constant 0 : index
    %112 = vector.load %arg7[%c0_45, %c0_46] : memref<4x896xf32, #tpu.memory_space<vmem>>, vector<4x896xf32>
    tpu.vector_store %arg7[%c0_45, %c0_46], %111 {strides = array<i32>} : memref<4x896xf32, #tpu.memory_space<vmem>>, vector<4x896xf32>,
    return
  }
}

</mosaic_0001>

<llo_original>
// kernel: tpu_custom_call.1
$region0: #{tpu_custom_call.1}
  #allocation0 [shape = 'u32[]', space=smem, size = 0x4, offset = 0x4, fixed_abs, tag = 'smem constant byte address 0x4 - core index']
  #allocation1 [shape = 'u32[72,128]{1,0:T(1,128)}', space=vmem, size = 0x9000, scoped, tag = 'internal scratch']
  #allocation2 [shape = 'bf16[512,1024]{1,0:T(8,128)(2,1)}', space=vmem, size = 0x100000, scoped, tag = 'scratch operand']
  #allocation3 [shape = 'bf16[1024,896]{1,0:T(8,128)(2,1)}', space=vmem, size = 0x1c0000, scoped, tag = 'scratch operand']
  #allocation4 [shape = 's32[2]{0}', space=sflag, size = 0x8, scoped, tag = 'scratch operand']
  #allocation15 [shape = 's32[]', space=sflag, size = 0x4, offset = 0, fixed_abs, tag = 'sflag constant byte address 0x0 - dummy sync flag']
  #allocation16 [shape = 's32[]', space=sflag, size = 0x4, offset = 0, fixed_abs, tag = 'sflag constant byte address 0x0 - dummy sync flag']
  #allocation17 [shape = 'u32[]', space=smem, size = 0x4, offset = 0x44, fixed_abs, tag = 'smem constant byte address 0x44 - assertion arg 0']
  #allocation18 [shape = 'u32[]', space=smem, size = 0x4, offset = 0x48, fixed_abs, tag = 'smem constant byte address 0x48 - assertion arg 1']
  #allocation19 [shape = 's32[]', space=sflag, size = 0x4, offset = 0, fixed_abs, tag = 'sflag constant byte address 0x0 - dummy sync flag']
  #allocation20 [shape = 's32[]', space=sflag, size = 0x4, offset = 0, fixed_abs, tag = 'sflag constant byte address 0x0 - dummy sync flag']
  %s0 = inlined_call_operand.hbm [shape: f32[4,128], index: 0, kind: input, shape index: {}]
  %s1 = inlined_call_operand.hbm [shape: f32[1,4608], index: 1, kind: input, shape index: {}]
  %s2 = inlined_call_operand.hbm [shape: bf16[128,128], index: 2, kind: input, shape index: {}]
  %s3 = inlined_call_operand.hbm [shape: bf16[128,256], index: 3, kind: input, shape index: {}]
  %s4 = inlined_call_operand.hbm [shape: bf16[256,512], index: 4, kind: input, shape index: {}]
  %s5 = inlined_call_operand.hbm [shape: bf16[512,1024], index: 5, kind: input, shape index: {}]
  %s6 = inlined_call_operand.hbm [shape: bf16[1024,896], index: 6, kind: input, shape index: {}]
  %s7 = inlined_call_operand.hbm [shape: f32[4,896], index: 7, kind: output, shape index: {}]
  %s8 = sld [smem:[#allocation0]]
  $region58: #{tpu_custom_call.1} parent=0
    _
  %s10 = ssub.s32 1, %s8
  %s11 = scalar_select 0, %s10, %s8
  $region1: #{tpu_custom_call.1} parent=0
    #allocation5 [shape = 'u8[2048]{0}', space=vmem, size = 0x800, scoped, tag = 'input window, operand 0, single buffered']
    #allocation6 [shape = 's32[1]{0}', space=sflag, size = 0x4, scoped, tag = 'scoped memory for tpu_custom_call.1']
    #allocation7 [shape = 's32[1]{0}', space=sflag, size = 0x4, scoped, tag = 'scoped memory for tpu_custom_call.1']
    #allocation8 [shape = 'u8[18432]{0}', space=vmem, size = 0x4800, scoped, tag = 'input window, operand 1, single buffered']
    #allocation9 [shape = 's32[1]{0}', space=sflag, size = 0x4, scoped, tag = 'scoped memory for tpu_custom_call.1']
    #allocation10 [shape = 'u8[32768]{0}', space=vmem, size = 0x8000, scoped, tag = 'input window, operand 2, single buffered']
    #allocation11 [shape = 'u8[65536]{0}', space=vmem, size = 0x10000, scoped, tag = 'input window, operand 3, single buffered']
    #allocation12 [shape = 's32[1]{0}', space=sflag, size = 0x4, scoped, tag = 'scoped memory for tpu_custom_call.1']
    #allocation13 [shape = 'u8[262144]{0}', space=vmem, size = 0x40000, scoped, tag = 'input window, operand 4, single buffered']
    #allocation14 [shape = 'u8[14336]{0}', space=vmem, size = 0x3800, scoped, tag = 'output window, operand 0, single buffered']
    %12 = vsyncpa [#allocation6], 0
    %13 = vsyncpa [#allocation9], 0
    %14 = vsyncpa [#allocation12], 0
    %15 = vsyncpa [#allocation7], 0
    // Predicated region
    $region2: #{tpu_custom_call.1} parent=1 // pred_check
      _
    $region3: #{tpu_custom_call.1} parent=1 // pred_check_branch
      %17 = sbr.rel (0) target = $region5
    $region4: #{tpu_custom_call.1} parent=1 // pred_region
      %19 = vsyncadd [#allocation6], 0
      %s21 = sshll.u32 %s0, 4
      %s22 = int_to_ptr.hbm [resolvable:$true] %s21
      %s23 = sshll.u32 [#allocation5], 4
      %s24 = int_to_ptr.vmem [resolvable:$true] %s23
      %26 = dma.hbm_to_vmem [thread:$0]  %s22, 64, %s24, [#allocation6]
    $region5: #{tpu_custom_call.1} parent=1 // pred_fallthru
      _
    // Predicated region
    $region6: #{tpu_custom_call.1} parent=1 // pred_check
      _
    $region7: #{tpu_custom_call.1} parent=1 // pred_check_branch
      %28 = sbr.rel (0) target = $region9
    $region8: #{tpu_custom_call.1} parent=1 // pred_region
      %30 = vsyncadd [#allocation9], 0
      %s32 = sshll.u32 %s1, 4
      %s33 = int_to_ptr.hbm [resolvable:$true] %s32
      %s34 = sshll.u32 [#allocation8], 4
      %s35 = int_to_ptr.vmem [resolvable:$true] %s34
      %37 = dma.hbm_to_vmem [thread:$0]  %s33, 576, %s35, [#allocation9]
    $region9: #{tpu_custom_call.1} parent=1 // pred_fallthru
      _
    // Predicated region
    $region10: #{tpu_custom_call.1} parent=1 // pred_check
      _
    $region11: #{tpu_custom_call.1} parent=1 // pred_check_branch
      %39 = sbr.rel (0) target = $region13
    $region12: #{tpu_custom_call.1} parent=1 // pred_region
      %41 = vsyncadd [#allocation9], 0
      %s42 = sshll.u32 %s2, 4
      %s43 = int_to_ptr.hbm [resolvable:$true] %s42
      %s44 = sshll.u32 [#allocation10], 4
      %s45 = int_to_ptr.vmem [resolvable:$true] %s44
      %50 = dma.hbm_to_vmem [thread:$0]  %s43, 1024, %s45, [#allocation9], 64, 64, 4
    $region13: #{tpu_custom_call.1} parent=1 // pred_fallthru
      _
    // Predicated region
    $region14: #{tpu_custom_call.1} parent=1 // pred_check
      _
    $region15: #{tpu_custom_call.1} parent=1 // pred_check_branch
      %52 = sbr.rel (0) target = $region17
    $region16: #{tpu_custom_call.1} parent=1 // pred_region
      %54 = vsyncadd [#allocation12], 0
      %s55 = sshll.u32 %s3, 4
      %s56 = int_to_ptr.hbm [resolvable:$true] %s55
      %s57 = sshll.u32 [#allocation11], 4
      %s58 = int_to_ptr.vmem [resolvable:$true] %s57
      %63 = dma.hbm_to_vmem [thread:$0]  %s56, 2048, %s58, [#allocation12], 128, 128, 8
    $region17: #{tpu_custom_call.1} parent=1 // pred_fallthru
      _
    // Predicated region
    $region18: #{tpu_custom_call.1} parent=1 // pred_check
      _
    $region19: #{tpu_custom_call.1} parent=1 // pred_check_branch
      %65 = sbr.rel (0) target = $region21
    $region20: #{tpu_custom_call.1} parent=1 // pred_region
      %67 = vsyncadd [#allocation12], 0
      %s68 = sshll.u32 %s4, 4
      %s69 = int_to_ptr.hbm [resolvable:$true] %s68
      %s70 = sshll.u32 [#allocation13], 4
      %s71 = int_to_ptr.vmem [resolvable:$true] %s70
      %76 = dma.hbm_to_vmem [thread:$0]  %s69, 8192, %s71, [#allocation12], 256, 256, 16
    $region21: #{tpu_custom_call.1} parent=1 // pred_fallthru
      _
    // Predicated region
    $region22: #{tpu_custom_call.1} parent=1 // pred_check
      _
    $region23: #{tpu_custom_call.1} parent=1 // pred_check_branch
      %78 = sbr.rel (0) target = $region25
    $region24: #{tpu_custom_call.1} parent=1 // pred_region
      %80 = dma.done [#allocation6], 64
    $region25: #{tpu_custom_call.1} parent=1 // pred_fallthru
      _
    // Predicated region
    $region26: #{tpu_custom_call.1} parent=1 // pred_check
      _
    $region27: #{tpu_custom_call.1} parent=1 // pred_check_branch
      %82 = sbr.rel (0) target = $region29
    $region28: #{tpu_custom_call.1} parent=1 // pred_region
      %84 = dma.done [#allocation9], 576
    $region29: #{tpu_custom_call.1} parent=1 // pred_fallthru
      _
    // Predicated region
    $region30: #{tpu_custom_call.1} parent=1 // pred_check
      _
    $region31: #{tpu_custom_call.1} parent=1 // pred_check_branch
      %86 = sbr.rel (0) target = $region33
    $region32: #{tpu_custom_call.1} parent=1 // pred_region
      %88 = dma.done [#allocation9], 1024
    $region33: #{tpu_custom_call.1} parent=1 // pred_fallthru
      _
    // Predicated region
    $region34: #{tpu_custom_call.1} parent=1 // pred_check
      _
    $region35: #{tpu_custom_call.1} parent=1 // pred_check_branch
      %90 = sbr.rel (0) target = $region37
    $region36: #{tpu_custom_call.1} parent=1 // pred_region
      %92 = dma.done [#allocation12], 2048
    $region37: #{tpu_custom_call.1} parent=1 // pred_fallthru
      _
    // Predicated region
    $region38: #{tpu_custom_call.1} parent=1 // pred_check
      _
    $region39: #{tpu_custom_call.1} parent=1 // pred_check_branch
      %94 = sbr.rel (0) target = $region41
    $region40: #{tpu_custom_call.1} parent=1 // pred_region
      %96 = dma.done [#allocation12], 8192
    $region41: #{tpu_custom_call.1} parent=1 // pred_fallthru
      _
    // Predicated region
    $region42: #{tpu_custom_call.1} parent=1 // pred_check
      _
    $region43: #{tpu_custom_call.1} parent=1 // pred_check_branch
      %98 = sbr.rel target = $region45
    $region44: #{tpu_custom_call.1} parent=1 // pred_region
      %99 = sst [smem:[#allocation17]] [#allocation16]
      %100 = sst [smem:[#allocation18]] [#allocation15]
    $region45: #{tpu_custom_call.1} parent=1 // pred_fallthru
      _
    %102 = shalt.err (0)
    %s104 = sshll.u32 %s5, 4
    %s105 = int_to_ptr.hbm [resolvable:$true] %s104
    %s106 = sshll.u32 [#allocation2], 4
    %s107 = int_to_ptr.vmem [resolvable:$true] %s106
    %109 = dma.hbm_to_vmem [thread:$0]  %s105, 32768, %s107, [#allocation4]
    %s110 = scalar_lea.sflag [#allocation4], 1
    // Predicated region
    $region46: #{tpu_custom_call.1} parent=1 // pred_check
      _
    $region47: #{tpu_custom_call.1} parent=1 // pred_check_branch
      %112 = sbr.rel target = $region49
    $region48: #{tpu_custom_call.1} parent=1 // pred_region
      %113 = sst [smem:[#allocation17]] [#allocation20]
      %114 = sst [smem:[#allocation18]] [#allocation19]
    $region49: #{tpu_custom_call.1} parent=1 // pred_fallthru
      _
    %116 = shalt.err (0)
    %s118 = sshll.u32 %s6, 4
    %s119 = int_to_ptr.hbm [resolvable:$true] %s118
    %s120 = sshll.u32 [#allocation3], 4
    %s121 = int_to_ptr.vmem [resolvable:$true] %s120
    %123 = dma.hbm_to_vmem [thread:$0]  %s119, 57344, %s121, %s110
    %v124 = vld [vmem:[#allocation5] sm:$0xf]
    %v125 = vld [vmem:[#allocation10] sm:$0xf]
    %v126 = vld [vmem:[#allocation10 + $0x4] sm:$0xf]
    %v127 = vld [vmem:[#allocation10 + $0x8] sm:$0xf]
    %v128 = vld [vmem:[#allocation10 + $0xc] sm:$0xf]
    %v129 = vld [vmem:[#allocation10 + $0x10] sm:$0xf]
    %v130 = vld [vmem:[#allocation10 + $0x14] sm:$0xf]
    %v131 = vld [vmem:[#allocation10 + $0x18] sm:$0xf]
    %v132 = vld [vmem:[#allocation10 + $0x1c] sm:$0xf]
    %v133 = vld [vmem:[#allocation10 + $0x20] sm:$0xf]
    %v134 = vld [vmem:[#allocation10 + $0x24] sm:$0xf]
    %v135 = vld [vmem:[#allocation10 + $0x28] sm:$0xf]
    %v136 = vld [vmem:[#allocation10 + $0x2c] sm:$0xf]
    %v137 = vld [vmem:[#allocation10 + $0x30] sm:$0xf]
    %v138 = vld [vmem:[#allocation10 + $0x34] sm:$0xf]
    %v139 = vld [vmem:[#allocation10 + $0x38] sm:$0xf]
    %v140 = vld [vmem:[#allocation10 + $0x3c] sm:$0xf]
    %v141 = vpack.c.bf16 %v124, %v124
    %v142 = vld [vmem:[#allocation8] sm:$0x1]
    %v144 = vperm.slane %v142, 0
    %v162 = vunpack.c.l.b16 %v125
    %v163 = vunpack.c.l.b16 %v126
    %v164 = vunpack.c.l.b16 %v127
    %v165 = vunpack.c.l.b16 %v128
    %v166 = vunpack.c.l.b16 %v129
    %v167 = vunpack.c.l.b16 %v130
    %v168 = vunpack.c.l.b16 %v131
    %v169 = vunpack.c.l.b16 %v132
    %v170 = vunpack.c.l.b16 %v133
    %v171 = vunpack.c.l.b16 %v134
    %v172 = vunpack.c.l.b16 %v135
    %v173 = vunpack.c.l.b16 %v136
    %v174 = vunpack.c.l.b16 %v137
    %v175 = vunpack.c.l.b16 %v138
    %v176 = vunpack.c.l.b16 %v139
    %v177 = vunpack.c.l.b16 %v140
    %v178 = vpack.c.b16 %v163, %v162
    %v179 = vpack.c.b16 %v165, %v164
    %v180 = vpack.c.b16 %v167, %v166
    %v181 = vpack.c.b16 %v169, %v168
    %v182 = vpack.c.b16 %v171, %v170
    %v183 = vpack.c.b16 %v173, %v172
    %v184 = vpack.c.b16 %v175, %v174
    %v185 = vpack.c.b16 %v177, %v176
    %194 = vmatpush.bf16.msra.mxu0 %v185
    %195 = vmatpush.bf16.msra.mxu0 %v184
    %196 = vmatpush.bf16.msra.mxu0 %v183
    %197 = vmatpush.bf16.msra.mxu0 %v182
    %198 = vmatpush.bf16.msra.mxu0 %v181
    %199 = vmatpush.bf16.msra.mxu0 %v180
    %200 = vmatpush.bf16.msra.mxu0 %v179
    %201 = vmatpush.bf16.msra.mxu0 %v178
    %202 = vmatmul.bf16.gmra.mxu0 %v141
    %v203 = vpop.f32.mrf.mxu0
    %v204 = vadd.f32 %v144, %v203
    %v205 = vpop.f32.mrf.mxu0
    %206 = vdwg.mxu0
    %v207 = vmul.f32 %v204, 0.2
    %v208 = vmax.f32 %v204, %v207
    %v209 = vld [vmem:[#allocation11] sm:$0xff]
    %v210 = vld [vmem:[#allocation11 + $0x8] sm:$0xff]
    %v211 = vld [vmem:[#allocation11 + $0x10] sm:$0xff]
    %v212 = vld [vmem:[#allocation11 + $0x18] sm:$0xff]
    %v213 = vld [vmem:[#allocation11 + $0x20] sm:$0xff]
    %v214 = vld [vmem:[#allocation11 + $0x28] sm:$0xff]
    %v215 = vld [vmem:[#allocation11 + $0x30] sm:$0xff]
    %v216 = vld [vmem:[#allocation11 + $0x38] sm:$0xff]
    %v217 = vld [vmem:[#allocation11 + $0x40] sm:$0xff]
    %v218 = vld [vmem:[#allocation11 + $0x48] sm:$0xff]
    %v219 = vld [vmem:[#allocation11 + $0x50] sm:$0xff]
    %v220 = vld [vmem:[#allocation11 + $0x58] sm:$0xff]
    %v221 = vld [vmem:[#allocation11 + $0x60] sm:$0xff]
    %v222 = vld [vmem:[#allocation11 + $0x68] sm:$0xff]
    %v223 = vld [vmem:[#allocation11 + $0x70] sm:$0xff]
    %v224 = vld [vmem:[#allocation11 + $0x78] sm:$0xff]
    %v225 = vpack.c.bf16 %v208, %v208
    %v242 = vunpack.c.l.b16 %v209
    %v243 = vunpack.c.h.b16 %v209
    %v244 = vunpack.c.l.b16 %v210
    %v245 = vunpack.c.h.b16 %v210
    %v246 = vunpack.c.l.b16 %v211
    %v247 = vunpack.c.h.b16 %v211
    %v248 = vunpack.c.l.b16 %v212
    %v249 = vunpack.c.h.b16 %v212
    %v250 = vunpack.c.l.b16 %v213
    %v251 = vunpack.c.h.b16 %v213
    %v252 = vunpack.c.l.b16 %v214
    %v253 = vunpack.c.h.b16 %v214
    %v254 = vunpack.c.l.b16 %v215
    %v255 = vunpack.c.h.b16 %v215
    %v256 = vunpack.c.l.b16 %v216
    %v257 = vunpack.c.h.b16 %v216
    %v258 = vunpack.c.l.b16 %v217
    %v259 = vunpack.c.h.b16 %v217
    %v260 = vunpack.c.l.b16 %v218
    %v261 = vunpack.c.h.b16 %v218
    %v262 = vunpack.c.l.b16 %v219
    %v263 = vunpack.c.h.b16 %v219
    %v264 = vunpack.c.l.b16 %v220
    %v265 = vunpack.c.h.b16 %v220
    %v266 = vunpack.c.l.b16 %v221
    %v267 = vunpack.c.h.b16 %v221
    %v268 = vunpack.c.l.b16 %v222
    %v269 = vunpack.c.h.b16 %v222
    %v270 = vunpack.c.l.b16 %v223
    %v271 = vunpack.c.h.b16 %v223
    %v272 = vunpack.c.l.b16 %v224
    %v273 = vunpack.c.h.b16 %v224
    %v274 = vpack.c.b16 %v244, %v242
    %v275 = vpack.c.b16 %v245, %v243
    %v276 = vpack.c.b16 %v248, %v246
    %v277 = vpack.c.b16 %v249, %v247
    %v278 = vpack.c.b16 %v252, %v250
    %v279 = vpack.c.b16 %v253, %v251
    %v280 = vpack.c.b16 %v256, %v254
    %v281 = vpack.c.b16 %v257, %v255
    %v282 = vpack.c.b16 %v260, %v258
    %v283 = vpack.c.b16 %v261, %v259
    %v284 = vpack.c.b16 %v264, %v262
    %v285 = vpack.c.b16 %v265, %v263
    %v286 = vpack.c.b16 %v268, %v266
    %v287 = vpack.c.b16 %v269, %v267
    %v288 = vpack.c.b16 %v272, %v270
    %v289 = vpack.c.b16 %v273, %v271
    %306 = vmatpush.bf16.msra.mxu0 %v288
    %307 = vmatpush.bf16.msra.mxu0 %v286
    %308 = vmatpush.bf16.msra.mxu0 %v284
    %309 = vmatpush.bf16.msra.mxu0 %v282
    %310 = vmatpush.bf16.msra.mxu0 %v280
    %311 = vmatpush.bf16.msra.mxu0 %v278
    %312 = vmatpush.bf16.msra.mxu0 %v276
    %313 = vmatpush.bf16.msra.mxu0 %v274
    %314 = vmatmul.bf16.gmra.mxu0 %v225
    %v315 = vpop.f32.mrf.mxu0
    %v316 = vadd.f32 0.0, %v315
    %v317 = vpop.f32.mrf.mxu0
    %318 = vdwg.mxu0
    %319 = vmatpush.bf16.msra.mxu0 %v289
    %320 = vmatpush.bf16.msra.mxu0 %v287
    %321 = vmatpush.bf16.msra.mxu0 %v285
    %322 = vmatpush.bf16.msra.mxu0 %v283
    %323 = vmatpush.bf16.msra.mxu0 %v281
    %324 = vmatpush.bf16.msra.mxu0 %v279
    %325 = vmatpush.bf16.msra.mxu0 %v277
    %326 = vmatpush.bf16.msra.mxu0 %v275
    %327 = vmatmul.bf16.gmra.mxu0 %v225
    %v328 = vpop.f32.mrf.mxu0
    %v329 = vadd.f32 0.0, %v328
    %v330 = vpop.f32.mrf.mxu0
    %331 = vdwg.mxu0
    %v332 = vld [vmem:[#allocation8 + $0x1] sm:$0x3]
    %v333 = vld [vmem:[#allocation8 + $0x3] sm:$0x3]
    %vm334 = vcmask 1043456
    %v335 = vsel %vm334, %v316, 0.0
    %v336 = vrot.slane %v335, 4
    %v337 = vadd.f32 %v335, %v336
    %v338 = vrot.slane %v337, 2
    %v339 = vadd.f32 %v337, %v338
    %v340 = vrot.slane %v339, 1
    %v341 = vadd.f32 %v339, %v340
    %v342 = vsel %vm334, %v329, 0.0
    %v343 = vrot.slane %v342, 4
    %v344 = vadd.f32 %v342, %v343
    %v345 = vrot.slane %v344, 2
    %v346 = vadd.f32 %v344, %v345
    %v347 = vrot.slane %v346, 1
    %v348 = vadd.f32 %v346, %v347
    %v349 = vrcp.pop 4.0
    %v350 = vmul.f32 4.0, %v349
    %v351 = vsub.f32 1.0, %v350
    %v352 = vmul.f32 %v349, %v351
    %v353 = vadd.f32 %v349, %v352
    %vm354 = vweird.f32 %v349
    %v355 = vsel %vm354, %v349, %v353
    %v356 = vmul.f32 %v341, %v355
    %v357 = vmul.f32 %v348, %v355
    %v358 = vmul.f32 %v316, %v316
    %v359 = vmul.f32 %v329, %v329
    %v360 = vsel %vm334, %v358, 0.0
    %v361 = vrot.slane %v360, 4
    %v362 = vadd.f32 %v360, %v361
    %v363 = vrot.slane %v362, 2
    %v364 = vadd.f32 %v362, %v363
    %v365 = vrot.slane %v364, 1
    %v366 = vadd.f32 %v364, %v365
    %v367 = vsel %vm334, %v359, 0.0
    %v368 = vrot.slane %v367, 4
    %v369 = vadd.f32 %v367, %v368
    %v370 = vrot.slane %v369, 2
    %v371 = vadd.f32 %v369, %v370
    %v372 = vrot.slane %v371, 1
    %v373 = vadd.f32 %v371, %v372
    %v374 = vmul.f32 %v366, %v355
    %v375 = vmul.f32 %v373, %v355
    %v376 = vmul.f32 %v356, %v356
    %v377 = vmul.f32 %v357, %v357
    %v378 = vsub.f32 %v374, %v376
    %v379 = vsub.f32 %v375, %v377
    %v380 = vadd.f32 %v378, 1e-05
    %v381 = vadd.f32 %v379, 1e-05
    %v382 = vrsqrt.pop %v380
    %v383 = vmul.f32 %v382, %v380
    %v384 = vmul.f32 %v383, %v382
    %v385 = vmul.f32 0.5, %v384
    %v386 = vsub.f32 1.5, %v385
    %v387 = vmul.f32 %v382, %v386
    %vm388 = vweird.f32 %v380
    %vm389 = vweird.f32 %v382
    %vm390 = vmor %vm388, %vm389
    %v391 = vsel %vm390, %v382, %v387
    %v392 = vrsqrt.pop %v381
    %v393 = vmul.f32 %v392, %v381
    %v394 = vmul.f32 %v393, %v392
    %v395 = vmul.f32 0.5, %v394
    %v396 = vsub.f32 1.5, %v395
    %v397 = vmul.f32 %v392, %v396
    %vm398 = vweird.f32 %v381
    %vm399 = vweird.f32 %v392
    %vm400 = vmor %vm398, %vm399
    %v401 = vsel %vm400, %v392, %v397
    %v404 = vrot.slane %v401, 7
    %vm405 = vcmask 1040384
    %v406 = vsel %vm405, %v391, %v404
    %v408 = vmul.f32 %v332, %v406
    %v410 = vperm.slane %v408, 0
    %v411 = vperm.slane %v408, 1
    %v414 = vmul.f32 %v356, %v410
    %v415 = vmul.f32 %v357, %v411
    %v418 = vrot.slane %v415, 7
    %v419 = vsel %vm405, %v414, %v418
    %v421 = vsub.f32 %v333, %v419
    %v422 = vmul.f32 %v316, %v410
    %v423 = vmul.f32 %v329, %v411
    %v425 = vperm.slane %v421, 0
    %v426 = vperm.slane %v421, 1
    %v429 = vadd.f32 %v422, %v425
    %v430 = vadd.f32 %v423, %v426
    %v431 = vmul.f32 %v429, 0.2
    %v432 = vmul.f32 %v430, 0.2
    %v433 = vmax.f32 %v429, %v431
    %v434 = vmax.f32 %v430, %v432
    %v435 = vld [vmem:[#allocation13] sm:$0xff]
    %v436 = vld [vmem:[#allocation13 + $0x8] sm:$0xff]
    %v437 = vld [vmem:[#allocation13 + $0x10] sm:$0xff]
    %v438 = vld [vmem:[#allocation13 + $0x18] sm:$0xff]
    %v439 = vld [vmem:[#allocation13 + $0x20] sm:$0xff]
    %v440 = vld [vmem:[#allocation13 + $0x28] sm:$0xff]
    %v441 = vld [vmem:[#allocation13 + $0x30] sm:$0xff]
    %v442 = vld [vmem:[#allocation13 + $0x38] sm:$0xff]
    %v443 = vld [vmem:[#allocation13 + $0x40] sm:$0xff]
    %v444 = vld [vmem:[#allocation13 + $0x48] sm:$0xff]
    %v445 = vld [vmem:[#allocation13 + $0x50] sm:$0xff]
    %v446 = vld [vmem:[#allocation13 + $0x58] sm:$0xff]
    %v447 = vld [vmem:[#allocation13 + $0x60] sm:$0xff]
    %v448 = vld [vmem:[#allocation13 + $0x68] sm:$0xff]
    %v449 = vld [vmem:[#allocation13 + $0x70] sm:$0xff]
    %v450 = vld [vmem:[#allocation13 + $0x78] sm:$0xff]
    %v451 = vld [vmem:[#allocation13 + $0x80] sm:$0xff]
    %v452 = vld [vmem:[#allocation13 + $0x88] sm:$0xff]
    %v453 = vld [vmem:[#allocation13 + $0x90] sm:$0xff]
    %v454 = vld [vmem:[#allocation13 + $0x98] sm:$0xff]
    %v455 = vld [vmem:[#allocation13 + $0xa0] sm:$0xff]
    %v456 = vld [vmem:[#allocation13 + $0xa8] sm:$0xff]
    %v457 = vld [vmem:[#allocation13 + $0xb0] sm:$0xff]
    %v458 = vld [vmem:[#allocation13 + $0xb8] sm:$0xff]
    %v459 = vld [vmem:[#allocation13 + $0xc0] sm:$0xff]
    %v460 = vld [vmem:[#allocation13 + $0xc8] sm:$0xff]
    %v461 = vld [vmem:[#allocation13 + $0xd0] sm:$0xff]
    %v462 = vld [vmem:[#allocation13 + $0xd8] sm:$0xff]
    %v463 = vld [vmem:[#allocation13 + $0xe0] sm:$0xff]
    %v464 = vld [vmem:[#allocation13 + $0xe8] sm:$0xff]
    %v465 = vld [vmem:[#allocation13 + $0xf0] sm:$0xff]
    %v466 = vld [vmem:[#allocation13 + $0xf8] sm:$0xff]
    %v467 = vld [vmem:[#allocation13 + $0x100] sm:$0xff]
    %v468 = vld [vmem:[#allocation13 + $0x108] sm:$0xff]
    %v469 = vld [vmem:[#allocation13 + $0x110] sm:$0xff]
    %v470 = vld [vmem:[#allocation13 + $0x118] sm:$0xff]
    %v471 = vld [vmem:[#allocation13 + $0x120] sm:$0xff]
    %v472 = vld [vmem:[#allocation13 + $0x128] sm:$0xff]
    %v473 = vld [vmem:[#allocation13 + $0x130] sm:$0xff]
    %v474 = vld [vmem:[#allocation13 + $0x138] sm:$0xff]
    %v475 = vld [vmem:[#allocation13 + $0x140] sm:$0xff]
    %v476 = vld [vmem:[#allocation13 + $0x148] sm:$0xff]
    %v477 = vld [vmem:[#allocation13 + $0x150] sm:$0xff]
    %v478 = vld [vmem:[#allocation13 + $0x158] sm:$0xff]
    %v479 = vld [vmem:[#allocation13 + $0x160] sm:$0xff]
    %v480 = vld [vmem:[#allocation13 + $0x168] sm:$0xff]
    %v481 = vld [vmem:[#allocation13 + $0x170] sm:$0xff]
    %v482 = vld [vmem:[#allocation13 + $0x178] sm:$0xff]
    %v483 = vld [vmem:[#allocation13 + $0x180] sm:$0xff]
    %v484 = vld [vmem:[#allocation13 + $0x188] sm:$0xff]
    %v485 = vld [vmem:[#allocation13 + $0x190] sm:$0xff]
    %v486 = vld [vmem:[#allocation13 + $0x198] sm:$0xff]
    %v487 = vld [vmem:[#allocation13 + $0x1a0] sm:$0xff]
    %v488 = vld [vmem:[#allocation13 + $0x1a8] sm:$0xff]
    %v489 = vld [vmem:[#allocation13 + $0x1b0] sm:$0xff]
    %v490 = vld [vmem:[#allocation13 + $0x1b8] sm:$0xff]
    %v491 = vld [vmem:[#allocation13 + $0x1c0] sm:$0xff]
    %v492 = vld [vmem:[#allocation13 + $0x1c8] sm:$0xff]
    %v493 = vld [vmem:[#allocation13 + $0x1d0] sm:$0xff]
    %v494 = vld [vmem:[#allocation13 + $0x1d8] sm:$0xff]
    %v495 = vld [vmem:[#allocation13 + $0x1e0] sm:$0xff]
    %v496 = vld [vmem:[#allocation13 + $0x1e8] sm:$0xff]
    %v497 = vld [vmem:[#allocation13 + $0x1f0] sm:$0xff]
    %v498 = vld [vmem:[#allocation13 + $0x1f8] sm:$0xff]
    %v499 = vpack.c.bf16 %v433, %v433
    %v500 = vpack.c.bf16 %v434, %v434
    %v565 = vunpack.c.l.b16 %v435
    %v566 = vunpack.c.h.b16 %v435
    %v567 = vunpack.c.l.b16 %v436
    %v568 = vunpack.c.h.b16 %v436
    %v569 = vunpack.c.l.b16 %v437
    %v570 = vunpack.c.h.b16 %v437
    %v571 = vunpack.c.l.b16 %v438
    %v572 = vunpack.c.h.b16 %v438
    %v573 = vunpack.c.l.b16 %v439
    %v574 = vunpack.c.h.b16 %v439
    %v575 = vunpack.c.l.b16 %v440
    %v576 = vunpack.c.h.b16 %v440
    %v577 = vunpack.c.l.b16 %v441
    %v578 = vunpack.c.h.b16 %v441
    %v579 = vunpack.c.l.b16 %v442
    %v580 = vunpack.c.h.b16 %v442
    %v581 = vunpack.c.l.b16 %v443
    %v582 = vunpack.c.h.b16 %v443
    %v583 = vunpack.c.l.b16 %v444
    %v584 = vunpack.c.h.b16 %v444
    %v585 = vunpack.c.l.b16 %v445
    %v586 = vunpack.c.h.b16 %v445
    %v587 = vunpack.c.l.b16 %v446
    %v588 = vunpack.c.h.b16 %v446
    %v589 = vunpack.c.l.b16 %v447
    %v590 = vunpack.c.h.b16 %v447
    %v591 = vunpack.c.l.b16 %v448
    %v592 = vunpack.c.h.b16 %v448
    %v593 = vunpack.c.l.b16 %v449
    %v594 = vunpack.c.h.b16 %v449
    %v595 = vunpack.c.l.b16 %v450
    %v596 = vunpack.c.h.b16 %v450
    %v597 = vunpack.c.l.b16 %v451
    %v598 = vunpack.c.h.b16 %v451
    %v599 = vunpack.c.l.b16 %v452
    %v600 = vunpack.c.h.b16 %v452
    %v601 = vunpack.c.l.b16 %v453
    %v602 = vunpack.c.h.b16 %v453
    %v603 = vunpack.c.l.b16 %v454
    %v604 = vunpack.c.h.b16 %v454
    %v605 = vunpack.c.l.b16 %v455
    %v606 = vunpack.c.h.b16 %v455
    %v607 = vunpack.c.l.b16 %v456
    %v608 = vunpack.c.h.b16 %v456
    %v609 = vunpack.c.l.b16 %v457
    %v610 = vunpack.c.h.b16 %v457
    %v611 = vunpack.c.l.b16 %v458
    %v612 = vunpack.c.h.b16 %v458
    %v613 = vunpack.c.l.b16 %v459
    %v614 = vunpack.c.h.b16 %v459
    %v615 = vunpack.c.l.b16 %v460
    %v616 = vunpack.c.h.b16 %v460
    %v617 = vunpack.c.l.b16 %v461
    %v618 = vunpack.c.h.b16 %v461
    %v619 = vunpack.c.l.b16 %v462
    %v620 = vunpack.c.h.b16 %v462
    %v621 = vunpack.c.l.b16 %v463
    %v622 = vunpack.c.h.b16 %v463
    %v623 = vunpack.c.l.b16 %v464
    %v624 = vunpack.c.h.b16 %v464
    %v625 = vunpack.c.l.b16 %v465
    %v626 = vunpack.c.h.b16 %v465
    %v627 = vunpack.c.l.b16 %v466
    %v628 = vunpack.c.h.b16 %v466
    %v629 = vunpack.c.l.b16 %v467
    %v630 = vunpack.c.h.b16 %v467
    %v631 = vunpack.c.l.b16 %v468
    %v632 = vunpack.c.h.b16 %v468
    %v633 = vunpack.c.l.b16 %v469
    %v634 = vunpack.c.h.b16 %v469
    %v635 = vunpack.c.l.b16 %v470
    %v636 = vunpack.c.h.b16 %v470
    %v637 = vunpack.c.l.b16 %v471
    %v638 = vunpack.c.h.b16 %v471
    %v639 = vunpack.c.l.b16 %v472
    %v640 = vunpack.c.h.b16 %v472
    %v641 = vunpack.c.l.b16 %v473
    %v642 = vunpack.c.h.b16 %v473
    %v643 = vunpack.c.l.b16 %v474
    %v644 = vunpack.c.h.b16 %v474
    %v645 = vunpack.c.l.b16 %v475
    %v646 = vunpack.c.h.b16 %v475
    %v647 = vunpack.c.l.b16 %v476
    %v648 = vunpack.c.h.b16 %v476
    %v649 = vunpack.c.l.b16 %v477
    %v650 = vunpack.c.h.b16 %v477
    %v651 = vunpack.c.l.b16 %v478
    %v652 = vunpack.c.h.b16 %v478
    %v653 = vunpack.c.l.b16 %v479
    %v654 = vunpack.c.h.b16 %v479
    %v655 = vunpack.c.l.b16 %v480
    %v656 = vunpack.c.h.b16 %v480
    %v657 = vunpack.c.l.b16 %v481
    %v658 = vunpack.c.h.b16 %v481
    %v659 = vunpack.c.l.b16 %v482
    %v660 = vunpack.c.h.b16 %v482
    %v661 = vunpack.c.l.b16 %v483
    %v662 = vunpack.c.h.b16 %v483
    %v663 = vunpack.c.l.b16 %v484
    %v664 = vunpack.c.h.b16 %v484
    %v665 = vunpack.c.l.b16 %v485
    %v666 = vunpack.c.h.b16 %v485
    %v667 = vunpack.c.l.b16 %v486
    %v668 = vunpack.c.h.b16 %v486
    %v669 = vunpack.c.l.b16 %v487
    %v670 = vunpack.c.h.b16 %v487
    %v671 = vunpack.c.l.b16 %v488
    %v672 = vunpack.c.h.b16 %v488
    %v673 = vunpack.c.l.b16 %v489
    %v674 = vunpack.c.h.b16 %v489
    %v675 = vunpack.c.l.b16 %v490
    %v676 = vunpack.c.h.b16 %v490
    %v677 = vunpack.c.l.b16 %v491
    %v678 = vunpack.c.h.b16 %v491
    %v679 = vunpack.c.l.b16 %v492
    %v680 = vunpack.c.h.b16 %v492
    %v681 = vunpack.c.l.b16 %v493
    %v682 = vunpack.c.h.b16 %v493
    %v683 = vunpack.c.l.b16 %v494
    %v684 = vunpack.c.h.b16 %v494
    %v685 = vunpack.c.l.b16 %v495
    %v686 = vunpack.c.h.b16 %v495
    %v687 = vunpack.c.l.b16 %v496
    %v688 = vunpack.c.h.b16 %v496
    %v689 = vunpack.c.l.b16 %v497
    %v690 = vunpack.c.h.b16 %v497
    %v691 = vunpack.c.l.b16 %v498
    %v692 = vunpack.c.h.b16 %v498
    %v693 = vpack.c.b16 %v569, %v565
    %v694 = vpack.c.b16 %v570, %v566
    %v695 = vpack.c.b16 %v571, %v567
    %v696 = vpack.c.b16 %v572, %v568
    %v697 = vpack.c.b16 %v577, %v573
    %v698 = vpack.c.b16 %v578, %v574
    %v699 = vpack.c.b16 %v579, %v575
    %v700 = vpack.c.b16 %v580, %v576
    %v701 = vpack.c.b16 %v585, %v581
    %v702 = vpack.c.b16 %v586, %v582
    %v703 = vpack.c.b16 %v587, %v583
    %v704 = vpack.c.b16 %v588, %v584
    %v705 = vpack.c.b16 %v593, %v589
    %v706 = vpack.c.b16 %v594, %v590
    %v707 = vpack.c.b16 %v595, %v591
    %v708 = vpack.c.b16 %v596, %v592
    %v709 = vpack.c.b16 %v601, %v597
    %v710 = vpack.c.b16 %v602, %v598
    %v711 = vpack.c.b16 %v603, %v599
    %v712 = vpack.c.b16 %v604, %v600
    %v713 = vpack.c.b16 %v609, %v605
    %v714 = vpack.c.b16 %v610, %v606
    %v715 = vpack.c.b16 %v611, %v607
    %v716 = vpack.c.b16 %v612, %v608
    %v717 = vpack.c.b16 %v617, %v613
    %v718 = vpack.c.b16 %v618, %v614
    %v719 = vpack.c.b16 %v619, %v615
    %v720 = vpack.c.b16 %v620, %v616
    %v721 = vpack.c.b16 %v625, %v621
    %v722 = vpack.c.b16 %v626, %v622
    %v723 = vpack.c.b16 %v627, %v623
    %v724 = vpack.c.b16 %v628, %v624
    %v725 = vpack.c.b16 %v633, %v629
    %v726 = vpack.c.b16 %v634, %v630
    %v727 = vpack.c.b16 %v635, %v631
    %v728 = vpack.c.b16 %v636, %v632
    %v729 = vpack.c.b16 %v641, %v637
    %v730 = vpack.c.b16 %v642, %v638
    %v731 = vpack.c.b16 %v643, %v639
    %v732 = vpack.c.b16 %v644, %v640
    %v733 = vpack.c.b16 %v649, %v645
    %v734 = vpack.c.b16 %v650, %v646
    %v735 = vpack.c.b16 %v651, %v647
    %v736 = vpack.c.b16 %v652, %v648
    %v737 = vpack.c.b16 %v657, %v653
    %v738 = vpack.c.b16 %v658, %v654
    %v739 = vpack.c.b16 %v659, %v655
    %v740 = vpack.c.b16 %v660, %v656
    %v741 = vpack.c.b16 %v665, %v661
    %v742 = vpack.c.b16 %v666, %v662
    %v743 = vpack.c.b16 %v667, %v663
    %v744 = vpack.c.b16 %v668, %v664
    %v745 = vpack.c.b16 %v673, %v669
    %v746 = vpack.c.b16 %v674, %v670
    %v747 = vpack.c.b16 %v675, %v671
    %v748 = vpack.c.b16 %v676, %v672
    %v749 = vpack.c.b16 %v681, %v677
    %v750 = vpack.c.b16 %v682, %v678
    %v751 = vpack.c.b16 %v683, %v679
    %v752 = vpack.c.b16 %v684, %v680
    %v753 = vpack.c.b16 %v689, %v685
    %v754 = vpack.c.b16 %v690, %v686
    %v755 = vpack.c.b16 %v691, %v687
    %v756 = vpack.c.b16 %v692, %v688
    %821 = vmatpush.bf16.msra.mxu0 %v721
    %822 = vmatpush.bf16.msra.mxu0 %v717
    %823 = vmatpush.bf16.msra.mxu0 %v713
    %824 = vmatpush.bf16.msra.mxu0 %v709
    %825 = vmatpush.bf16.msra.mxu0 %v705
    %826 = vmatpush.bf16.msra.mxu0 %v701
    %827 = vmatpush.bf16.msra.mxu0 %v697
    %828 = vmatpush.bf16.msra.mxu0 %v693
    %829 = vmatmul.bf16.gmra.mxu0 %v499
    %v830 = vpop.f32.mrf.mxu0
    %v831 = vadd.f32 0.0, %v830
    %v832 = vpop.f32.mrf.mxu0
    %833 = vdwg.mxu0
    %834 = vmatpush.bf16.msra.mxu0 %v753
    %835 = vmatpush.bf16.msra.mxu0 %v749
    %836 = vmatpush.bf16.msra.mxu0 %v745
    %837 = vmatpush.bf16.msra.mxu0 %v741
    %838 = vmatpush.bf16.msra.mxu0 %v737
    %839 = vmatpush.bf16.msra.mxu0 %v733
    %840 = vmatpush.bf16.msra.mxu0 %v729
    %841 = vmatpush.bf16.msra.mxu0 %v725
    %842 = vmatmul.bf16.gmra.mxu0 %v500
    %v843 = vpop.f32.mrf.mxu0
    %v844 = vadd.f32 %v831, %v843
    %v845 = vpop.f32.mrf.mxu0
    %846 = vdwg.mxu0
    %847 = vmatpush.bf16.msra.mxu0 %v722
    %848 = vmatpush.bf16.msra.mxu0 %v718
    %849 = vmatpush.bf16.msra.mxu0 %v714
    %850 = vmatpush.bf16.msra.mxu0 %v710
    %851 = vmatpush.bf16.msra.mxu0 %v706
    %852 = vmatpush.bf16.msra.mxu0 %v702
    %853 = vmatpush.bf16.msra.mxu0 %v698
    %854 = vmatpush.bf16.msra.mxu0 %v694
    %855 = vmatmul.bf16.gmra.mxu0 %v499
    %v856 = vpop.f32.mrf.mxu0
    %v857 = vadd.f32 0.0, %v856
    %v858 = vpop.f32.mrf.mxu0
    %859 = vdwg.mxu0
    %860 = vmatpush.bf16.msra.mxu0 %v754
    %861 = vmatpush.bf16.msra.mxu0 %v750
    %862 = vmatpush.bf16.msra.mxu0 %v746
    %863 = vmatpush.bf16.msra.mxu0 %v742
    %864 = vmatpush.bf16.msra.mxu0 %v738
    %865 = vmatpush.bf16.msra.mxu0 %v734
    %866 = vmatpush.bf16.msra.mxu0 %v730
    %867 = vmatpush.bf16.msra.mxu0 %v726
    %868 = vmatmul.bf16.gmra.mxu0 %v500
    %v869 = vpop.f32.mrf.mxu0
    %v870 = vadd.f32 %v857, %v869
    %v871 = vpop.f32.mrf.mxu0
    %872 = vdwg.mxu0
    %873 = vmatpush.bf16.msra.mxu0 %v723
    %874 = vmatpush.bf16.msra.mxu0 %v719
    %875 = vmatpush.bf16.msra.mxu0 %v715
    %876 = vmatpush.bf16.msra.mxu0 %v711
    %877 = vmatpush.bf16.msra.mxu0 %v707
    %878 = vmatpush.bf16.msra.mxu0 %v703
    %879 = vmatpush.bf16.msra.mxu0 %v699
    %880 = vmatpush.bf16.msra.mxu0 %v695
    %881 = vmatmul.bf16.gmra.mxu0 %v499
    %v882 = vpop.f32.mrf.mxu0
    %v883 = vadd.f32 0.0, %v882
    %v884 = vpop.f32.mrf.mxu0
    %885 = vdwg.mxu0
    %886 = vmatpush.bf16.msra.mxu0 %v755
    %887 = vmatpush.bf16.msra.mxu0 %v751
    %888 = vmatpush.bf16.msra.mxu0 %v747
    %889 = vmatpush.bf16.msra.mxu0 %v743
    %890 = vmatpush.bf16.msra.mxu0 %v739
    %891 = vmatpush.bf16.msra.mxu0 %v735
    %892 = vmatpush.bf16.msra.mxu0 %v731
    %893 = vmatpush.bf16.msra.mxu0 %v727
    %894 = vmatmul.bf16.gmra.mxu0 %v500
    %v895 = vpop.f32.mrf.mxu0
    %v896 = vadd.f32 %v883, %v895
    %v897 = vpop.f32.mrf.mxu0
    %898 = vdwg.mxu0
    %899 = vmatpush.bf16.msra.mxu0 %v724
    %900 = vmatpush.bf16.msra.mxu0 %v720
    %901 = vmatpush.bf16.msra.mxu0 %v716
    %902 = vmatpush.bf16.msra.mxu0 %v712
    %903 = vmatpush.bf16.msra.mxu0 %v708
    %904 = vmatpush.bf16.msra.mxu0 %v704
    %905 = vmatpush.bf16.msra.mxu0 %v700
    %906 = vmatpush.bf16.msra.mxu0 %v696
    %907 = vmatmul.bf16.gmra.mxu0 %v499
    %v908 = vpop.f32.mrf.mxu0
    %v909 = vadd.f32 0.0, %v908
    %v910 = vpop.f32.mrf.mxu0
    %911 = vdwg.mxu0
    %912 = vmatpush.bf16.msra.mxu0 %v756
    %913 = vmatpush.bf16.msra.mxu0 %v752
    %914 = vmatpush.bf16.msra.mxu0 %v748
    %915 = vmatpush.bf16.msra.mxu0 %v744
    %916 = vmatpush.bf16.msra.mxu0 %v740
    %917 = vmatpush.bf16.msra.mxu0 %v736
    %918 = vmatpush.bf16.msra.mxu0 %v732
    %919 = vmatpush.bf16.msra.mxu0 %v728
    %920 = vmatmul.bf16.gmra.mxu0 %v500
    %v921 = vpop.f32.mrf.mxu0
    %v922 = vadd.f32 %v909, %v921
    %v923 = vpop.f32.mrf.mxu0
    %924 = vdwg.mxu0
    %v925 = vld [vmem:[#allocation8 + $0x5] sm:$0xf]
    %v926 = vld [vmem:[#allocation8 + $0x9] sm:$0xf]
    %v927 = vsel %vm334, %v844, 0.0
    %v928 = vrot.slane %v927, 4
    %v929 = vadd.f32 %v927, %v928
    %v930 = vrot.slane %v929, 2
    %v931 = vadd.f32 %v929, %v930
    %v932 = vrot.slane %v931, 1
    %v933 = vadd.f32 %v931, %v932
    %v934 = vsel %vm334, %v870, 0.0
    %v935 = vrot.slane %v934, 4
    %v936 = vadd.f32 %v934, %v935
    %v937 = vrot.slane %v936, 2
    %v938 = vadd.f32 %v936, %v937
    %v939 = vrot.slane %v938, 1
    %v940 = vadd.f32 %v938, %v939
    %v941 = vsel %vm334, %v896, 0.0
    %v942 = vrot.slane %v941, 4
    %v943 = vadd.f32 %v941, %v942
    %v944 = vrot.slane %v943, 2
    %v945 = vadd.f32 %v943, %v944
    %v946 = vrot.slane %v945, 1
    %v947 = vadd.f32 %v945, %v946
    %v948 = vsel %vm334, %v922, 0.0
    %v949 = vrot.slane %v948, 4
    %v950 = vadd.f32 %v948, %v949
    %v951 = vrot.slane %v950, 2
    %v952 = vadd.f32 %v950, %v951
    %v953 = vrot.slane %v952, 1
    %v954 = vadd.f32 %v952, %v953
    %v955 = vmul.f32 %v933, %v355
    %v956 = vmul.f32 %v940, %v355
    %v957 = vmul.f32 %v947, %v355
    %v958 = vmul.f32 %v954, %v355
    %v959 = vmul.f32 %v844, %v844
    %v960 = vmul.f32 %v870, %v870
    %v961 = vmul.f32 %v896, %v896
    %v962 = vmul.f32 %v922, %v922
    %v963 = vsel %vm334, %v959, 0.0
    %v964 = vrot.slane %v963, 4
    %v965 = vadd.f32 %v963, %v964
    %v966 = vrot.slane %v965, 2
    %v967 = vadd.f32 %v965, %v966
    %v968 = vrot.slane %v967, 1
    %v969 = vadd.f32 %v967, %v968
    %v970 = vsel %vm334, %v960, 0.0
    %v971 = vrot.slane %v970, 4
    %v972 = vadd.f32 %v970, %v971
    %v973 = vrot.slane %v972, 2
    %v974 = vadd.f32 %v972, %v973
    %v975 = vrot.slane %v974, 1
    %v976 = vadd.f32 %v974, %v975
    %v977 = vsel %vm334, %v961, 0.0
    %v978 = vrot.slane %v977, 4
    %v979 = vadd.f32 %v977, %v978
    %v980 = vrot.slane %v979, 2
    %v981 = vadd.f32 %v979, %v980
    %v982 = vrot.slane %v981, 1
    %v983 = vadd.f32 %v981, %v982
    %v984 = vsel %vm334, %v962, 0.0
    %v985 = vrot.slane %v984, 4
    %v986 = vadd.f32 %v984, %v985
    %v987 = vrot.slane %v986, 2
    %v988 = vadd.f32 %v986, %v987
    %v989 = vrot.slane %v988, 1
    %v990 = vadd.f32 %v988, %v989
    %v991 = vmul.f32 %v969, %v355
    %v992 = vmul.f32 %v976, %v355
    %v993 = vmul.f32 %v983, %v355
    %v994 = vmul.f32 %v990, %v355
    %v995 = vmul.f32 %v955, %v955
    %v996 = vmul.f32 %v956, %v956
    %v997 = vmul.f32 %v957, %v957
    %v998 = vmul.f32 %v958, %v958
    %v999 = vsub.f32 %v991, %v995
    %v1000 = vsub.f32 %v992, %v996
    %v1001 = vsub.f32 %v993, %v997
    %v1002 = vsub.f32 %v994, %v998
    %v1003 = vadd.f32 %v999, 1e-05
    %v1004 = vadd.f32 %v1000, 1e-05
    %v1005 = vadd.f32 %v1001, 1e-05
    %v1006 = vadd.f32 %v1002, 1e-05
    %v1007 = vrsqrt.pop %v1003
    %v1008 = vmul.f32 %v1007, %v1003
    %v1009 = vmul.f32 %v1008, %v1007
    %v1010 = vmul.f32 0.5, %v1009
    %v1011 = vsub.f32 1.5, %v1010
    %v1012 = vmul.f32 %v1007, %v1011
    %vm1013 = vweird.f32 %v1003
    %vm1014 = vweird.f32 %v1007
    %vm1015 = vmor %vm1013, %vm1014
    %v1016 = vsel %vm1015, %v1007, %v1012
    %v1017 = vrsqrt.pop %v1004
    %v1018 = vmul.f32 %v1017, %v1004
    %v1019 = vmul.f32 %v1018, %v1017
    %v1020 = vmul.f32 0.5, %v1019
    %v1021 = vsub.f32 1.5, %v1020
    %v1022 = vmul.f32 %v1017, %v1021
    %vm1023 = vweird.f32 %v1004
    %vm1024 = vweird.f32 %v1017
    %vm1025 = vmor %vm1023, %vm1024
    %v1026 = vsel %vm1025, %v1017, %v1022
    %v1027 = vrsqrt.pop %v1005
    %v1028 = vmul.f32 %v1027, %v1005
    %v1029 = vmul.f32 %v1028, %v1027
    %v1030 = vmul.f32 0.5, %v1029
    %v1031 = vsub.f32 1.5, %v1030
    %v1032 = vmul.f32 %v1027, %v1031
    %vm1033 = vweird.f32 %v1005
    %vm1034 = vweird.f32 %v1027
    %vm1035 = vmor %vm1033, %vm1034
    %v1036 = vsel %vm1035, %v1027, %v1032
    %v1037 = vrsqrt.pop %v1006
    %v1038 = vmul.f32 %v1037, %v1006
    %v1039 = vmul.f32 %v1038, %v1037
    %v1040 = vmul.f32 0.5, %v1039
    %v1041 = vsub.f32 1.5, %v1040
    %v1042 = vmul.f32 %v1037, %v1041
    %vm1043 = vweird.f32 %v1006
    %vm1044 = vweird.f32 %v1037
    %vm1045 = vmor %vm1043, %vm1044
    %v1046 = vsel %vm1045, %v1037, %v1042
    %v1051 = vrot.slane %v1026, 7
    %v1052 = vrot.slane %v1036, 6
    %v1053 = vrot.slane %v1046, 5
    %v1054 = vsel %vm405, %v1016, %v1051
    %vm1055 = vcmask 1042434
    %v1056 = vsel %vm1055, %v1052, %v1053
    %vm1057 = vcmask 1041408
    %v1058 = vsel %vm1057, %v1054, %v1056
    %v1060 = vmul.f32 %v925, %v1058
    %v1062 = vperm.slane %v1060, 0
    %v1063 = vperm.slane %v1060, 1
    %v1064 = vperm.slane %v1060, 2
    %v1065 = vperm.slane %v1060, 3
    %v1070 = vmul.f32 %v955, %v1062
    %v1071 = vmul.f32 %v956, %v1063
    %v1072 = vmul.f32 %v957, %v1064
    %v1073 = vmul.f32 %v958, %v1065
    %v1078 = vrot.slane %v1071, 7
    %v1079 = vrot.slane %v1072, 6
    %v1080 = vrot.slane %v1073, 5
    %v1081 = vsel %vm405, %v1070, %v1078
    %v1082 = vsel %vm1055, %v1079, %v1080
    %v1083 = vsel %vm1057, %v1081, %v1082
    %v1085 = vsub.f32 %v926, %v1083
    %v1086 = vmul.f32 %v844, %v1062
    %v1087 = vmul.f32 %v870, %v1063
    %v1088 = vmul.f32 %v896, %v1064
    %v1089 = vmul.f32 %v922, %v1065
    %v1091 = vperm.slane %v1085, 0
    %v1092 = vperm.slane %v1085, 1
    %v1093 = vperm.slane %v1085, 2
    %v1094 = vperm.slane %v1085, 3
    %v1099 = vadd.f32 %v1086, %v1091
    %v1100 = vadd.f32 %v1087, %v1092
    %v1101 = vadd.f32 %v1088, %v1093
    %v1102 = vadd.f32 %v1089, %v1094
    %v1103 = vmul.f32 %v1099, 0.2
    %v1104 = vmul.f32 %v1100, 0.2
    %v1105 = vmul.f32 %v1101, 0.2
    %v1106 = vmul.f32 %v1102, 0.2
    %v1107 = vmax.f32 %v1099, %v1103
    %v1108 = vmax.f32 %v1100, %v1104
    %v1109 = vmax.f32 %v1101, %v1105
    %v1110 = vmax.f32 %v1102, %v1106
    %s1111 = smul.u32 4, 64
    %s1112 = smul.u32 %s1111, 8
    %s1113 = sshll.u32 %s1112, 4
    %1114 = dma.done [#allocation4], %s1113
    %v1115 = vld [vmem:[#allocation2] sm:$0xff]
    %v1116 = vld [vmem:[#allocation2 + $0x8] sm:$0xff]
    %v1117 = vld [vmem:[#allocation2 + $0x10] sm:$0xff]
    %v1118 = vld [vmem:[#allocation2 + $0x18] sm:$0xff]
    %v1119 = vld [vmem:[#allocation2 + $0x20] sm:$0xff]
    %v1120 = vld [vmem:[#allocation2 + $0x28] sm:$0xff]
    %v1121 = vld [vmem:[#allocation2 + $0x30] sm:$0xff]
    %v1122 = vld [vmem:[#allocation2 + $0x38] sm:$0xff]
    %v1123 = vld [vmem:[#allocation2 + $0x40] sm:$0xff]
    %v1124 = vld [vmem:[#allocation2 + $0x48] sm:$0xff]
    %v1125 = vld [vmem:[#allocation2 + $0x50] sm:$0xff]
    %v1126 = vld [vmem:[#allocation2 + $0x58] sm:$0xff]
    %v1127 = vld [vmem:[#allocation2 + $0x60] sm:$0xff]
    %v1128 = vld [vmem:[#allocation2 + $0x68] sm:$0xff]
    %v1129 = vld [vmem:[#allocation2 + $0x70] sm:$0xff]
    %v1130 = vld [vmem:[#allocation2 + $0x78] sm:$0xff]
    %v1131 = vld [vmem:[#allocation2 + $0x80] sm:$0xff]
    %v1132 = vld [vmem:[#allocation2 + $0x88] sm:$0xff]
    %v1133 = vld [vmem:[#allocation2 + $0x90] sm:$0xff]
    %v1134 = vld [vmem:[#allocation2 + $0x98] sm:$0xff]
    %v1135 = vld [vmem:[#allocation2 + $0xa0] sm:$0xff]
    %v1136 = vld [vmem:[#allocation2 + $0xa8] sm:$0xff]
    %v1137 = vld [vmem:[#allocation2 + $0xb0] sm:$0xff]
    %v1138 = vld [vmem:[#allocation2 + $0xb8] sm:$0xff]
    %v1139 = vld [vmem:[#allocation2 + $0xc0] sm:$0xff]
    %v1140 = vld [vmem:[#allocation2 + $0xc8] sm:$0xff]
    %v1141 = vld [vmem:[#allocation2 + $0xd0] sm:$0xff]
    %v1142 = vld [vmem:[#allocation2 + $0xd8] sm:$0xff]
    %v1143 = vld [vmem:[#allocation2 + $0xe0] sm:$0xff]
    %v1144 = vld [vmem:[#allocation2 + $0xe8] sm:$0xff]
    %v1145 = vld [vmem:[#allocation2 + $0xf0] sm:$0xff]
    %v1146 = vld [vmem:[#allocation2 + $0xf8] sm:$0xff]
    %v1147 = vld [vmem:[#allocation2 + $0x100] sm:$0xff]
    %v1148 = vld [vmem:[#allocation2 + $0x108] sm:$0xff]
    %v1149 = vld [vmem:[#allocation2 + $0x110] sm:$0xff]
    %v1150 = vld [vmem:[#allocation2 + $0x118] sm:$0xff]
    %v1151 = vld [vmem:[#allocation2 + $0x120] sm:$0xff]
    %v1152 = vld [vmem:[#allocation2 + $0x128] sm:$0xff]
    %v1153 = vld [vmem:[#allocation2 + $0x130] sm:$0xff]
    %v1154 = vld [vmem:[#allocation2 + $0x138] sm:$0xff]
    %v1155 = vld [vmem:[#allocation2 + $0x140] sm:$0xff]
    %v1156 = vld [vmem:[#allocation2 + $0x148] sm:$0xff]
    %v1157 = vld [vmem:[#allocation2 + $0x150] sm:$0xff]
    %v1158 = vld [vmem:[#allocation2 + $0x158] sm:$0xff]
    %v1159 = vld [vmem:[#allocation2 + $0x160] sm:$0xff]
    %v1160 = vld [vmem:[#allocation2 + $0x168] sm:$0xff]
    %v1161 = vld [vmem:[#allocation2 + $0x170] sm:$0xff]
    %v1162 = vld [vmem:[#allocation2 + $0x178] sm:$0xff]
    %v1163 = vld [vmem:[#allocation2 + $0x180] sm:$0xff]
    %v1164 = vld [vmem:[#allocation2 + $0x188] sm:$0xff]
    %v1165 = vld [vmem:[#allocation2 + $0x190] sm:$0xff]
    %v1166 = vld [vmem:[#allocation2 + $0x198] sm:$0xff]
    %v1167 = vld [vmem:[#allocation2 + $0x1a0] sm:$0xff]
    %v1168 = vld [vmem:[#allocation2 + $0x1a8] sm:$0xff]
    %v1169 = vld [vmem:[#allocation2 + $0x1b0] sm:$0xff]
    %v1170 = vld [vmem:[#allocation2 + $0x1b8] sm:$0xff]
    %v1171 = vld [vmem:[#allocation2 + $0x1c0] sm:$0xff]
    %v1172 = vld [vmem:[#allocation2 + $0x1c8] sm:$0xff]
    %v1173 = vld [vmem:[#allocation2 + $0x1d0] sm:$0xff]
    %v1174 = vld [vmem:[#allocation2 + $0x1d8] sm:$0xff]
    %v1175 = vld [vmem:[#allocation2 + $0x1e0] sm:$0xff]
    %v1176 = vld [vmem:[#allocation2 + $0x1e8] sm:$0xff]
    %v1177 = vld [vmem:[#allocation2 + $0x1f0] sm:$0xff]
    %v1178 = vld [vmem:[#allocation2 + $0x1f8] sm:$0xff]
    %v1179 = vld [vmem:[#allocation2 + $0x200] sm:$0xff]
    %v1180 = vld [vmem:[#allocation2 + $0x208] sm:$0xff]
    %v1181 = vld [vmem:[#allocation2 + $0x210] sm:$0xff]
    %v1182 = vld [vmem:[#allocation2 + $0x218] sm:$0xff]
    %v1183 = vld [vmem:[#allocation2 + $0x220] sm:$0xff]
    %v1184 = vld [vmem:[#allocation2 + $0x228] sm:$0xff]
    %v1185 = vld [vmem:[#allocation2 + $0x230] sm:$0xff]
    %v1186 = vld [vmem:[#allocation2 + $0x238] sm:$0xff]
    %v1187 = vld [vmem:[#allocation2 + $0x240] sm:$0xff]
    %v1188 = vld [vmem:[#allocation2 + $0x248] sm:$0xff]
    %v1189 = vld [vmem:[#allocation2 + $0x250] sm:$0xff]
    %v1190 = vld [vmem:[#allocation2 + $0x258] sm:$0xff]
    %v1191 = vld [vmem:[#allocation2 + $0x260] sm:$0xff]
    %v1192 = vld [vmem:[#allocation2 + $0x268] sm:$0xff]
    %v1193 = vld [vmem:[#allocation2 + $0x270] sm:$0xff]
    %v1194 = vld [vmem:[#allocation2 + $0x278] sm:$0xff]
    %v1195 = vld [vmem:[#allocation2 + $0x280] sm:$0xff]
    %v1196 = vld [vmem:[#allocation2 + $0x288] sm:$0xff]
    %v1197 = vld [vmem:[#allocation2 + $0x290] sm:$0xff]
    %v1198 = vld [vmem:[#allocation2 + $0x298] sm:$0xff]
    %v1199 = vld [vmem:[#allocation2 + $0x2a0] sm:$0xff]
    %v1200 = vld [vmem:[#allocation2 + $0x2a8] sm:$0xff]
    %v1201 = vld [vmem:[#allocation2 + $0x2b0] sm:$0xff]
    %v1202 = vld [vmem:[#allocation2 + $0x2b8] sm:$0xff]
    %v1203 = vld [vmem:[#allocation2 + $0x2c0] sm:$0xff]
    %v1204 = vld [vmem:[#allocation2 + $0x2c8] sm:$0xff]
    %v1205 = vld [vmem:[#allocation2 + $0x2d0] sm:$0xff]
    %v1206 = vld [vmem:[#allocation2 + $0x2d8] sm:$0xff]
    %v1207 = vld [vmem:[#allocation2 + $0x2e0] sm:$0xff]
    %v1208 = vld [vmem:[#allocation2 + $0x2e8] sm:$0xff]
    %v1209 = vld [vmem:[#allocation2 + $0x2f0] sm:$0xff]
    %v1210 = vld [vmem:[#allocation2 + $0x2f8] sm:$0xff]
    %v1211 = vld [vmem:[#allocation2 + $0x300] sm:$0xff]
    %v1212 = vld [vmem:[#allocation2 + $0x308] sm:$0xff]
    %v1213 = vld [vmem:[#allocation2 + $0x310] sm:$0xff]
    %v1214 = vld [vmem:[#allocation2 + $0x318] sm:$0xff]
    %v1215 = vld [vmem:[#allocation2 + $0x320] sm:$0xff]
    %v1216 = vld [vmem:[#allocation2 + $0x328] sm:$0xff]
    %v1217 = vld [vmem:[#allocation2 + $0x330] sm:$0xff]
    %v1218 = vld [vmem:[#allocation2 + $0x338] sm:$0xff]
    %v1219 = vld [vmem:[#allocation2 + $0x340] sm:$0xff]
    %v1220 = vld [vmem:[#allocation2 + $0x348] sm:$0xff]
    %v1221 = vld [vmem:[#allocation2 + $0x350] sm:$0xff]
    %v1222 = vld [vmem:[#allocation2 + $0x358] sm:$0xff]
    %v1223 = vld [vmem:[#allocation2 + $0x360] sm:$0xff]
    %v1224 = vld [vmem:[#allocation2 + $0x368] sm:$0xff]
    %v1225 = vld [vmem:[#allocation2 + $0x370] sm:$0xff]
    %v1226 = vld [vmem:[#allocation2 + $0x378] sm:$0xff]
    %v1227 = vld [vmem:[#allocation2 + $0x380] sm:$0xff]
    %v1228 = vld [vmem:[#allocation2 + $0x388] sm:$0xff]
    %v1229 = vld [vmem:[#allocation2 + $0x390] sm:$0xff]
    %v1230 = vld [vmem:[#allocation2 + $0x398] sm:$0xff]
    %v1231 = vld [vmem:[#allocation2 + $0x3a0] sm:$0xff]
    %v1232 = vld [vmem:[#allocation2 + $0x3a8] sm:$0xff]
    %v1233 = vld [vmem:[#allocation2 + $0x3b0] sm:$0xff]
    %v1234 = vld [vmem:[#allocation2 + $0x3b8] sm:$0xff]
    %v1235 = vld [vmem:[#allocation2 + $0x3c0] sm:$0xff]
    %v1236 = vld [vmem:[#allocation2 + $0x3c8] sm:$0xff]
    %v1237 = vld [vmem:[#allocation2 + $0x3d0] sm:$0xff]
    %v1238 = vld [vmem:[#allocation2 + $0x3d8] sm:$0xff]
    %v1239 = vld [vmem:[#allocation2 + $0x3e0] sm:$0xff]
    %v1240 = vld [vmem:[#allocation2 + $0x3e8] sm:$0xff]
    %v1241 = vld [vmem:[#allocation2 + $0x3f0] sm:$0xff]
    %v1242 = vld [vmem:[#allocation2 + $0x3f8] sm:$0xff]
    %v1243 = vld [vmem:[#allocation2 + $0x400] sm:$0xff]
    %v1244 = vld [vmem:[#allocation2 + $0x408] sm:$0xff]
    %v1245 = vld [vmem:[#allocation2 + $0x410] sm:$0xff]
    %v1246 = vld [vmem:[#allocation2 + $0x418] sm:$0xff]
    %v1247 = vld [vmem:[#allocation2 + $0x420] sm:$0xff]
    %v1248 = vld [vmem:[#allocation2 + $0x428] sm:$0xff]
    %v1249 = vld [vmem:[#allocation2 + $0x430] sm:$0xff]
    %v1250 = vld [vmem:[#allocation2 + $0x438] sm:$0xff]
    %v1251 = vld [vmem:[#allocation2 + $0x440] sm:$0xff]
    %v1252 = vld [vmem:[#allocation2 + $0x448] sm:$0xff]
    %v1253 = vld [vmem:[#allocation2 + $0x450] sm:$0xff]
    %v1254 = vld [vmem:[#allocation2 + $0x458] sm:$0xff]
    %v1255 = vld [vmem:[#allocation2 + $0x460] sm:$0xff]
    %v1256 = vld [vmem:[#allocation2 + $0x468] sm:$0xff]
    %v1257 = vld [vmem:[#allocation2 + $0x470] sm:$0xff]
    %v1258 = vld [vmem:[#allocation2 + $0x478] sm:$0xff]
    %v1259 = vld [vmem:[#allocation2 + $0x480] sm:$0xff]
    %v1260 = vld [vmem:[#allocation2 + $0x488] sm:$0xff]
    %v1261 = vld [vmem:[#allocation2 + $0x490] sm:$0xff]
    %v1262 = vld [vmem:[#allocation2 + $0x498] sm:$0xff]
    %v1263 = vld [vmem:[#allocation2 + $0x4a0] sm:$0xff]
    %v1264 = vld [vmem:[#allocation2 + $0x4a8] sm:$0xff]
    %v1265 = vld [vmem:[#allocation2 + $0x4b0] sm:$0xff]
    %v1266 = vld [vmem:[#allocation2 + $0x4b8] sm:$0xff]
    %v1267 = vld [vmem:[#allocation2 + $0x4c0] sm:$0xff]
    %v1268 = vld [vmem:[#allocation2 + $0x4c8] sm:$0xff]
    %v1269 = vld [vmem:[#allocation2 + $0x4d0] sm:$0xff]
    %v1270 = vld [vmem:[#allocation2 + $0x4d8] sm:$0xff]
    %v1271 = vld [vmem:[#allocation2 + $0x4e0] sm:$0xff]
    %v1272 = vld [vmem:[#allocation2 + $0x4e8] sm:$0xff]
    %v1273 = vld [vmem:[#allocation2 + $0x4f0] sm:$0xff]
    %v1274 = vld [vmem:[#allocation2 + $0x4f8] sm:$0xff]
    %v1275 = vld [vmem:[#allocation2 + $0x500] sm:$0xff]
    %v1276 = vld [vmem:[#allocation2 + $0x508] sm:$0xff]
    %v1277 = vld [vmem:[#allocation2 + $0x510] sm:$0xff]
    %v1278 = vld [vmem:[#allocation2 + $0x518] sm:$0xff]
    %v1279 = vld [vmem:[#allocation2 + $0x520] sm:$0xff]
    %v1280 = vld [vmem:[#allocation2 + $0x528] sm:$0xff]
    %v1281 = vld [vmem:[#allocation2 + $0x530] sm:$0xff]
    %v1282 = vld [vmem:[#allocation2 + $0x538] sm:$0xff]
    %v1283 = vld [vmem:[#allocation2 + $0x540] sm:$0xff]
    %v1284 = vld [vmem:[#allocation2 + $0x548] sm:$0xff]
    %v1285 = vld [vmem:[#allocation2 + $0x550] sm:$0xff]
    %v1286 = vld [vmem:[#allocation2 + $0x558] sm:$0xff]
    %v1287 = vld [vmem:[#allocation2 + $0x560] sm:$0xff]
    %v1288 = vld [vmem:[#allocation2 + $0x568] sm:$0xff]
    %v1289 = vld [vmem:[#allocation2 + $0x570] sm:$0xff]
    %v1290 = vld [vmem:[#allocation2 + $0x578] sm:$0xff]
    %v1291 = vld [vmem:[#allocation2 + $0x580] sm:$0xff]
    %v1292 = vld [vmem:[#allocation2 + $0x588] sm:$0xff]
    %v1293 = vld [vmem:[#allocation2 + $0x590] sm:$0xff]
    %v1294 = vld [vmem:[#allocation2 + $0x598] sm:$0xff]
    %v1295 = vld [vmem:[#allocation2 + $0x5a0] sm:$0xff]
    %v1296 = vld [vmem:[#allocation2 + $0x5a8] sm:$0xff]
    %v1297 = vld [vmem:[#allocation2 + $0x5b0] sm:$0xff]
    %v1298 = vld [vmem:[#allocation2 + $0x5b8] sm:$0xff]
    %v1299 = vld [vmem:[#allocation2 + $0x5c0] sm:$0xff]
    %v1300 = vld [vmem:[#allocation2 + $0x5c8] sm:$0xff]
    %v1301 = vld [vmem:[#allocation2 + $0x5d0] sm:$0xff]
    %v1302 = vld [vmem:[#allocation2 + $0x5d8] sm:$0xff]
    %v1303 = vld [vmem:[#allocation2 + $0x5e0] sm:$0xff]
    %v1304 = vld [vmem:[#allocation2 + $0x5e8] sm:$0xff]
    %v1305 = vld [vmem:[#allocation2 + $0x5f0] sm:$0xff]
    %v1306 = vld [vmem:[#allocation2 + $0x5f8] sm:$0xff]
    %v1307 = vld [vmem:[#allocation2 + $0x600] sm:$0xff]
    %v1308 = vld [vmem:[#allocation2 + $0x608] sm:$0xff]
    %v1309 = vld [vmem:[#allocation2 + $0x610] sm:$0xff]
    %v1310 = vld [vmem:[#allocation2 + $0x618] sm:$0xff]
    %v1311 = vld [vmem:[#allocation2 + $0x620] sm:$0xff]
    %v1312 = vld [vmem:[#allocation2 + $0x628] sm:$0xff]
    %v1313 = vld [vmem:[#allocation2 + $0x630] sm:$0xff]
    %v1314 = vld [vmem:[#allocation2 + $0x638] sm:$0xff]
    %v1315 = vld [vmem:[#allocation2 + $0x640] sm:$0xff]
    %v1316 = vld [vmem:[#allocation2 + $0x648] sm:$0xff]
    %v1317 = vld [vmem:[#allocation2 + $0x650] sm:$0xff]
    %v1318 = vld [vmem:[#allocation2 + $0x658] sm:$0xff]
    %v1319 = vld [vmem:[#allocation2 + $0x660] sm:$0xff]
    %v1320 = vld [vmem:[#allocation2 + $0x668] sm:$0xff]
    %v1321 = vld [vmem:[#allocation2 + $0x670] sm:$0xff]
    %v1322 = vld [vmem:[#allocation2 + $0x678] sm:$0xff]
    %v1323 = vld [vmem:[#allocation2 + $0x680] sm:$0xff]
    %v1324 = vld [vmem:[#allocation2 + $0x688] sm:$0xff]
    %v1325 = vld [vmem:[#allocation2 + $0x690] sm:$0xff]
    %v1326 = vld [vmem:[#allocation2 + $0x698] sm:$0xff]
    %v1327 = vld [vmem:[#allocation2 + $0x6a0] sm:$0xff]
    %v1328 = vld [vmem:[#allocation2 + $0x6a8] sm:$0xff]
    %v1329 = vld [vmem:[#allocation2 + $0x6b0] sm:$0xff]
    %v1330 = vld [vmem:[#allocation2 + $0x6b8] sm:$0xff]
    %v1331 = vld [vmem:[#allocation2 + $0x6c0] sm:$0xff]
    %v1332 = vld [vmem:[#allocation2 + $0x6c8] sm:$0xff]
    %v1333 = vld [vmem:[#allocation2 + $0x6d0] sm:$0xff]
    %v1334 = vld [vmem:[#allocation2 + $0x6d8] sm:$0xff]
    %v1335 = vld [vmem:[#allocation2 + $0x6e0] sm:$0xff]
    %v1336 = vld [vmem:[#allocation2 + $0x6e8] sm:$0xff]
    %v1337 = vld [vmem:[#allocation2 + $0x6f0] sm:$0xff]
    %v1338 = vld [vmem:[#allocation2 + $0x6f8] sm:$0xff]
    %v1339 = vld [vmem:[#allocation2 + $0x700] sm:$0xff]
    %v1340 = vld [vmem:[#allocation2 + $0x708] sm:$0xff]
    %v1341 = vld [vmem:[#allocation2 + $0x710] sm:$0xff]
    %v1342 = vld [vmem:[#allocation2 + $0x718] sm:$0xff]
    %v1343 = vld [vmem:[#allocation2 + $0x720] sm:$0xff]
    %v1344 = vld [vmem:[#allocation2 + $0x728] sm:$0xff]
    %v1345 = vld [vmem:[#allocation2 + $0x730] sm:$0xff]
    %v1346 = vld [vmem:[#allocation2 + $0x738] sm:$0xff]
    %v1347 = vld [vmem:[#allocation2 + $0x740] sm:$0xff]
    %v1348 = vld [vmem:[#allocation2 + $0x748] sm:$0xff]
    %v1349 = vld [vmem:[#allocation2 + $0x750] sm:$0xff]
    %v1350 = vld [vmem:[#allocation2 + $0x758] sm:$0xff]
    %v1351 = vld [vmem:[#allocation2 + $0x760] sm:$0xff]
    %v1352 = vld [vmem:[#allocation2 + $0x768] sm:$0xff]
    %v1353 = vld [vmem:[#allocation2 + $0x770] sm:$0xff]
    %v1354 = vld [vmem:[#allocation2 + $0x778] sm:$0xff]
    %v1355 = vld [vmem:[#allocation2 + $0x780] sm:$0xff]
    %v1356 = vld [vmem:[#allocation2 + $0x788] sm:$0xff]
    %v1357 = vld [vmem:[#allocation2 + $0x790] sm:$0xff]
    %v1358 = vld [vmem:[#allocation2 + $0x798] sm:$0xff]
    %v1359 = vld [vmem:[#allocation2 + $0x7a0] sm:$0xff]
    %v1360 = vld [vmem:[#allocation2 + $0x7a8] sm:$0xff]
    %v1361 = vld [vmem:[#allocation2 + $0x7b0] sm:$0xff]
    %v1362 = vld [vmem:[#allocation2 + $0x7b8] sm:$0xff]
    %v1363 = vld [vmem:[#allocation2 + $0x7c0] sm:$0xff]
    %v1364 = vld [vmem:[#allocation2 + $0x7c8] sm:$0xff]
    %v1365 = vld [vmem:[#allocation2 + $0x7d0] sm:$0xff]
    %v1366 = vld [vmem:[#allocation2 + $0x7d8] sm:$0xff]
    %v1367 = vld [vmem:[#allocation2 + $0x7e0] sm:$0xff]
    %v1368 = vld [vmem:[#allocation2 + $0x7e8] sm:$0xff]
    %v1369 = vld [vmem:[#allocation2 + $0x7f0] sm:$0xff]
    %v1370 = vld [vmem:[#allocation2 + $0x7f8] sm:$0xff]
    %v1371 = vpack.c.bf16 %v1107, %v1107
    %v1372 = vpack.c.bf16 %v1108, %v1108
    %v1373 = vpack.c.bf16 %v1109, %v1109
    %v1374 = vpack.c.bf16 %v1110, %v1110
    %v1631 = vunpack.c.l.b16 %v1115
    %v1632 = vunpack.c.h.b16 %v1115
    %v1633 = vunpack.c.l.b16 %v1116
    %v1634 = vunpack.c.h.b16 %v1116
    %v1635 = vunpack.c.l.b16 %v1117
    %v1636 = vunpack.c.h.b16 %v1117
    %v1637 = vunpack.c.l.b16 %v1118
    %v1638 = vunpack.c.h.b16 %v1118
    %v1639 = vunpack.c.l.b16 %v1119
    %v1640 = vunpack.c.h.b16 %v1119
    %v1641 = vunpack.c.l.b16 %v1120
    %v1642 = vunpack.c.h.b16 %v1120
    %v1643 = vunpack.c.l.b16 %v1121
    %v1644 = vunpack.c.h.b16 %v1121
    %v1645 = vunpack.c.l.b16 %v1122
    %v1646 = vunpack.c.h.b16 %v1122
    %v1647 = vunpack.c.l.b16 %v1123
    %v1648 = vunpack.c.h.b16 %v1123
    %v1649 = vunpack.c.l.b16 %v1124
    %v1650 = vunpack.c.h.b16 %v1124
    %v1651 = vunpack.c.l.b16 %v1125
    %v1652 = vunpack.c.h.b16 %v1125
    %v1653 = vunpack.c.l.b16 %v1126
    %v1654 = vunpack.c.h.b16 %v1126
    %v1655 = vunpack.c.l.b16 %v1127
    %v1656 = vunpack.c.h.b16 %v1127
    %v1657 = vunpack.c.l.b16 %v1128
    %v1658 = vunpack.c.h.b16 %v1128
    %v1659 = vunpack.c.l.b16 %v1129
    %v1660 = vunpack.c.h.b16 %v1129
    %v1661 = vunpack.c.l.b16 %v1130
    %v1662 = vunpack.c.h.b16 %v1130
    %v1663 = vunpack.c.l.b16 %v1131
    %v1664 = vunpack.c.h.b16 %v1131
    %v1665 = vunpack.c.l.b16 %v1132
    %v1666 = vunpack.c.h.b16 %v1132
    %v1667 = vunpack.c.l.b16 %v1133
    %v1668 = vunpack.c.h.b16 %v1133
    %v1669 = vunpack.c.l.b16 %v1134
    %v1670 = vunpack.c.h.b16 %v1134
    %v1671 = vunpack.c.l.b16 %v1135
    %v1672 = vunpack.c.h.b16 %v1135
    %v1673 = vunpack.c.l.b16 %v1136
    %v1674 = vunpack.c.h.b16 %v1136
    %v1675 = vunpack.c.l.b16 %v1137
    %v1676 = vunpack.c.h.b16 %v1137
    %v1677 = vunpack.c.l.b16 %v1138
    %v1678 = vunpack.c.h.b16 %v1138
    %v1679 = vunpack.c.l.b16 %v1139
    %v1680 = vunpack.c.h.b16 %v1139
    %v1681 = vunpack.c.l.b16 %v1140
    %v1682 = vunpack.c.h.b16 %v1140
    %v1683 = vunpack.c.l.b16 %v1141
    %v1684 = vunpack.c.h.b16 %v1141
    %v1685 = vunpack.c.l.b16 %v1142
    %v1686 = vunpack.c.h.b16 %v1142
    %v1687 = vunpack.c.l.b16 %v1143
    %v1688 = vunpack.c.h.b16 %v1143
    %v1689 = vunpack.c.l.b16 %v1144
    %v1690 = vunpack.c.h.b16 %v1144
    %v1691 = vunpack.c.l.b16 %v1145
    %v1692 = vunpack.c.h.b16 %v1145
    %v1693 = vunpack.c.l.b16 %v1146
    %v1694 = vunpack.c.h.b16 %v1146
    %v1695 = vunpack.c.l.b16 %v1147
    %v1696 = vunpack.c.h.b16 %v1147
    %v1697 = vunpack.c.l.b16 %v1148
    %v1698 = vunpack.c.h.b16 %v1148
    %v1699 = vunpack.c.l.b16 %v1149
    %v1700 = vunpack.c.h.b16 %v1149
    %v1701 = vunpack.c.l.b16 %v1150
    %v1702 = vunpack.c.h.b16 %v1150
    %v1703 = vunpack.c.l.b16 %v1151
    %v1704 = vunpack.c.h.b16 %v1151
    %v1705 = vunpack.c.l.b16 %v1152
    %v1706 = vunpack.c.h.b16 %v1152
    %v1707 = vunpack.c.l.b16 %v1153
    %v1708 = vunpack.c.h.b16 %v1153
    %v1709 = vunpack.c.l.b16 %v1154
    %v1710 = vunpack.c.h.b16 %v1154
    %v1711 = vunpack.c.l.b16 %v1155
    %v1712 = vunpack.c.h.b16 %v1155
    %v1713 = vunpack.c.l.b16 %v1156
    %v1714 = vunpack.c.h.b16 %v1156
    %v1715 = vunpack.c.l.b16 %v1157
    %v1716 = vunpack.c.h.b16 %v1157
    %v1717 = vunpack.c.l.b16 %v1158
    %v1718 = vunpack.c.h.b16 %v1158
    %v1719 = vunpack.c.l.b16 %v1159
    %v1720 = vunpack.c.h.b16 %v1159
    %v1721 = vunpack.c.l.b16 %v1160
    %v1722 = vunpack.c.h.b16 %v1160
    %v1723 = vunpack.c.l.b16 %v1161
    %v1724 = vunpack.c.h.b16 %v1161
    %v1725 = vunpack.c.l.b16 %v1162
    %v1726 = vunpack.c.h.b16 %v1162
    %v1727 = vunpack.c.l.b16 %v1163
    %v1728 = vunpack.c.h.b16 %v1163
    %v1729 = vunpack.c.l.b16 %v1164
    %v1730 = vunpack.c.h.b16 %v1164
    %v1731 = vunpack.c.l.b16 %v1165
    %v1732 = vunpack.c.h.b16 %v1165
    %v1733 = vunpack.c.l.b16 %v1166
    %v1734 = vunpack.c.h.b16 %v1166
    %v1735 = vunpack.c.l.b16 %v1167
    %v1736 = vunpack.c.h.b16 %v1167
    %v1737 = vunpack.c.l.b16 %v1168
    %v1738 = vunpack.c.h.b16 %v1168
    %v1739 = vunpack.c.l.b16 %v1169
    %v1740 = vunpack.c.h.b16 %v1169
    %v1741 = vunpack.c.l.b16 %v1170
    %v1742 = vunpack.c.h.b16 %v1170
    %v1743 = vunpack.c.l.b16 %v1171
    %v1744 = vunpack.c.h.b16 %v1171
    %v1745 = vunpack.c.l.b16 %v1172
    %v1746 = vunpack.c.h.b16 %v1172
    %v1747 = vunpack.c.l.b16 %v1173
    %v1748 = vunpack.c.h.b16 %v1173
    %v1749 = vunpack.c.l.b16 %v1174
    %v1750 = vunpack.c.h.b16 %v1174
    %v1751 = vunpack.c.l.b16 %v1175
    %v1752 = vunpack.c.h.b16 %v1175
    %v1753 = vunpack.c.l.b16 %v1176
    %v1754 = vunpack.c.h.b16 %v1176
    %v1755 = vunpack.c.l.b16 %v1177
    %v1756 = vunpack.c.h.b16 %v1177
    %v1757 = vunpack.c.l.b16 %v1178
    %v1758 = vunpack.c.h.b16 %v1178
    %v1759 = vunpack.c.l.b16 %v1179
    %v1760 = vunpack.c.h.b16 %v1179
    %v1761 = vunpack.c.l.b16 %v1180
    %v1762 = vunpack.c.h.b16 %v1180
    %v1763 = vunpack.c.l.b16 %v1181
    %v1764 = vunpack.c.h.b16 %v1181
    %v1765 = vunpack.c.l.b16 %v1182
    %v1766 = vunpack.c.h.b16 %v1182
    %v1767 = vunpack.c.l.b16 %v1183
    %v1768 = vunpack.c.h.b16 %v1183
    %v1769 = vunpack.c.l.b16 %v1184
    %v1770 = vunpack.c.h.b16 %v1184
    %v1771 = vunpack.c.l.b16 %v1185
    %v1772 = vunpack.c.h.b16 %v1185
    %v1773 = vunpack.c.l.b16 %v1186
    %v1774 = vunpack.c.h.b16 %v1186
    %v1775 = vunpack.c.l.b16 %v1187
    %v1776 = vunpack.c.h.b16 %v1187
    %v1777 = vunpack.c.l.b16 %v1188
    %v1778 = vunpack.c.h.b16 %v1188
    %v1779 = vunpack.c.l.b16 %v1189
    %v1780 = vunpack.c.h.b16 %v1189
    %v1781 = vunpack.c.l.b16 %v1190
    %v1782 = vunpack.c.h.b16 %v1190
    %v1783 = vunpack.c.l.b16 %v1191
    %v1784 = vunpack.c.h.b16 %v1191
    %v1785 = vunpack.c.l.b16 %v1192
    %v1786 = vunpack.c.h.b16 %v1192
    %v1787 = vunpack.c.l.b16 %v1193
    %v1788 = vunpack.c.h.b16 %v1193
    %v1789 = vunpack.c.l.b16 %v1194
    %v1790 = vunpack.c.h.b16 %v1194
    %v1791 = vunpack.c.l.b16 %v1195
    %v1792 = vunpack.c.h.b16 %v1195
    %v1793 = vunpack.c.l.b16 %v1196
    %v1794 = vunpack.c.h.b16 %v1196
    %v1795 = vunpack.c.l.b16 %v1197
    %v1796 = vunpack.c.h.b16 %v1197
    %v1797 = vunpack.c.l.b16 %v1198
    %v1798 = vunpack.c.h.b16 %v1198
    %v1799 = vunpack.c.l.b16 %v1199
    %v1800 = vunpack.c.h.b16 %v1199
    %v1801 = vunpack.c.l.b16 %v1200
    %v1802 = vunpack.c.h.b16 %v1200
    %v1803 = vunpack.c.l.b16 %v1201
    %v1804 = vunpack.c.h.b16 %v1201
    %v1805 = vunpack.c.l.b16 %v1202
    %v1806 = vunpack.c.h.b16 %v1202
    %v1807 = vunpack.c.l.b16 %v1203
    %v1808 = vunpack.c.h.b16 %v1203
    %v1809 = vunpack.c.l.b16 %v1204
    %v1810 = vunpack.c.h.b16 %v1204
    %v1811 = vunpack.c.l.b16 %v1205
    %v1812 = vunpack.c.h.b16 %v1205
    %v1813 = vunpack.c.l.b16 %v1206
    %v1814 = vunpack.c.h.b16 %v1206
    %v1815 = vunpack.c.l.b16 %v1207
    %v1816 = vunpack.c.h.b16 %v1207
    %v1817 = vunpack.c.l.b16 %v1208
    %v1818 = vunpack.c.h.b16 %v1208
    %v1819 = vunpack.c.l.b16 %v1209
    %v1820 = vunpack.c.h.b16 %v1209
    %v1821 = vunpack.c.l.b16 %v1210
    %v1822 = vunpack.c.h.b16 %v1210
    %v1823 = vunpack.c.l.b16 %v1211
    %v1824 = vunpack.c.h.b16 %v1211
    %v1825 = vunpack.c.l.b16 %v1212
    %v1826 = vunpack.c.h.b16 %v1212
    %v1827 = vunpack.c.l.b16 %v1213
    %v1828 = vunpack.c.h.b16 %v1213
    %v1829 = vunpack.c.l.b16 %v1214
    %v1830 = vunpack.c.h.b16 %v1214
    %v1831 = vunpack.c.l.b16 %v1215
    %v1832 = vunpack.c.h.b16 %v1215
    %v1833 = vunpack.c.l.b16 %v1216
    %v1834 = vunpack.c.h.b16 %v1216
    %v1835 = vunpack.c.l.b16 %v1217
    %v1836 = vunpack.c.h.b16 %v1217
    %v1837 = vunpack.c.l.b16 %v1218
    %v1838 = vunpack.c.h.b16 %v1218
    %v1839 = vunpack.c.l.b16 %v1219
    %v1840 = vunpack.c.h.b16 %v1219
    %v1841 = vunpack.c.l.b16 %v1220
    %v1842 = vunpack.c.h.b16 %v1220
    %v1843 = vunpack.c.l.b16 %v1221
    %v1844 = vunpack.c.h.b16 %v1221
    %v1845 = vunpack.c.l.b16 %v1222
    %v1846 = vunpack.c.h.b16 %v1222
    %v1847 = vunpack.c.l.b16 %v1223
    %v1848 = vunpack.c.h.b16 %v1223
    %v1849 = vunpack.c.l.b16 %v1224
    %v1850 = vunpack.c.h.b16 %v1224
    %v1851 = vunpack.c.l.b16 %v1225
    %v1852 = vunpack.c.h.b16 %v1225
    %v1853 = vunpack.c.l.b16 %v1226
    %v1854 = vunpack.c.h.b16 %v1226
    %v1855 = vunpack.c.l.b16 %v1227
    %v1856 = vunpack.c.h.b16 %v1227
    %v1857 = vunpack.c.l.b16 %v1228
    %v1858 = vunpack.c.h.b16 %v1228
    %v1859 = vunpack.c.l.b16 %v1229
    %v1860 = vunpack.c.h.b16 %v1229
    %v1861 = vunpack.c.l.b16 %v1230
    %v1862 = vunpack.c.h.b16 %v1230
    %v1863 = vunpack.c.l.b16 %v1231
    %v1864 = vunpack.c.h.b16 %v1231
    %v1865 = vunpack.c.l.b16 %v1232
    %v1866 = vunpack.c.h.b16 %v1232
    %v1867 = vunpack.c.l.b16 %v1233
    %v1868 = vunpack.c.h.b16 %v1233
    %v1869 = vunpack.c.l.b16 %v1234
    %v1870 = vunpack.c.h.b16 %v1234
    %v1871 = vunpack.c.l.b16 %v1235
    %v1872 = vunpack.c.h.b16 %v1235
    %v1873 = vunpack.c.l.b16 %v1236
    %v1874 = vunpack.c.h.b16 %v1236
    %v1875 = vunpack.c.l.b16 %v1237
    %v1876 = vunpack.c.h.b16 %v1237
    %v1877 = vunpack.c.l.b16 %v1238
    %v1878 = vunpack.c.h.b16 %v1238
    %v1879 = vunpack.c.l.b16 %v1239
    %v1880 = vunpack.c.h.b16 %v1239
    %v1881 = vunpack.c.l.b16 %v1240
    %v1882 = vunpack.c.h.b16 %v1240
    %v1883 = vunpack.c.l.b16 %v1241
    %v1884 = vunpack.c.h.b16 %v1241
    %v1885 = vunpack.c.l.b16 %v1242
    %v1886 = vunpack.c.h.b16 %v1242
    %v1887 = vunpack.c.l.b16 %v1243
    %v1888 = vunpack.c.h.b16 %v1243
    %v1889 = vunpack.c.l.b16 %v1244
    %v1890 = vunpack.c.h.b16 %v1244
    %v1891 = vunpack.c.l.b16 %v1245
    %v1892 = vunpack.c.h.b16 %v1245
    %v1893 = vunpack.c.l.b16 %v1246
    %v1894 = vunpack.c.h.b16 %v1246
    %v1895 = vunpack.c.l.b16 %v1247
    %v1896 = vunpack.c.h.b16 %v1247
    %v1897 = vunpack.c.l.b16 %v1248
    %v1898 = vunpack.c.h.b16 %v1248
    %v1899 = vunpack.c.l.b16 %v1249
    %v1900 = vunpack.c.h.b16 %v1249
    %v1901 = vunpack.c.l.b16 %v1250
    %v1902 = vunpack.c.h.b16 %v1250
    %v1903 = vunpack.c.l.b16 %v1251
    %v1904 = vunpack.c.h.b16 %v1251
    %v1905 = vunpack.c.l.b16 %v1252
    %v1906 = vunpack.c.h.b16 %v1252
    %v1907 = vunpack.c.l.b16 %v1253
    %v1908 = vunpack.c.h.b16 %v1253
    %v1909 = vunpack.c.l.b16 %v1254
    %v1910 = vunpack.c.h.b16 %v1254
    %v1911 = vunpack.c.l.b16 %v1255
    %v1912 = vunpack.c.h.b16 %v1255
    %v1913 = vunpack.c.l.b16 %v1256
    %v1914 = vunpack.c.h.b16 %v1256
    %v1915 = vunpack.c.l.b16 %v1257
    %v1916 = vunpack.c.h.b16 %v1257
    %v1917 = vunpack.c.l.b16 %v1258
    %v1918 = vunpack.c.h.b16 %v1258
    %v1919 = vunpack.c.l.b16 %v1259
    %v1920 = vunpack.c.h.b16 %v1259
    %v1921 = vunpack.c.l.b16 %v1260
    %v1922 = vunpack.c.h.b16 %v1260
    %v1923 = vunpack.c.l.b16 %v1261
    %v1924 = vunpack.c.h.b16 %v1261
    %v1925 = vunpack.c.l.b16 %v1262
    %v1926 = vunpack.c.h.b16 %v1262
    %v1927 = vunpack.c.l.b16 %v1263
    %v1928 = vunpack.c.h.b16 %v1263
    %v1929 = vunpack.c.l.b16 %v1264
    %v1930 = vunpack.c.h.b16 %v1264
    %v1931 = vunpack.c.l.b16 %v1265
    %v1932 = vunpack.c.h.b16 %v1265
    %v1933 = vunpack.c.l.b16 %v1266
    %v1934 = vunpack.c.h.b16 %v1266
    %v1935 = vunpack.c.l.b16 %v1267
    %v1936 = vunpack.c.h.b16 %v1267
    %v1937 = vunpack.c.l.b16 %v1268
    %v1938 = vunpack.c.h.b16 %v1268
    %v1939 = vunpack.c.l.b16 %v1269
    %v1940 = vunpack.c.h.b16 %v1269
    %v1941 = vunpack.c.l.b16 %v1270
    %v1942 = vunpack.c.h.b16 %v1270
    %v1943 = vunpack.c.l.b16 %v1271
    %v1944 = vunpack.c.h.b16 %v1271
    %v1945 = vunpack.c.l.b16 %v1272
    %v1946 = vunpack.c.h.b16 %v1272
    %v1947 = vunpack.c.l.b16 %v1273
    %v1948 = vunpack.c.h.b16 %v1273
    %v1949 = vunpack.c.l.b16 %v1274
    %v1950 = vunpack.c.h.b16 %v1274
    %v1951 = vunpack.c.l.b16 %v1275
    %v1952 = vunpack.c.h.b16 %v1275
    %v1953 = vunpack.c.l.b16 %v1276
    %v1954 = vunpack.c.h.b16 %v1276
    %v1955 = vunpack.c.l.b16 %v1277
    %v1956 = vunpack.c.h.b16 %v1277
    %v1957 = vunpack.c.l.b16 %v1278
    %v1958 = vunpack.c.h.b16 %v1278
    %v1959 = vunpack.c.l.b16 %v1279
    %v1960 = vunpack.c.h.b16 %v1279
    %v1961 = vunpack.c.l.b16 %v1280
    %v1962 = vunpack.c.h.b16 %v1280
    %v1963 = vunpack.c.l.b16 %v1281
    %v1964 = vunpack.c.h.b16 %v1281
    %v1965 = vunpack.c.l.b16 %v1282
    %v1966 = vunpack.c.h.b16 %v1282
    %v1967 = vunpack.c.l.b16 %v1283
    %v1968 = vunpack.c.h.b16 %v1283
    %v1969 = vunpack.c.l.b16 %v1284
    %v1970 = vunpack.c.h.b16 %v1284
    %v1971 = vunpack.c.l.b16 %v1285
    %v1972 = vunpack.c.h.b16 %v1285
    %v1973 = vunpack.c.l.b16 %v1286
    %v1974 = vunpack.c.h.b16 %v1286
    %v1975 = vunpack.c.l.b16 %v1287
    %v1976 = vunpack.c.h.b16 %v1287
    %v1977 = vunpack.c.l.b16 %v1288
    %v1978 = vunpack.c.h.b16 %v1288
    %v1979 = vunpack.c.l.b16 %v1289
    %v1980 = vunpack.c.h.b16 %v1289
    %v1981 = vunpack.c.l.b16 %v1290
    %v1982 = vunpack.c.h.b16 %v1290
    %v1983 = vunpack.c.l.b16 %v1291
    %v1984 = vunpack.c.h.b16 %v1291
    %v1985 = vunpack.c.l.b16 %v1292
    %v1986 = vunpack.c.h.b16 %v1292
    %v1987 = vunpack.c.l.b16 %v1293
    %v1988 = vunpack.c.h.b16 %v1293
    %v1989 = vunpack.c.l.b16 %v1294
    %v1990 = vunpack.c.h.b16 %v1294
    %v1991 = vunpack.c.l.b16 %v1295
    %v1992 = vunpack.c.h.b16 %v1295
    %v1993 = vunpack.c.l.b16 %v1296
    %v1994 = vunpack.c.h.b16 %v1296
    %v1995 = vunpack.c.l.b16 %v1297
    %v1996 = vunpack.c.h.b16 %v1297
    %v1997 = vunpack.c.l.b16 %v1298
    %v1998 = vunpack.c.h.b16 %v1298
    %v1999 = vunpack.c.l.b16 %v1299
    %v2000 = vunpack.c.h.b16 %v1299
    %v2001 = vunpack.c.l.b16 %v1300
    %v2002 = vunpack.c.h.b16 %v1300
    %v2003 = vunpack.c.l.b16 %v1301
    %v2004 = vunpack.c.h.b16 %v1301
    %v2005 = vunpack.c.l.b16 %v1302
    %v2006 = vunpack.c.h.b16 %v1302
    %v2007 = vunpack.c.l.b16 %v1303
    %v2008 = vunpack.c.h.b16 %v1303
    %v2009 = vunpack.c.l.b16 %v1304
    %v2010 = vunpack.c.h.b16 %v1304
    %v2011 = vunpack.c.l.b16 %v1305
    %v2012 = vunpack.c.h.b16 %v1305
    %v2013 = vunpack.c.l.b16 %v1306
    %v2014 = vunpack.c.h.b16 %v1306
    %v2015 = vunpack.c.l.b16 %v1307
    %v2016 = vunpack.c.h.b16 %v1307
    %v2017 = vunpack.c.l.b16 %v1308
    %v2018 = vunpack.c.h.b16 %v1308
    %v2019 = vunpack.c.l.b16 %v1309
    %v2020 = vunpack.c.h.b16 %v1309
    %v2021 = vunpack.c.l.b16 %v1310
    %v2022 = vunpack.c.h.b16 %v1310
    %v2023 = vunpack.c.l.b16 %v1311
    %v2024 = vunpack.c.h.b16 %v1311
    %v2025 = vunpack.c.l.b16 %v1312
    %v2026 = vunpack.c.h.b16 %v1312
    %v2027 = vunpack.c.l.b16 %v1313
    %v2028 = vunpack.c.h.b16 %v1313
    %v2029 = vunpack.c.l.b16 %v1314
    %v2030 = vunpack.c.h.b16 %v1314
    %v2031 = vunpack.c.l.b16 %v1315
    %v2032 = vunpack.c.h.b16 %v1315
    %v2033 = vunpack.c.l.b16 %v1316
    %v2034 = vunpack.c.h.b16 %v1316
    %v2035 = vunpack.c.l.b16 %v1317
    %v2036 = vunpack.c.h.b16 %v1317
    %v2037 = vunpack.c.l.b16 %v1318
    %v2038 = vunpack.c.h.b16 %v1318
    %v2039 = vunpack.c.l.b16 %v1319
    %v2040 = vunpack.c.h.b16 %v1319
    %v2041 = vunpack.c.l.b16 %v1320
    %v2042 = vunpack.c.h.b16 %v1320
    %v2043 = vunpack.c.l.b16 %v1321
    %v2044 = vunpack.c.h.b16 %v1321
    %v2045 = vunpack.c.l.b16 %v1322
    %v2046 = vunpack.c.h.b16 %v1322
    %v2047 = vunpack.c.l.b16 %v1323
    %v2048 = vunpack.c.h.b16 %v1323
    %v2049 = vunpack.c.l.b16 %v1324
    %v2050 = vunpack.c.h.b16 %v1324
    %v2051 = vunpack.c.l.b16 %v1325
    %v2052 = vunpack.c.h.b16 %v1325
    %v2053 = vunpack.c.l.b16 %v1326
    %v2054 = vunpack.c.h.b16 %v1326
    %v2055 = vunpack.c.l.b16 %v1327
    %v2056 = vunpack.c.h.b16 %v1327
    %v2057 = vunpack.c.l.b16 %v1328
    %v2058 = vunpack.c.h.b16 %v1328
    %v2059 = vunpack.c.l.b16 %v1329
    %v2060 = vunpack.c.h.b16 %v1329
    %v2061 = vunpack.c.l.b16 %v1330
    %v2062 = vunpack.c.h.b16 %v1330
    %v2063 = vunpack.c.l.b16 %v1331
    %v2064 = vunpack.c.h.b16 %v1331
    %v2065 = vunpack.c.l.b16 %v1332
    %v2066 = vunpack.c.h.b16 %v1332
    %v2067 = vunpack.c.l.b16 %v1333
    %v2068 = vunpack.c.h.b16 %v1333
    %v2069 = vunpack.c.l.b16 %v1334
    %v2070 = vunpack.c.h.b16 %v1334
    %v2071 = vunpack.c.l.b16 %v1335
    %v2072 = vunpack.c.h.b16 %v1335
    %v2073 = vunpack.c.l.b16 %v1336
    %v2074 = vunpack.c.h.b16 %v1336
    %v2075 = vunpack.c.l.b16 %v1337
    %v2076 = vunpack.c.h.b16 %v1337
    %v2077 = vunpack.c.l.b16 %v1338
    %v2078 = vunpack.c.h.b16 %v1338
    %v2079 = vunpack.c.l.b16 %v1339
    %v2080 = vunpack.c.h.b16 %v1339
    %v2081 = vunpack.c.l.b16 %v1340
    %v2082 = vunpack.c.h.b16 %v1340
    %v2083 = vunpack.c.l.b16 %v1341
    %v2084 = vunpack.c.h.b16 %v1341
    %v2085 = vunpack.c.l.b16 %v1342
    %v2086 = vunpack.c.h.b16 %v1342
    %v2087 = vunpack.c.l.b16 %v1343
    %v2088 = vunpack.c.h.b16 %v1343
    %v2089 = vunpack.c.l.b16 %v1344
    %v2090 = vunpack.c.h.b16 %v1344
    %v2091 = vunpack.c.l.b16 %v1345
    %v2092 = vunpack.c.h.b16 %v1345
    %v2093 = vunpack.c.l.b16 %v1346
    %v2094 = vunpack.c.h.b16 %v1346
    %v2095 = vunpack.c.l.b16 %v1347
    %v2096 = vunpack.c.h.b16 %v1347
    %v2097 = vunpack.c.l.b16 %v1348
    %v2098 = vunpack.c.h.b16 %v1348
    %v2099 = vunpack.c.l.b16 %v1349
    %v2100 = vunpack.c.h.b16 %v1349
    %v2101 = vunpack.c.l.b16 %v1350
    %v2102 = vunpack.c.h.b16 %v1350
    %v2103 = vunpack.c.l.b16 %v1351
    %v2104 = vunpack.c.h.b16 %v1351
    %v2105 = vunpack.c.l.b16 %v1352
    %v2106 = vunpack.c.h.b16 %v1352
    %v2107 = vunpack.c.l.b16 %v1353
    %v2108 = vunpack.c.h.b16 %v1353
    %v2109 = vunpack.c.l.b16 %v1354
    %v2110 = vunpack.c.h.b16 %v1354
    %v2111 = vunpack.c.l.b16 %v1355
    %v2112 = vunpack.c.h.b16 %v1355
    %v2113 = vunpack.c.l.b16 %v1356
    %v2114 = vunpack.c.h.b16 %v1356
    %v2115 = vunpack.c.l.b16 %v1357
    %v2116 = vunpack.c.h.b16 %v1357
    %v2117 = vunpack.c.l.b16 %v1358
    %v2118 = vunpack.c.h.b16 %v1358
    %v2119 = vunpack.c.l.b16 %v1359
    %v2120 = vunpack.c.h.b16 %v1359
    %v2121 = vunpack.c.l.b16 %v1360
    %v2122 = vunpack.c.h.b16 %v1360
    %v2123 = vunpack.c.l.b16 %v1361
    %v2124 = vunpack.c.h.b16 %v1361
    %v2125 = vunpack.c.l.b16 %v1362
    %v2126 = vunpack.c.h.b16 %v1362
    %v2127 = vunpack.c.l.b16 %v1363
    %v2128 = vunpack.c.h.b16 %v1363
    %v2129 = vunpack.c.l.b16 %v1364
    %v2130 = vunpack.c.h.b16 %v1364
    %v2131 = vunpack.c.l.b16 %v1365
    %v2132 = vunpack.c.h.b16 %v1365
    %v2133 = vunpack.c.l.b16 %v1366
    %v2134 = vunpack.c.h.b16 %v1366
    %v2135 = vunpack.c.l.b16 %v1367
    %v2136 = vunpack.c.h.b16 %v1367
    %v2137 = vunpack.c.l.b16 %v1368
    %v2138 = vunpack.c.h.b16 %v1368
    %v2139 = vunpack.c.l.b16 %v1369
    %v2140 = vunpack.c.h.b16 %v1369
    %v2141 = vunpack.c.l.b16 %v1370
    %v2142 = vunpack.c.h.b16 %v1370
    %v2143 = vpack.c.b16 %v1639, %v1631
    %v2144 = vpack.c.b16 %v1640, %v1632
    %v2145 = vpack.c.b16 %v1641, %v1633
    %v2146 = vpack.c.b16 %v1642, %v1634
    %v2147 = vpack.c.b16 %v1643, %v1635
    %v2148 = vpack.c.b16 %v1644, %v1636
    %v2149 = vpack.c.b16 %v1645, %v1637
    %v2150 = vpack.c.b16 %v1646, %v1638
    %v2151 = vpack.c.b16 %v1655, %v1647
    %v2152 = vpack.c.b16 %v1656, %v1648
    %v2153 = vpack.c.b16 %v1657, %v1649
    %v2154 = vpack.c.b16 %v1658, %v1650
    %v2155 = vpack.c.b16 %v1659, %v1651
    %v2156 = vpack.c.b16 %v1660, %v1652
    %v2157 = vpack.c.b16 %v1661, %v1653
    %v2158 = vpack.c.b16 %v1662, %v1654
    %v2159 = vpack.c.b16 %v1671, %v1663
    %v2160 = vpack.c.b16 %v1672, %v1664
    %v2161 = vpack.c.b16 %v1673, %v1665
    %v2162 = vpack.c.b16 %v1674, %v1666
    %v2163 = vpack.c.b16 %v1675, %v1667
    %v2164 = vpack.c.b16 %v1676, %v1668
    %v2165 = vpack.c.b16 %v1677, %v1669
    %v2166 = vpack.c.b16 %v1678, %v1670
    %v2167 = vpack.c.b16 %v1687, %v1679
    %v2168 = vpack.c.b16 %v1688, %v1680
    %v2169 = vpack.c.b16 %v1689, %v1681
    %v2170 = vpack.c.b16 %v1690, %v1682
    %v2171 = vpack.c.b16 %v1691, %v1683
    %v2172 = vpack.c.b16 %v1692, %v1684
    %v2173 = vpack.c.b16 %v1693, %v1685
    %v2174 = vpack.c.b16 %v1694, %v1686
    %v2175 = vpack.c.b16 %v1703, %v1695
    %v2176 = vpack.c.b16 %v1704, %v1696
    %v2177 = vpack.c.b16 %v1705, %v1697
    %v2178 = vpack.c.b16 %v1706, %v1698
    %v2179 = vpack.c.b16 %v1707, %v1699
    %v2180 = vpack.c.b16 %v1708, %v1700
    %v2181 = vpack.c.b16 %v1709, %v1701
    %v2182 = vpack.c.b16 %v1710, %v1702
    %v2183 = vpack.c.b16 %v1719, %v1711
    %v2184 = vpack.c.b16 %v1720, %v1712
    %v2185 = vpack.c.b16 %v1721, %v1713
    %v2186 = vpack.c.b16 %v1722, %v1714
    %v2187 = vpack.c.b16 %v1723, %v1715
    %v2188 = vpack.c.b16 %v1724, %v1716
    %v2189 = vpack.c.b16 %v1725, %v1717
    %v2190 = vpack.c.b16 %v1726, %v1718
    %v2191 = vpack.c.b16 %v1735, %v1727
    %v2192 = vpack.c.b16 %v1736, %v1728
    %v2193 = vpack.c.b16 %v1737, %v1729
    %v2194 = vpack.c.b16 %v1738, %v1730
    %v2195 = vpack.c.b16 %v1739, %v1731
    %v2196 = vpack.c.b16 %v1740, %v1732
    %v2197 = vpack.c.b16 %v1741, %v1733
    %v2198 = vpack.c.b16 %v1742, %v1734
    %v2199 = vpack.c.b16 %v1751, %v1743
    %v2200 = vpack.c.b16 %v1752, %v1744
    %v2201 = vpack.c.b16 %v1753, %v1745
    %v2202 = vpack.c.b16 %v1754, %v1746
    %v2203 = vpack.c.b16 %v1755, %v1747
    %v2204 = vpack.c.b16 %v1756, %v1748
    %v2205 = vpack.c.b16 %v1757, %v1749
    %v2206 = vpack.c.b16 %v1758, %v1750
    %v2207 = vpack.c.b16 %v1767, %v1759
    %v2208 = vpack.c.b16 %v1768, %v1760
    %v2209 = vpack.c.b16 %v1769, %v1761
    %v2210 = vpack.c.b16 %v1770, %v1762
    %v2211 = vpack.c.b16 %v1771, %v1763
    %v2212 = vpack.c.b16 %v1772, %v1764
    %v2213 = vpack.c.b16 %v1773, %v1765
    %v2214 = vpack.c.b16 %v1774, %v1766
    %v2215 = vpack.c.b16 %v1783, %v1775
    %v2216 = vpack.c.b16 %v1784, %v1776
    %v2217 = vpack.c.b16 %v1785, %v1777
    %v2218 = vpack.c.b16 %v1786, %v1778
    %v2219 = vpack.c.b16 %v1787, %v1779
    %v2220 = vpack.c.b16 %v1788, %v1780
    %v2221 = vpack.c.b16 %v1789, %v1781
    %v2222 = vpack.c.b16 %v1790, %v1782
    %v2223 = vpack.c.b16 %v1799, %v1791
    %v2224 = vpack.c.b16 %v1800, %v1792
    %v2225 = vpack.c.b16 %v1801, %v1793
    %v2226 = vpack.c.b16 %v1802, %v1794
    %v2227 = vpack.c.b16 %v1803, %v1795
    %v2228 = vpack.c.b16 %v1804, %v1796
    %v2229 = vpack.c.b16 %v1805, %v1797
    %v2230 = vpack.c.b16 %v1806, %v1798
    %v2231 = vpack.c.b16 %v1815, %v1807
    %v2232 = vpack.c.b16 %v1816, %v1808
    %v2233 = vpack.c.b16 %v1817, %v1809
    %v2234 = vpack.c.b16 %v1818, %v1810
    %v2235 = vpack.c.b16 %v1819, %v1811
    %v2236 = vpack.c.b16 %v1820, %v1812
    %v2237 = vpack.c.b16 %v1821, %v1813
    %v2238 = vpack.c.b16 %v1822, %v1814
    %v2239 = vpack.c.b16 %v1831, %v1823
    %v2240 = vpack.c.b16 %v1832, %v1824
    %v2241 = vpack.c.b16 %v1833, %v1825
    %v2242 = vpack.c.b16 %v1834, %v1826
    %v2243 = vpack.c.b16 %v1835, %v1827
    %v2244 = vpack.c.b16 %v1836, %v1828
    %v2245 = vpack.c.b16 %v1837, %v1829
    %v2246 = vpack.c.b16 %v1838, %v1830
    %v2247 = vpack.c.b16 %v1847, %v1839
    %v2248 = vpack.c.b16 %v1848, %v1840
    %v2249 = vpack.c.b16 %v1849, %v1841
    %v2250 = vpack.c.b16 %v1850, %v1842
    %v2251 = vpack.c.b16 %v1851, %v1843
    %v2252 = vpack.c.b16 %v1852, %v1844
    %v2253 = vpack.c.b16 %v1853, %v1845
    %v2254 = vpack.c.b16 %v1854, %v1846
    %v2255 = vpack.c.b16 %v1863, %v1855
    %v2256 = vpack.c.b16 %v1864, %v1856
    %v2257 = vpack.c.b16 %v1865, %v1857
    %v2258 = vpack.c.b16 %v1866, %v1858
    %v2259 = vpack.c.b16 %v1867, %v1859
    %v2260 = vpack.c.b16 %v1868, %v1860
    %v2261 = vpack.c.b16 %v1869, %v1861
    %v2262 = vpack.c.b16 %v1870, %v1862
    %v2263 = vpack.c.b16 %v1879, %v1871
    %v2264 = vpack.c.b16 %v1880, %v1872
    %v2265 = vpack.c.b16 %v1881, %v1873
    %v2266 = vpack.c.b16 %v1882, %v1874
    %v2267 = vpack.c.b16 %v1883, %v1875
    %v2268 = vpack.c.b16 %v1884, %v1876
    %v2269 = vpack.c.b16 %v1885, %v1877
    %v2270 = vpack.c.b16 %v1886, %v1878
    %v2271 = vpack.c.b16 %v1895, %v1887
    %v2272 = vpack.c.b16 %v1896, %v1888
    %v2273 = vpack.c.b16 %v1897, %v1889
    %v2274 = vpack.c.b16 %v1898, %v1890
    %v2275 = vpack.c.b16 %v1899, %v1891
    %v2276 = vpack.c.b16 %v1900, %v1892
    %v2277 = vpack.c.b16 %v1901, %v1893
    %v2278 = vpack.c.b16 %v1902, %v1894
    %v2279 = vpack.c.b16 %v1911, %v1903
    %v2280 = vpack.c.b16 %v1912, %v1904
    %v2281 = vpack.c.b16 %v1913, %v1905
    %v2282 = vpack.c.b16 %v1914, %v1906
    %v2283 = vpack.c.b16 %v1915, %v1907
    %v2284 = vpack.c.b16 %v1916, %v1908
    %v2285 = vpack.c.b16 %v1917, %v1909
    %v2286 = vpack.c.b16 %v1918, %v1910
    %v2287 = vpack.c.b16 %v1927, %v1919
    %v2288 = vpack.c.b16 %v1928, %v1920
    %v2289 = vpack.c.b16 %v1929, %v1921
    %v2290 = vpack.c.b16 %v1930, %v1922
    %v2291 = vpack.c.b16 %v1931, %v1923
    %v2292 = vpack.c.b16 %v1932, %v1924
    %v2293 = vpack.c.b16 %v1933, %v1925
    %v2294 = vpack.c.b16 %v1934, %v1926
    %v2295 = vpack.c.b16 %v1943, %v1935
    %v2296 = vpack.c.b16 %v1944, %v1936
    %v2297 = vpack.c.b16 %v1945, %v1937
    %v2298 = vpack.c.b16 %v1946, %v1938
    %v2299 = vpack.c.b16 %v1947, %v1939
    %v2300 = vpack.c.b16 %v1948, %v1940
    %v2301 = vpack.c.b16 %v1949, %v1941
    %v2302 = vpack.c.b16 %v1950, %v1942
    %v2303 = vpack.c.b16 %v1959, %v1951
    %v2304 = vpack.c.b16 %v1960, %v1952
    %v2305 = vpack.c.b16 %v1961, %v1953
    %v2306 = vpack.c.b16 %v1962, %v1954
    %v2307 = vpack.c.b16 %v1963, %v1955
    %v2308 = vpack.c.b16 %v1964, %v1956
    %v2309 = vpack.c.b16 %v1965, %v1957
    %v2310 = vpack.c.b16 %v1966, %v1958
    %v2311 = vpack.c.b16 %v1975, %v1967
    %v2312 = vpack.c.b16 %v1976, %v1968
    %v2313 = vpack.c.b16 %v1977, %v1969
    %v2314 = vpack.c.b16 %v1978, %v1970
    %v2315 = vpack.c.b16 %v1979, %v1971
    %v2316 = vpack.c.b16 %v1980, %v1972
    %v2317 = vpack.c.b16 %v1981, %v1973
    %v2318 = vpack.c.b16 %v1982, %v1974
    %v2319 = vpack.c.b16 %v1991, %v1983
    %v2320 = vpack.c.b16 %v1992, %v1984
    %v2321 = vpack.c.b16 %v1993, %v1985
    %v2322 = vpack.c.b16 %v1994, %v1986
    %v2323 = vpack.c.b16 %v1995, %v1987
    %v2324 = vpack.c.b16 %v1996, %v1988
    %v2325 = vpack.c.b16 %v1997, %v1989
    %v2326 = vpack.c.b16 %v1998, %v1990
    %v2327 = vpack.c.b16 %v2007, %v1999
    %v2328 = vpack.c.b16 %v2008, %v2000
    %v2329 = vpack.c.b16 %v2009, %v2001
    %v2330 = vpack.c.b16 %v2010, %v2002
    %v2331 = vpack.c.b16 %v2011, %v2003
    %v2332 = vpack.c.b16 %v2012, %v2004
    %v2333 = vpack.c.b16 %v2013, %v2005
    %v2334 = vpack.c.b16 %v2014, %v2006
    %v2335 = vpack.c.b16 %v2023, %v2015
    %v2336 = vpack.c.b16 %v2024, %v2016
    %v2337 = vpack.c.b16 %v2025, %v2017
    %v2338 = vpack.c.b16 %v2026, %v2018
    %v2339 = vpack.c.b16 %v2027, %v2019
    %v2340 = vpack.c.b16 %v2028, %v2020
    %v2341 = vpack.c.b16 %v2029, %v2021
    %v2342 = vpack.c.b16 %v2030, %v2022
    %v2343 = vpack.c.b16 %v2039, %v2031
    %v2344 = vpack.c.b16 %v2040, %v2032
    %v2345 = vpack.c.b16 %v2041, %v2033
    %v2346 = vpack.c.b16 %v2042, %v2034
    %v2347 = vpack.c.b16 %v2043, %v2035
    %v2348 = vpack.c.b16 %v2044, %v2036
    %v2349 = vpack.c.b16 %v2045, %v2037
    %v2350 = vpack.c.b16 %v2046, %v2038
    %v2351 = vpack.c.b16 %v2055, %v2047
    %v2352 = vpack.c.b16 %v2056, %v2048
    %v2353 = vpack.c.b16 %v2057, %v2049
    %v2354 = vpack.c.b16 %v2058, %v2050
    %v2355 = vpack.c.b16 %v2059, %v2051
    %v2356 = vpack.c.b16 %v2060, %v2052
    %v2357 = vpack.c.b16 %v2061, %v2053
    %v2358 = vpack.c.b16 %v2062, %v2054
    %v2359 = vpack.c.b16 %v2071, %v2063
    %v2360 = vpack.c.b16 %v2072, %v2064
    %v2361 = vpack.c.b16 %v2073, %v2065
    %v2362 = vpack.c.b16 %v2074, %v2066
    %v2363 = vpack.c.b16 %v2075, %v2067
    %v2364 = vpack.c.b16 %v2076, %v2068
    %v2365 = vpack.c.b16 %v2077, %v2069
    %v2366 = vpack.c.b16 %v2078, %v2070
    %v2367 = vpack.c.b16 %v2087, %v2079
    %v2368 = vpack.c.b16 %v2088, %v2080
    %v2369 = vpack.c.b16 %v2089, %v2081
    %v2370 = vpack.c.b16 %v2090, %v2082
    %v2371 = vpack.c.b16 %v2091, %v2083
    %v2372 = vpack.c.b16 %v2092, %v2084
    %v2373 = vpack.c.b16 %v2093, %v2085
    %v2374 = vpack.c.b16 %v2094, %v2086
    %v2375 = vpack.c.b16 %v2103, %v2095
    %v2376 = vpack.c.b16 %v2104, %v2096
    %v2377 = vpack.c.b16 %v2105, %v2097
    %v2378 = vpack.c.b16 %v2106, %v2098
    %v2379 = vpack.c.b16 %v2107, %v2099
    %v2380 = vpack.c.b16 %v2108, %v2100
    %v2381 = vpack.c.b16 %v2109, %v2101
    %v2382 = vpack.c.b16 %v2110, %v2102
    %v2383 = vpack.c.b16 %v2119, %v2111
    %v2384 = vpack.c.b16 %v2120, %v2112
    %v2385 = vpack.c.b16 %v2121, %v2113
    %v2386 = vpack.c.b16 %v2122, %v2114
    %v2387 = vpack.c.b16 %v2123, %v2115
    %v2388 = vpack.c.b16 %v2124, %v2116
    %v2389 = vpack.c.b16 %v2125, %v2117
    %v2390 = vpack.c.b16 %v2126, %v2118
    %v2391 = vpack.c.b16 %v2135, %v2127
    %v2392 = vpack.c.b16 %v2136, %v2128
    %v2393 = vpack.c.b16 %v2137, %v2129
    %v2394 = vpack.c.b16 %v2138, %v2130
    %v2395 = vpack.c.b16 %v2139, %v2131
    %v2396 = vpack.c.b16 %v2140, %v2132
    %v2397 = vpack.c.b16 %v2141, %v2133
    %v2398 = vpack.c.b16 %v2142, %v2134
    %2655 = vmatpush.bf16.msra.mxu0 %v2199
    %2656 = vmatpush.bf16.msra.mxu0 %v2191
    %2657 = vmatpush.bf16.msra.mxu0 %v2183
    %2658 = vmatpush.bf16.msra.mxu0 %v2175
    %2659 = vmatpush.bf16.msra.mxu0 %v2167
    %2660 = vmatpush.bf16.msra.mxu0 %v2159
    %2661 = vmatpush.bf16.msra.mxu0 %v2151
    %2662 = vmatpush.bf16.msra.mxu0 %v2143
    %2663 = vmatmul.bf16.gmra.mxu0 %v1371
    %v2664 = vpop.f32.mrf.mxu0
    %v2665 = vadd.f32 0.0, %v2664
    %v2666 = vpop.f32.mrf.mxu0
    %2667 = vdwg.mxu0
    %2668 = vmatpush.bf16.msra.mxu0 %v2263
    %2669 = vmatpush.bf16.msra.mxu0 %v2255
    %2670 = vmatpush.bf16.msra.mxu0 %v2247
    %2671 = vmatpush.bf16.msra.mxu0 %v2239
    %2672 = vmatpush.bf16.msra.mxu0 %v2231
    %2673 = vmatpush.bf16.msra.mxu0 %v2223
    %2674 = vmatpush.bf16.msra.mxu0 %v2215
    %2675 = vmatpush.bf16.msra.mxu0 %v2207
    %2676 = vmatmul.bf16.gmra.mxu0 %v1372
    %v2677 = vpop.f32.mrf.mxu0
    %v2678 = vadd.f32 %v2665, %v2677
    %v2679 = vpop.f32.mrf.mxu0
    %2680 = vdwg.mxu0
    %2681 = vmatpush.bf16.msra.mxu0 %v2327
    %2682 = vmatpush.bf16.msra.mxu0 %v2319
    %2683 = vmatpush.bf16.msra.mxu0 %v2311
    %2684 = vmatpush.bf16.msra.mxu0 %v2303
    %2685 = vmatpush.bf16.msra.mxu0 %v2295
    %2686 = vmatpush.bf16.msra.mxu0 %v2287
    %2687 = vmatpush.bf16.msra.mxu0 %v2279
    %2688 = vmatpush.bf16.msra.mxu0 %v2271
    %2689 = vmatmul.bf16.gmra.mxu0 %v1373
    %v2690 = vpop.f32.mrf.mxu0
    %v2691 = vadd.f32 %v2678, %v2690
    %v2692 = vpop.f32.mrf.mxu0
    %2693 = vdwg.mxu0
    %2694 = vmatpush.bf16.msra.mxu0 %v2391
    %2695 = vmatpush.bf16.msra.mxu0 %v2383
    %2696 = vmatpush.bf16.msra.mxu0 %v2375
    %2697 = vmatpush.bf16.msra.mxu0 %v2367
    %2698 = vmatpush.bf16.msra.mxu0 %v2359
    %2699 = vmatpush.bf16.msra.mxu0 %v2351
    %2700 = vmatpush.bf16.msra.mxu0 %v2343
    %2701 = vmatpush.bf16.msra.mxu0 %v2335
    %2702 = vmatmul.bf16.gmra.mxu0 %v1374
    %v2703 = vpop.f32.mrf.mxu0
    %v2704 = vadd.f32 %v2691, %v2703
    %v2705 = vpop.f32.mrf.mxu0
    %2706 = vdwg.mxu0
    %2707 = vmatpush.bf16.msra.mxu0 %v2200
    %2708 = vmatpush.bf16.msra.mxu0 %v2192
    %2709 = vmatpush.bf16.msra.mxu0 %v2184
    %2710 = vmatpush.bf16.msra.mxu0 %v2176
    %2711 = vmatpush.bf16.msra.mxu0 %v2168
    %2712 = vmatpush.bf16.msra.mxu0 %v2160
    %2713 = vmatpush.bf16.msra.mxu0 %v2152
    %2714 = vmatpush.bf16.msra.mxu0 %v2144
    %2715 = vmatmul.bf16.gmra.mxu0 %v1371
    %v2716 = vpop.f32.mrf.mxu0
    %v2717 = vadd.f32 0.0, %v2716
    %v2718 = vpop.f32.mrf.mxu0
    %2719 = vdwg.mxu0
    %2720 = vmatpush.bf16.msra.mxu0 %v2264
    %2721 = vmatpush.bf16.msra.mxu0 %v2256
    %2722 = vmatpush.bf16.msra.mxu0 %v2248
    %2723 = vmatpush.bf16.msra.mxu0 %v2240
    %2724 = vmatpush.bf16.msra.mxu0 %v2232
    %2725 = vmatpush.bf16.msra.mxu0 %v2224
    %2726 = vmatpush.bf16.msra.mxu0 %v2216
    %2727 = vmatpush.bf16.msra.mxu0 %v2208
    %2728 = vmatmul.bf16.gmra.mxu0 %v1372
    %v2729 = vpop.f32.mrf.mxu0
    %v2730 = vadd.f32 %v2717, %v2729
    %v2731 = vpop.f32.mrf.mxu0
    %2732 = vdwg.mxu0
    %2733 = vmatpush.bf16.msra.mxu0 %v2328
    %2734 = vmatpush.bf16.msra.mxu0 %v2320
    %2735 = vmatpush.bf16.msra.mxu0 %v2312
    %2736 = vmatpush.bf16.msra.mxu0 %v2304
    %2737 = vmatpush.bf16.msra.mxu0 %v2296
    %2738 = vmatpush.bf16.msra.mxu0 %v2288
    %2739 = vmatpush.bf16.msra.mxu0 %v2280
    %2740 = vmatpush.bf16.msra.mxu0 %v2272
    %2741 = vmatmul.bf16.gmra.mxu0 %v1373
    %v2742 = vpop.f32.mrf.mxu0
    %v2743 = vadd.f32 %v2730, %v2742
    %v2744 = vpop.f32.mrf.mxu0
    %2745 = vdwg.mxu0
    %2746 = vmatpush.bf16.msra.mxu0 %v2392
    %2747 = vmatpush.bf16.msra.mxu0 %v2384
    %2748 = vmatpush.bf16.msra.mxu0 %v2376
    %2749 = vmatpush.bf16.msra.mxu0 %v2368
    %2750 = vmatpush.bf16.msra.mxu0 %v2360
    %2751 = vmatpush.bf16.msra.mxu0 %v2352
    %2752 = vmatpush.bf16.msra.mxu0 %v2344
    %2753 = vmatpush.bf16.msra.mxu0 %v2336
    %2754 = vmatmul.bf16.gmra.mxu0 %v1374
    %v2755 = vpop.f32.mrf.mxu0
    %v2756 = vadd.f32 %v2743, %v2755
    %v2757 = vpop.f32.mrf.mxu0
    %2758 = vdwg.mxu0
    %2759 = vmatpush.bf16.msra.mxu0 %v2201
    %2760 = vmatpush.bf16.msra.mxu0 %v2193
    %2761 = vmatpush.bf16.msra.mxu0 %v2185
    %2762 = vmatpush.bf16.msra.mxu0 %v2177
    %2763 = vmatpush.bf16.msra.mxu0 %v2169
    %2764 = vmatpush.bf16.msra.mxu0 %v2161
    %2765 = vmatpush.bf16.msra.mxu0 %v2153
    %2766 = vmatpush.bf16.msra.mxu0 %v2145
    %2767 = vmatmul.bf16.gmra.mxu0 %v1371
    %v2768 = vpop.f32.mrf.mxu0
    %v2769 = vadd.f32 0.0, %v2768
    %v2770 = vpop.f32.mrf.mxu0
    %2771 = vdwg.mxu0
    %2772 = vmatpush.bf16.msra.mxu0 %v2265
    %2773 = vmatpush.bf16.msra.mxu0 %v2257
    %2774 = vmatpush.bf16.msra.mxu0 %v2249
    %2775 = vmatpush.bf16.msra.mxu0 %v2241
    %2776 = vmatpush.bf16.msra.mxu0 %v2233
    %2777 = vmatpush.bf16.msra.mxu0 %v2225
    %2778 = vmatpush.bf16.msra.mxu0 %v2217
    %2779 = vmatpush.bf16.msra.mxu0 %v2209
    %2780 = vmatmul.bf16.gmra.mxu0 %v1372
    %v2781 = vpop.f32.mrf.mxu0
    %v2782 = vadd.f32 %v2769, %v2781
    %v2783 = vpop.f32.mrf.mxu0
    %2784 = vdwg.mxu0
    %2785 = vmatpush.bf16.msra.mxu0 %v2329
    %2786 = vmatpush.bf16.msra.mxu0 %v2321
    %2787 = vmatpush.bf16.msra.mxu0 %v2313
    %2788 = vmatpush.bf16.msra.mxu0 %v2305
    %2789 = vmatpush.bf16.msra.mxu0 %v2297
    %2790 = vmatpush.bf16.msra.mxu0 %v2289
    %2791 = vmatpush.bf16.msra.mxu0 %v2281
    %2792 = vmatpush.bf16.msra.mxu0 %v2273
    %2793 = vmatmul.bf16.gmra.mxu0 %v1373
    %v2794 = vpop.f32.mrf.mxu0
    %v2795 = vadd.f32 %v2782, %v2794
    %v2796 = vpop.f32.mrf.mxu0
    %2797 = vdwg.mxu0
    %2798 = vmatpush.bf16.msra.mxu0 %v2393
    %2799 = vmatpush.bf16.msra.mxu0 %v2385
    %2800 = vmatpush.bf16.msra.mxu0 %v2377
    %2801 = vmatpush.bf16.msra.mxu0 %v2369
    %2802 = vmatpush.bf16.msra.mxu0 %v2361
    %2803 = vmatpush.bf16.msra.mxu0 %v2353
    %2804 = vmatpush.bf16.msra.mxu0 %v2345
    %2805 = vmatpush.bf16.msra.mxu0 %v2337
    %2806 = vmatmul.bf16.gmra.mxu0 %v1374
    %v2807 = vpop.f32.mrf.mxu0
    %v2808 = vadd.f32 %v2795, %v2807
    %v2809 = vpop.f32.mrf.mxu0
    %2810 = vdwg.mxu0
    %2811 = vmatpush.bf16.msra.mxu0 %v2202
    %2812 = vmatpush.bf16.msra.mxu0 %v2194
    %2813 = vmatpush.bf16.msra.mxu0 %v2186
    %2814 = vmatpush.bf16.msra.mxu0 %v2178
    %2815 = vmatpush.bf16.msra.mxu0 %v2170
    %2816 = vmatpush.bf16.msra.mxu0 %v2162
    %2817 = vmatpush.bf16.msra.mxu0 %v2154
    %2818 = vmatpush.bf16.msra.mxu0 %v2146
    %2819 = vmatmul.bf16.gmra.mxu0 %v1371
    %v2820 = vpop.f32.mrf.mxu0
    %v2821 = vadd.f32 0.0, %v2820
    %v2822 = vpop.f32.mrf.mxu0
    %2823 = vdwg.mxu0
    %2824 = vmatpush.bf16.msra.mxu0 %v2266
    %2825 = vmatpush.bf16.msra.mxu0 %v2258
    %2826 = vmatpush.bf16.msra.mxu0 %v2250
    %2827 = vmatpush.bf16.msra.mxu0 %v2242
    %2828 = vmatpush.bf16.msra.mxu0 %v2234
    %2829 = vmatpush.bf16.msra.mxu0 %v2226
    %2830 = vmatpush.bf16.msra.mxu0 %v2218
    %2831 = vmatpush.bf16.msra.mxu0 %v2210
    %2832 = vmatmul.bf16.gmra.mxu0 %v1372
    %v2833 = vpop.f32.mrf.mxu0
    %v2834 = vadd.f32 %v2821, %v2833
    %v2835 = vpop.f32.mrf.mxu0
    %2836 = vdwg.mxu0
    %2837 = vmatpush.bf16.msra.mxu0 %v2330
    %2838 = vmatpush.bf16.msra.mxu0 %v2322
    %2839 = vmatpush.bf16.msra.mxu0 %v2314
    %2840 = vmatpush.bf16.msra.mxu0 %v2306
    %2841 = vmatpush.bf16.msra.mxu0 %v2298
    %2842 = vmatpush.bf16.msra.mxu0 %v2290
    %2843 = vmatpush.bf16.msra.mxu0 %v2282
    %2844 = vmatpush.bf16.msra.mxu0 %v2274
    %2845 = vmatmul.bf16.gmra.mxu0 %v1373
    %v2846 = vpop.f32.mrf.mxu0
    %v2847 = vadd.f32 %v2834, %v2846
    %v2848 = vpop.f32.mrf.mxu0
    %2849 = vdwg.mxu0
    %2850 = vmatpush.bf16.msra.mxu0 %v2394
    %2851 = vmatpush.bf16.msra.mxu0 %v2386
    %2852 = vmatpush.bf16.msra.mxu0 %v2378
    %2853 = vmatpush.bf16.msra.mxu0 %v2370
    %2854 = vmatpush.bf16.msra.mxu0 %v2362
    %2855 = vmatpush.bf16.msra.mxu0 %v2354
    %2856 = vmatpush.bf16.msra.mxu0 %v2346
    %2857 = vmatpush.bf16.msra.mxu0 %v2338
    %2858 = vmatmul.bf16.gmra.mxu0 %v1374
    %v2859 = vpop.f32.mrf.mxu0
    %v2860 = vadd.f32 %v2847, %v2859
    %v2861 = vpop.f32.mrf.mxu0
    %2862 = vdwg.mxu0
    %2863 = vmatpush.bf16.msra.mxu0 %v2203
    %2864 = vmatpush.bf16.msra.mxu0 %v2195
    %2865 = vmatpush.bf16.msra.mxu0 %v2187
    %2866 = vmatpush.bf16.msra.mxu0 %v2179
    %2867 = vmatpush.bf16.msra.mxu0 %v2171
    %2868 = vmatpush.bf16.msra.mxu0 %v2163
    %2869 = vmatpush.bf16.msra.mxu0 %v2155
    %2870 = vmatpush.bf16.msra.mxu0 %v2147
    %2871 = vmatmul.bf16.gmra.mxu0 %v1371
    %v2872 = vpop.f32.mrf.mxu0
    %v2873 = vadd.f32 0.0, %v2872
    %v2874 = vpop.f32.mrf.mxu0
    %2875 = vdwg.mxu0
    %2876 = vmatpush.bf16.msra.mxu0 %v2267
    %2877 = vmatpush.bf16.msra.mxu0 %v2259
    %2878 = vmatpush.bf16.msra.mxu0 %v2251
    %2879 = vmatpush.bf16.msra.mxu0 %v2243
    %2880 = vmatpush.bf16.msra.mxu0 %v2235
    %2881 = vmatpush.bf16.msra.mxu0 %v2227
    %2882 = vmatpush.bf16.msra.mxu0 %v2219
    %2883 = vmatpush.bf16.msra.mxu0 %v2211
    %2884 = vmatmul.bf16.gmra.mxu0 %v1372
    %v2885 = vpop.f32.mrf.mxu0
    %v2886 = vadd.f32 %v2873, %v2885
    %v2887 = vpop.f32.mrf.mxu0
    %2888 = vdwg.mxu0
    %2889 = vmatpush.bf16.msra.mxu0 %v2331
    %2890 = vmatpush.bf16.msra.mxu0 %v2323
    %2891 = vmatpush.bf16.msra.mxu0 %v2315
    %2892 = vmatpush.bf16.msra.mxu0 %v2307
    %2893 = vmatpush.bf16.msra.mxu0 %v2299
    %2894 = vmatpush.bf16.msra.mxu0 %v2291
    %2895 = vmatpush.bf16.msra.mxu0 %v2283
    %2896 = vmatpush.bf16.msra.mxu0 %v2275
    %2897 = vmatmul.bf16.gmra.mxu0 %v1373
    %v2898 = vpop.f32.mrf.mxu0
    %v2899 = vadd.f32 %v2886, %v2898
    %v2900 = vpop.f32.mrf.mxu0
    %2901 = vdwg.mxu0
    %2902 = vmatpush.bf16.msra.mxu0 %v2395
    %2903 = vmatpush.bf16.msra.mxu0 %v2387
    %2904 = vmatpush.bf16.msra.mxu0 %v2379
    %2905 = vmatpush.bf16.msra.mxu0 %v2371
    %2906 = vmatpush.bf16.msra.mxu0 %v2363
    %2907 = vmatpush.bf16.msra.mxu0 %v2355
    %2908 = vmatpush.bf16.msra.mxu0 %v2347
    %2909 = vmatpush.bf16.msra.mxu0 %v2339
    %2910 = vmatmul.bf16.gmra.mxu0 %v1374
    %v2911 = vpop.f32.mrf.mxu0
    %v2912 = vadd.f32 %v2899, %v2911
    %v2913 = vpop.f32.mrf.mxu0
    %2914 = vdwg.mxu0
    %2915 = vmatpush.bf16.msra.mxu0 %v2204
    %2916 = vmatpush.bf16.msra.mxu0 %v2196
    %2917 = vmatpush.bf16.msra.mxu0 %v2188
    %2918 = vmatpush.bf16.msra.mxu0 %v2180
    %2919 = vmatpush.bf16.msra.mxu0 %v2172
    %2920 = vmatpush.bf16.msra.mxu0 %v2164
    %2921 = vmatpush.bf16.msra.mxu0 %v2156
    %2922 = vmatpush.bf16.msra.mxu0 %v2148
    %2923 = vmatmul.bf16.gmra.mxu0 %v1371
    %v2924 = vpop.f32.mrf.mxu0
    %v2925 = vadd.f32 0.0, %v2924
    %v2926 = vpop.f32.mrf.mxu0
    %2927 = vdwg.mxu0
    %2928 = vmatpush.bf16.msra.mxu0 %v2268
    %2929 = vmatpush.bf16.msra.mxu0 %v2260
    %2930 = vmatpush.bf16.msra.mxu0 %v2252
    %2931 = vmatpush.bf16.msra.mxu0 %v2244
    %2932 = vmatpush.bf16.msra.mxu0 %v2236
    %2933 = vmatpush.bf16.msra.mxu0 %v2228
    %2934 = vmatpush.bf16.msra.mxu0 %v2220
    %2935 = vmatpush.bf16.msra.mxu0 %v2212
    %2936 = vmatmul.bf16.gmra.mxu0 %v1372
    %v2937 = vpop.f32.mrf.mxu0
    %v2938 = vadd.f32 %v2925, %v2937
    %v2939 = vpop.f32.mrf.mxu0
    %2940 = vdwg.mxu0
    %2941 = vmatpush.bf16.msra.mxu0 %v2332
    %2942 = vmatpush.bf16.msra.mxu0 %v2324
    %2943 = vmatpush.bf16.msra.mxu0 %v2316
    %2944 = vmatpush.bf16.msra.mxu0 %v2308
    %2945 = vmatpush.bf16.msra.mxu0 %v2300
    %2946 = vmatpush.bf16.msra.mxu0 %v2292
    %2947 = vmatpush.bf16.msra.mxu0 %v2284
    %2948 = vmatpush.bf16.msra.mxu0 %v2276
    %2949 = vmatmul.bf16.gmra.mxu0 %v1373
    %v2950 = vpop.f32.mrf.mxu0
    %v2951 = vadd.f32 %v2938, %v2950
    %v2952 = vpop.f32.mrf.mxu0
    %2953 = vdwg.mxu0
    %2954 = vmatpush.bf16.msra.mxu0 %v2396
    %2955 = vmatpush.bf16.msra.mxu0 %v2388
    %2956 = vmatpush.bf16.msra.mxu0 %v2380
    %2957 = vmatpush.bf16.msra.mxu0 %v2372
    %2958 = vmatpush.bf16.msra.mxu0 %v2364
    %2959 = vmatpush.bf16.msra.mxu0 %v2356
    %2960 = vmatpush.bf16.msra.mxu0 %v2348
    %2961 = vmatpush.bf16.msra.mxu0 %v2340
    %2962 = vmatmul.bf16.gmra.mxu0 %v1374
    %v2963 = vpop.f32.mrf.mxu0
    %v2964 = vadd.f32 %v2951, %v2963
    %v2965 = vpop.f32.mrf.mxu0
    %2966 = vdwg.mxu0
    %2967 = vmatpush.bf16.msra.mxu0 %v2205
    %2968 = vmatpush.bf16.msra.mxu0 %v2197
    %2969 = vmatpush.bf16.msra.mxu0 %v2189
    %2970 = vmatpush.bf16.msra.mxu0 %v2181
    %2971 = vmatpush.bf16.msra.mxu0 %v2173
    %2972 = vmatpush.bf16.msra.mxu0 %v2165
    %2973 = vmatpush.bf16.msra.mxu0 %v2157
    %2974 = vmatpush.bf16.msra.mxu0 %v2149
    %2975 = vmatmul.bf16.gmra.mxu0 %v1371
    %v2976 = vpop.f32.mrf.mxu0
    %v2977 = vadd.f32 0.0, %v2976
    %v2978 = vpop.f32.mrf.mxu0
    %2979 = vdwg.mxu0
    %2980 = vmatpush.bf16.msra.mxu0 %v2269
    %2981 = vmatpush.bf16.msra.mxu0 %v2261
    %2982 = vmatpush.bf16.msra.mxu0 %v2253
    %2983 = vmatpush.bf16.msra.mxu0 %v2245
    %2984 = vmatpush.bf16.msra.mxu0 %v2237
    %2985 = vmatpush.bf16.msra.mxu0 %v2229
    %2986 = vmatpush.bf16.msra.mxu0 %v2221
    %2987 = vmatpush.bf16.msra.mxu0 %v2213
    %2988 = vmatmul.bf16.gmra.mxu0 %v1372
    %v2989 = vpop.f32.mrf.mxu0
    %v2990 = vadd.f32 %v2977, %v2989
    %v2991 = vpop.f32.mrf.mxu0
    %2992 = vdwg.mxu0
    %2993 = vmatpush.bf16.msra.mxu0 %v2333
    %2994 = vmatpush.bf16.msra.mxu0 %v2325
    %2995 = vmatpush.bf16.msra.mxu0 %v2317
    %2996 = vmatpush.bf16.msra.mxu0 %v2309
    %2997 = vmatpush.bf16.msra.mxu0 %v2301
    %2998 = vmatpush.bf16.msra.mxu0 %v2293
    %2999 = vmatpush.bf16.msra.mxu0 %v2285
    %3000 = vmatpush.bf16.msra.mxu0 %v2277
    %3001 = vmatmul.bf16.gmra.mxu0 %v1373
    %v3002 = vpop.f32.mrf.mxu0
    %v3003 = vadd.f32 %v2990, %v3002
    %v3004 = vpop.f32.mrf.mxu0
    %3005 = vdwg.mxu0
    %3006 = vmatpush.bf16.msra.mxu0 %v2397
    %3007 = vmatpush.bf16.msra.mxu0 %v2389
    %3008 = vmatpush.bf16.msra.mxu0 %v2381
    %3009 = vmatpush.bf16.msra.mxu0 %v2373
    %3010 = vmatpush.bf16.msra.mxu0 %v2365
    %3011 = vmatpush.bf16.msra.mxu0 %v2357
    %3012 = vmatpush.bf16.msra.mxu0 %v2349
    %3013 = vmatpush.bf16.msra.mxu0 %v2341
    %3014 = vmatmul.bf16.gmra.mxu0 %v1374
    %v3015 = vpop.f32.mrf.mxu0
    %v3016 = vadd.f32 %v3003, %v3015
    %v3017 = vpop.f32.mrf.mxu0
    %3018 = vdwg.mxu0
    %3019 = vmatpush.bf16.msra.mxu0 %v2206
    %3020 = vmatpush.bf16.msra.mxu0 %v2198
    %3021 = vmatpush.bf16.msra.mxu0 %v2190
    %3022 = vmatpush.bf16.msra.mxu0 %v2182
    %3023 = vmatpush.bf16.msra.mxu0 %v2174
    %3024 = vmatpush.bf16.msra.mxu0 %v2166
    %3025 = vmatpush.bf16.msra.mxu0 %v2158
    %3026 = vmatpush.bf16.msra.mxu0 %v2150
    %3027 = vmatmul.bf16.gmra.mxu0 %v1371
    %v3028 = vpop.f32.mrf.mxu0
    %v3029 = vadd.f32 0.0, %v3028
    %v3030 = vpop.f32.mrf.mxu0
    %3031 = vdwg.mxu0
    %3032 = vmatpush.bf16.msra.mxu0 %v2270
    %3033 = vmatpush.bf16.msra.mxu0 %v2262
    %3034 = vmatpush.bf16.msra.mxu0 %v2254
    %3035 = vmatpush.bf16.msra.mxu0 %v2246
    %3036 = vmatpush.bf16.msra.mxu0 %v2238
    %3037 = vmatpush.bf16.msra.mxu0 %v2230
    %3038 = vmatpush.bf16.msra.mxu0 %v2222
    %3039 = vmatpush.bf16.msra.mxu0 %v2214
    %3040 = vmatmul.bf16.gmra.mxu0 %v1372
    %v3041 = vpop.f32.mrf.mxu0
    %v3042 = vadd.f32 %v3029, %v3041
    %v3043 = vpop.f32.mrf.mxu0
    %3044 = vdwg.mxu0
    %3045 = vmatpush.bf16.msra.mxu0 %v2334
    %3046 = vmatpush.bf16.msra.mxu0 %v2326
    %3047 = vmatpush.bf16.msra.mxu0 %v2318
    %3048 = vmatpush.bf16.msra.mxu0 %v2310
    %3049 = vmatpush.bf16.msra.mxu0 %v2302
    %3050 = vmatpush.bf16.msra.mxu0 %v2294
    %3051 = vmatpush.bf16.msra.mxu0 %v2286
    %3052 = vmatpush.bf16.msra.mxu0 %v2278
    %3053 = vmatmul.bf16.gmra.mxu0 %v1373
    %v3054 = vpop.f32.mrf.mxu0
    %v3055 = vadd.f32 %v3042, %v3054
    %v3056 = vpop.f32.mrf.mxu0
    %3057 = vdwg.mxu0
    %3058 = vmatpush.bf16.msra.mxu0 %v2398
    %3059 = vmatpush.bf16.msra.mxu0 %v2390
    %3060 = vmatpush.bf16.msra.mxu0 %v2382
    %3061 = vmatpush.bf16.msra.mxu0 %v2374
    %3062 = vmatpush.bf16.msra.mxu0 %v2366
    %3063 = vmatpush.bf16.msra.mxu0 %v2358
    %3064 = vmatpush.bf16.msra.mxu0 %v2350
    %3065 = vmatpush.bf16.msra.mxu0 %v2342
    %3066 = vmatmul.bf16.gmra.mxu0 %v1374
    %v3067 = vpop.f32.mrf.mxu0
    %v3068 = vadd.f32 %v3055, %v3067
    %v3069 = vpop.f32.mrf.mxu0
    %3070 = vdwg.mxu0
    %v3071 = vld [vmem:[#allocation8 + $0xd] sm:$0xff]
    %v3072 = vld [vmem:[#allocation8 + $0x15] sm:$0xff]
    %v3073 = vsel %vm334, %v2704, 0.0
    %v3074 = vrot.slane %v3073, 4
    %v3075 = vadd.f32 %v3073, %v3074
    %v3076 = vrot.slane %v3075, 2
    %v3077 = vadd.f32 %v3075, %v3076
    %v3078 = vrot.slane %v3077, 1
    %v3079 = vadd.f32 %v3077, %v3078
    %v3080 = vsel %vm334, %v2756, 0.0
    %v3081 = vrot.slane %v3080, 4
    %v3082 = vadd.f32 %v3080, %v3081
    %v3083 = vrot.slane %v3082, 2
    %v3084 = vadd.f32 %v3082, %v3083
    %v3085 = vrot.slane %v3084, 1
    %v3086 = vadd.f32 %v3084, %v3085
    %v3087 = vsel %vm334, %v2808, 0.0
    %v3088 = vrot.slane %v3087, 4
    %v3089 = vadd.f32 %v3087, %v3088
    %v3090 = vrot.slane %v3089, 2
    %v3091 = vadd.f32 %v3089, %v3090
    %v3092 = vrot.slane %v3091, 1
    %v3093 = vadd.f32 %v3091, %v3092
    %v3094 = vsel %vm334, %v2860, 0.0
    %v3095 = vrot.slane %v3094, 4
    %v3096 = vadd.f32 %v3094, %v3095
    %v3097 = vrot.slane %v3096, 2
    %v3098 = vadd.f32 %v3096, %v3097
    %v3099 = vrot.slane %v3098, 1
    %v3100 = vadd.f32 %v3098, %v3099
    %v3101 = vsel %vm334, %v2912, 0.0
    %v3102 = vrot.slane %v3101, 4
    %v3103 = vadd.f32 %v3101, %v3102
    %v3104 = vrot.slane %v3103, 2
    %v3105 = vadd.f32 %v3103, %v3104
    %v3106 = vrot.slane %v3105, 1
    %v3107 = vadd.f32 %v3105, %v3106
    %v3108 = vsel %vm334, %v2964, 0.0
    %v3109 = vrot.slane %v3108, 4
    %v3110 = vadd.f32 %v3108, %v3109
    %v3111 = vrot.slane %v3110, 2
    %v3112 = vadd.f32 %v3110, %v3111
    %v3113 = vrot.slane %v3112, 1
    %v3114 = vadd.f32 %v3112, %v3113
    %v3115 = vsel %vm334, %v3016, 0.0
    %v3116 = vrot.slane %v3115, 4
    %v3117 = vadd.f32 %v3115, %v3116
    %v3118 = vrot.slane %v3117, 2
    %v3119 = vadd.f32 %v3117, %v3118
    %v3120 = vrot.slane %v3119, 1
    %v3121 = vadd.f32 %v3119, %v3120
    %v3122 = vsel %vm334, %v3068, 0.0
    %v3123 = vrot.slane %v3122, 4
    %v3124 = vadd.f32 %v3122, %v3123
    %v3125 = vrot.slane %v3124, 2
    %v3126 = vadd.f32 %v3124, %v3125
    %v3127 = vrot.slane %v3126, 1
    %v3128 = vadd.f32 %v3126, %v3127
    %v3129 = vmul.f32 %v3079, %v355
    %v3130 = vmul.f32 %v3086, %v355
    %v3131 = vmul.f32 %v3093, %v355
    %v3132 = vmul.f32 %v3100, %v355
    %v3133 = vmul.f32 %v3107, %v355
    %v3134 = vmul.f32 %v3114, %v355
    %v3135 = vmul.f32 %v3121, %v355
    %v3136 = vmul.f32 %v3128, %v355
    %v3137 = vmul.f32 %v2704, %v2704
    %v3138 = vmul.f32 %v2756, %v2756
    %v3139 = vmul.f32 %v2808, %v2808
    %v3140 = vmul.f32 %v2860, %v2860
    %v3141 = vmul.f32 %v2912, %v2912
    %v3142 = vmul.f32 %v2964, %v2964
    %v3143 = vmul.f32 %v3016, %v3016
    %v3144 = vmul.f32 %v3068, %v3068
    %v3145 = vsel %vm334, %v3137, 0.0
    %v3146 = vrot.slane %v3145, 4
    %v3147 = vadd.f32 %v3145, %v3146
    %v3148 = vrot.slane %v3147, 2
    %v3149 = vadd.f32 %v3147, %v3148
    %v3150 = vrot.slane %v3149, 1
    %v3151 = vadd.f32 %v3149, %v3150
    %v3152 = vsel %vm334, %v3138, 0.0
    %v3153 = vrot.slane %v3152, 4
    %v3154 = vadd.f32 %v3152, %v3153
    %v3155 = vrot.slane %v3154, 2
    %v3156 = vadd.f32 %v3154, %v3155
    %v3157 = vrot.slane %v3156, 1
    %v3158 = vadd.f32 %v3156, %v3157
    %v3159 = vsel %vm334, %v3139, 0.0
    %v3160 = vrot.slane %v3159, 4
    %v3161 = vadd.f32 %v3159, %v3160
    %v3162 = vrot.slane %v3161, 2
    %v3163 = vadd.f32 %v3161, %v3162
    %v3164 = vrot.slane %v3163, 1
    %v3165 = vadd.f32 %v3163, %v3164
    %v3166 = vsel %vm334, %v3140, 0.0
    %v3167 = vrot.slane %v3166, 4
    %v3168 = vadd.f32 %v3166, %v3167
    %v3169 = vrot.slane %v3168, 2
    %v3170 = vadd.f32 %v3168, %v3169
    %v3171 = vrot.slane %v3170, 1
    %v3172 = vadd.f32 %v3170, %v3171
    %v3173 = vsel %vm334, %v3141, 0.0
    %v3174 = vrot.slane %v3173, 4
    %v3175 = vadd.f32 %v3173, %v3174
    %v3176 = vrot.slane %v3175, 2
    %v3177 = vadd.f32 %v3175, %v3176
    %v3178 = vrot.slane %v3177, 1
    %v3179 = vadd.f32 %v3177, %v3178
    %v3180 = vsel %vm334, %v3142, 0.0
    %v3181 = vrot.slane %v3180, 4
    %v3182 = vadd.f32 %v3180, %v3181
    %v3183 = vrot.slane %v3182, 2
    %v3184 = vadd.f32 %v3182, %v3183
    %v3185 = vrot.slane %v3184, 1
    %v3186 = vadd.f32 %v3184, %v3185
    %v3187 = vsel %vm334, %v3143, 0.0
    %v3188 = vrot.slane %v3187, 4
    %v3189 = vadd.f32 %v3187, %v3188
    %v3190 = vrot.slane %v3189, 2
    %v3191 = vadd.f32 %v3189, %v3190
    %v3192 = vrot.slane %v3191, 1
    %v3193 = vadd.f32 %v3191, %v3192
    %v3194 = vsel %vm334, %v3144, 0.0
    %v3195 = vrot.slane %v3194, 4
    %v3196 = vadd.f32 %v3194, %v3195
    %v3197 = vrot.slane %v3196, 2
    %v3198 = vadd.f32 %v3196, %v3197
    %v3199 = vrot.slane %v3198, 1
    %v3200 = vadd.f32 %v3198, %v3199
    %v3201 = vmul.f32 %v3151, %v355
    %v3202 = vmul.f32 %v3158, %v355
    %v3203 = vmul.f32 %v3165, %v355
    %v3204 = vmul.f32 %v3172, %v355
    %v3205 = vmul.f32 %v3179, %v355
    %v3206 = vmul.f32 %v3186, %v355
    %v3207 = vmul.f32 %v3193, %v355
    %v3208 = vmul.f32 %v3200, %v355
    %v3209 = vmul.f32 %v3129, %v3129
    %v3210 = vmul.f32 %v3130, %v3130
    %v3211 = vmul.f32 %v3131, %v3131
    %v3212 = vmul.f32 %v3132, %v3132
    %v3213 = vmul.f32 %v3133, %v3133
    %v3214 = vmul.f32 %v3134, %v3134
    %v3215 = vmul.f32 %v3135, %v3135
    %v3216 = vmul.f32 %v3136, %v3136
    %v3217 = vsub.f32 %v3201, %v3209
    %v3218 = vsub.f32 %v3202, %v3210
    %v3219 = vsub.f32 %v3203, %v3211
    %v3220 = vsub.f32 %v3204, %v3212
    %v3221 = vsub.f32 %v3205, %v3213
    %v3222 = vsub.f32 %v3206, %v3214
    %v3223 = vsub.f32 %v3207, %v3215
    %v3224 = vsub.f32 %v3208, %v3216
    %v3225 = vadd.f32 %v3217, 1e-05
    %v3226 = vadd.f32 %v3218, 1e-05
    %v3227 = vadd.f32 %v3219, 1e-05
    %v3228 = vadd.f32 %v3220, 1e-05
    %v3229 = vadd.f32 %v3221, 1e-05
    %v3230 = vadd.f32 %v3222, 1e-05
    %v3231 = vadd.f32 %v3223, 1e-05
    %v3232 = vadd.f32 %v3224, 1e-05
    %v3233 = vrsqrt.pop %v3225
    %v3234 = vmul.f32 %v3233, %v3225
    %v3235 = vmul.f32 %v3234, %v3233
    %v3236 = vmul.f32 0.5, %v3235
    %v3237 = vsub.f32 1.5, %v3236
    %v3238 = vmul.f32 %v3233, %v3237
    %vm3239 = vweird.f32 %v3225
    %vm3240 = vweird.f32 %v3233
    %vm3241 = vmor %vm3239, %vm3240
    %v3242 = vsel %vm3241, %v3233, %v3238
    %v3243 = vrsqrt.pop %v3226
    %v3244 = vmul.f32 %v3243, %v3226
    %v3245 = vmul.f32 %v3244, %v3243
    %v3246 = vmul.f32 0.5, %v3245
    %v3247 = vsub.f32 1.5, %v3246
    %v3248 = vmul.f32 %v3243, %v3247
    %vm3249 = vweird.f32 %v3226
    %vm3250 = vweird.f32 %v3243
    %vm3251 = vmor %vm3249, %vm3250
    %v3252 = vsel %vm3251, %v3243, %v3248
    %v3253 = vrsqrt.pop %v3227
    %v3254 = vmul.f32 %v3253, %v3227
    %v3255 = vmul.f32 %v3254, %v3253
    %v3256 = vmul.f32 0.5, %v3255
    %v3257 = vsub.f32 1.5, %v3256
    %v3258 = vmul.f32 %v3253, %v3257
    %vm3259 = vweird.f32 %v3227
    %vm3260 = vweird.f32 %v3253
    %vm3261 = vmor %vm3259, %vm3260
    %v3262 = vsel %vm3261, %v3253, %v3258
    %v3263 = vrsqrt.pop %v3228
    %v3264 = vmul.f32 %v3263, %v3228
    %v3265 = vmul.f32 %v3264, %v3263
    %v3266 = vmul.f32 0.5, %v3265
    %v3267 = vsub.f32 1.5, %v3266
    %v3268 = vmul.f32 %v3263, %v3267
    %vm3269 = vweird.f32 %v3228
    %vm3270 = vweird.f32 %v3263
    %vm3271 = vmor %vm3269, %vm3270
    %v3272 = vsel %vm3271, %v3263, %v3268
    %v3273 = vrsqrt.pop %v3229
    %v3274 = vmul.f32 %v3273, %v3229
    %v3275 = vmul.f32 %v3274, %v3273
    %v3276 = vmul.f32 0.5, %v3275
    %v3277 = vsub.f32 1.5, %v3276
    %v3278 = vmul.f32 %v3273, %v3277
    %vm3279 = vweird.f32 %v3229
    %vm3280 = vweird.f32 %v3273
    %vm3281 = vmor %vm3279, %vm3280
    %v3282 = vsel %vm3281, %v3273, %v3278
    %v3283 = vrsqrt.pop %v3230
    %v3284 = vmul.f32 %v3283, %v3230
    %v3285 = vmul.f32 %v3284, %v3283
    %v3286 = vmul.f32 0.5, %v3285
    %v3287 = vsub.f32 1.5, %v3286
    %v3288 = vmul.f32 %v3283, %v3287
    %vm3289 = vweird.f32 %v3230
    %vm3290 = vweird.f32 %v3283
    %vm3291 = vmor %vm3289, %vm3290
    %v3292 = vsel %vm3291, %v3283, %v3288
    %v3293 = vrsqrt.pop %v3231
    %v3294 = vmul.f32 %v3293, %v3231
    %v3295 = vmul.f32 %v3294, %v3293
    %v3296 = vmul.f32 0.5, %v3295
    %v3297 = vsub.f32 1.5, %v3296
    %v3298 = vmul.f32 %v3293, %v3297
    %vm3299 = vweird.f32 %v3231
    %vm3300 = vweird.f32 %v3293
    %vm3301 = vmor %vm3299, %vm3300
    %v3302 = vsel %vm3301, %v3293, %v3298
    %v3303 = vrsqrt.pop %v3232
    %v3304 = vmul.f32 %v3303, %v3232
    %v3305 = vmul.f32 %v3304, %v3303
    %v3306 = vmul.f32 0.5, %v3305
    %v3307 = vsub.f32 1.5, %v3306
    %v3308 = vmul.f32 %v3303, %v3307
    %vm3309 = vweird.f32 %v3232
    %vm3310 = vweird.f32 %v3303
    %vm3311 = vmor %vm3309, %vm3310
    %v3312 = vsel %vm3311, %v3303, %v3308
    %v3321 = vrot.slane %v3252, 7
    %v3322 = vrot.slane %v3262, 6
    %v3323 = vrot.slane %v3272, 5
    %v3324 = vrot.slane %v3282, 4
    %v3325 = vrot.slane %v3292, 3
    %v3326 = vrot.slane %v3302, 2
    %v3327 = vrot.slane %v3312, 1
    %v3328 = vsel %vm405, %v3242, %v3321
    %v3329 = vsel %vm1055, %v3322, %v3323
    %v3330 = vsel %vm1057, %v3328, %v3329
    %vm3331 = vcmask 1044484
    %v3332 = vsel %vm3331, %v3324, %v3325
    %vm3333 = vcmask 1046534
    %v3334 = vsel %vm3333, %v3326, %v3327
    %vm3335 = vcmask 1045508
    %v3336 = vsel %vm3335, %v3332, %v3334
    %v3337 = vsel %vm334, %v3330, %v3336
    %v3339 = vmul.f32 %v3071, %v3337
    %v3341 = vperm.slane %v3339, 0
    %v3342 = vperm.slane %v3339, 1
    %v3343 = vperm.slane %v3339, 2
    %v3344 = vperm.slane %v3339, 3
    %v3345 = vperm.slane %v3339, 4
    %v3346 = vperm.slane %v3339, 5
    %v3347 = vperm.slane %v3339, 6
    %v3348 = vperm.slane %v3339, 7
    %v3357 = vmul.f32 %v3129, %v3341
    %v3358 = vmul.f32 %v3130, %v3342
    %v3359 = vmul.f32 %v3131, %v3343
    %v3360 = vmul.f32 %v3132, %v3344
    %v3361 = vmul.f32 %v3133, %v3345
    %v3362 = vmul.f32 %v3134, %v3346
    %v3363 = vmul.f32 %v3135, %v3347
    %v3364 = vmul.f32 %v3136, %v3348
    %v3373 = vrot.slane %v3358, 7
    %v3374 = vrot.slane %v3359, 6
    %v3375 = vrot.slane %v3360, 5
    %v3376 = vrot.slane %v3361, 4
    %v3377 = vrot.slane %v3362, 3
    %v3378 = vrot.slane %v3363, 2
    %v3379 = vrot.slane %v3364, 1
    %v3380 = vsel %vm405, %v3357, %v3373
    %v3381 = vsel %vm1055, %v3374, %v3375
    %v3382 = vsel %vm1057, %v3380, %v3381
    %v3383 = vsel %vm3331, %v3376, %v3377
    %v3384 = vsel %vm3333, %v3378, %v3379
    %v3385 = vsel %vm3335, %v3383, %v3384
    %v3386 = vsel %vm334, %v3382, %v3385
    %v3388 = vsub.f32 %v3072, %v3386
    %v3389 = vmul.f32 %v2704, %v3341
    %v3390 = vmul.f32 %v2756, %v3342
    %v3391 = vmul.f32 %v2808, %v3343
    %v3392 = vmul.f32 %v2860, %v3344
    %v3393 = vmul.f32 %v2912, %v3345
    %v3394 = vmul.f32 %v2964, %v3346
    %v3395 = vmul.f32 %v3016, %v3347
    %v3396 = vmul.f32 %v3068, %v3348
    %v3398 = vperm.slane %v3388, 0
    %v3399 = vperm.slane %v3388, 1
    %v3400 = vperm.slane %v3388, 2
    %v3401 = vperm.slane %v3388, 3
    %v3402 = vperm.slane %v3388, 4
    %v3403 = vperm.slane %v3388, 5
    %v3404 = vperm.slane %v3388, 6
    %v3405 = vperm.slane %v3388, 7
    %v3414 = vadd.f32 %v3389, %v3398
    %v3415 = vadd.f32 %v3390, %v3399
    %v3416 = vadd.f32 %v3391, %v3400
    %v3417 = vadd.f32 %v3392, %v3401
    %v3418 = vadd.f32 %v3393, %v3402
    %v3419 = vadd.f32 %v3394, %v3403
    %v3420 = vadd.f32 %v3395, %v3404
    %v3421 = vadd.f32 %v3396, %v3405
    %v3422 = vmul.f32 %v3414, 0.2
    %v3423 = vmul.f32 %v3415, 0.2
    %v3424 = vmul.f32 %v3416, 0.2
    %v3425 = vmul.f32 %v3417, 0.2
    %v3426 = vmul.f32 %v3418, 0.2
    %v3427 = vmul.f32 %v3419, 0.2
    %v3428 = vmul.f32 %v3420, 0.2
    %v3429 = vmul.f32 %v3421, 0.2
    %v3430 = vmax.f32 %v3414, %v3422
    %v3431 = vmax.f32 %v3415, %v3423
    %v3432 = vmax.f32 %v3416, %v3424
    %v3433 = vmax.f32 %v3417, %v3425
    %v3434 = vmax.f32 %v3418, %v3426
    %v3435 = vmax.f32 %v3419, %v3427
    %v3436 = vmax.f32 %v3420, %v3428
    %v3437 = vmax.f32 %v3421, %v3429
    %s3438 = smul.u32 4, 128
    %s3439 = smul.u32 %s3438, 7
    %s3440 = sshll.u32 %s3439, 4
    %3441 = dma.done %s110, %s3440
    %v3442 = vld [vmem:[#allocation3] sm:$0xff]
    %v3443 = vld [vmem:[#allocation3 + $0x8] sm:$0xff]
    %v3444 = vld [vmem:[#allocation3 + $0x10] sm:$0xff]
    %v3445 = vld [vmem:[#allocation3 + $0x18] sm:$0xf]
    %v3446 = vld [vmem:[#allocation3 + $0x1c] sm:$0xff]
    %v3447 = vld [vmem:[#allocation3 + $0x24] sm:$0xff]
    %v3448 = vld [vmem:[#allocation3 + $0x2c] sm:$0xff]
    %v3449 = vld [vmem:[#allocation3 + $0x34] sm:$0xf]
    %v3450 = vld [vmem:[#allocation3 + $0x38] sm:$0xff]
    %v3451 = vld [vmem:[#allocation3 + $0x40] sm:$0xff]
    %v3452 = vld [vmem:[#allocation3 + $0x48] sm:$0xff]
    %v3453 = vld [vmem:[#allocation3 + $0x50] sm:$0xf]
    %v3454 = vld [vmem:[#allocation3 + $0x54] sm:$0xff]
    %v3455 = vld [vmem:[#allocation3 + $0x5c] sm:$0xff]
    %v3456 = vld [vmem:[#allocation3 + $0x64] sm:$0xff]
    %v3457 = vld [vmem:[#allocation3 + $0x6c] sm:$0xf]
    %v3458 = vld [vmem:[#allocation3 + $0x70] sm:$0xff]
    %v3459 = vld [vmem:[#allocation3 + $0x78] sm:$0xff]
    %v3460 = vld [vmem:[#allocation3 + $0x80] sm:$0xff]
    %v3461 = vld [vmem:[#allocation3 + $0x88] sm:$0xf]
    %v3462 = vld [vmem:[#allocation3 + $0x8c] sm:$0xff]
    %v3463 = vld [vmem:[#allocation3 + $0x94] sm:$0xff]
    %v3464 = vld [vmem:[#allocation3 + $0x9c] sm:$0xff]
    %v3465 = vld [vmem:[#allocation3 + $0xa4] sm:$0xf]
    %v3466 = vld [vmem:[#allocation3 + $0xa8] sm:$0xff]
    %v3467 = vld [vmem:[#allocation3 + $0xb0] sm:$0xff]
    %v3468 = vld [vmem:[#allocation3 + $0xb8] sm:$0xff]
    %v3469 = vld [vmem:[#allocation3 + $0xc0] sm:$0xf]
    %v3470 = vld [vmem:[#allocation3 + $0xc4] sm:$0xff]
    %v3471 = vld [vmem:[#allocation3 + $0xcc] sm:$0xff]
    %v3472 = vld [vmem:[#allocation3 + $0xd4] sm:$0xff]
    %v3473 = vld [vmem:[#allocation3 + $0xdc] sm:$0xf]
    %v3474 = vld [vmem:[#allocation3 + $0xe0] sm:$0xff]
    %v3475 = vld [vmem:[#allocation3 + $0xe8] sm:$0xff]
    %v3476 = vld [vmem:[#allocation3 + $0xf0] sm:$0xff]
    %v3477 = vld [vmem:[#allocation3 + $0xf8] sm:$0xf]
    %v3478 = vld [vmem:[#allocation3 + $0xfc] sm:$0xff]
    %v3479 = vld [vmem:[#allocation3 + $0x104] sm:$0xff]
    %v3480 = vld [vmem:[#allocation3 + $0x10c] sm:$0xff]
    %v3481 = vld [vmem:[#allocation3 + $0x114] sm:$0xf]
    %v3482 = vld [vmem:[#allocation3 + $0x118] sm:$0xff]
    %v3483 = vld [vmem:[#allocation3 + $0x120] sm:$0xff]
    %v3484 = vld [vmem:[#allocation3 + $0x128] sm:$0xff]
    %v3485 = vld [vmem:[#allocation3 + $0x130] sm:$0xf]
    %v3486 = vld [vmem:[#allocation3 + $0x134] sm:$0xff]
    %v3487 = vld [vmem:[#allocation3 + $0x13c] sm:$0xff]
    %v3488 = vld [vmem:[#allocation3 + $0x144] sm:$0xff]
    %v3489 = vld [vmem:[#allocation3 + $0x14c] sm:$0xf]
    %v3490 = vld [vmem:[#allocation3 + $0x150] sm:$0xff]
    %v3491 = vld [vmem:[#allocation3 + $0x158] sm:$0xff]
    %v3492 = vld [vmem:[#allocation3 + $0x160] sm:$0xff]
    %v3493 = vld [vmem:[#allocation3 + $0x168] sm:$0xf]
    %v3494 = vld [vmem:[#allocation3 + $0x16c] sm:$0xff]
    %v3495 = vld [vmem:[#allocation3 + $0x174] sm:$0xff]
    %v3496 = vld [vmem:[#allocation3 + $0x17c] sm:$0xff]
    %v3497 = vld [vmem:[#allocation3 + $0x184] sm:$0xf]
    %v3498 = vld [vmem:[#allocation3 + $0x188] sm:$0xff]
    %v3499 = vld [vmem:[#allocation3 + $0x190] sm:$0xff]
    %v3500 = vld [vmem:[#allocation3 + $0x198] sm:$0xff]
    %v3501 = vld [vmem:[#allocation3 + $0x1a0] sm:$0xf]
    %v3502 = vld [vmem:[#allocation3 + $0x1a4] sm:$0xff]
    %v3503 = vld [vmem:[#allocation3 + $0x1ac] sm:$0xff]
    %v3504 = vld [vmem:[#allocation3 + $0x1b4] sm:$0xff]
    %v3505 = vld [vmem:[#allocation3 + $0x1bc] sm:$0xf]
    %v3506 = vld [vmem:[#allocation3 + $0x1c0] sm:$0xff]
    %v3507 = vld [vmem:[#allocation3 + $0x1c8] sm:$0xff]
    %v3508 = vld [vmem:[#allocation3 + $0x1d0] sm:$0xff]
    %v3509 = vld [vmem:[#allocation3 + $0x1d8] sm:$0xf]
    %v3510 = vld [vmem:[#allocation3 + $0x1dc] sm:$0xff]
    %v3511 = vld [vmem:[#allocation3 + $0x1e4] sm:$0xff]
    %v3512 = vld [vmem:[#allocation3 + $0x1ec] sm:$0xff]
    %v3513 = vld [vmem:[#allocation3 + $0x1f4] sm:$0xf]
    %v3514 = vld [vmem:[#allocation3 + $0x1f8] sm:$0xff]
    %v3515 = vld [vmem:[#allocation3 + $0x200] sm:$0xff]
    %v3516 = vld [vmem:[#allocation3 + $0x208] sm:$0xff]
    %v3517 = vld [vmem:[#allocation3 + $0x210] sm:$0xf]
    %v3518 = vld [vmem:[#allocation3 + $0x214] sm:$0xff]
    %v3519 = vld [vmem:[#allocation3 + $0x21c] sm:$0xff]
    %v3520 = vld [vmem:[#allocation3 + $0x224] sm:$0xff]
    %v3521 = vld [vmem:[#allocation3 + $0x22c] sm:$0xf]
    %v3522 = vld [vmem:[#allocation3 + $0x230] sm:$0xff]
    %v3523 = vld [vmem:[#allocation3 + $0x238] sm:$0xff]
    %v3524 = vld [vmem:[#allocation3 + $0x240] sm:$0xff]
    %v3525 = vld [vmem:[#allocation3 + $0x248] sm:$0xf]
    %v3526 = vld [vmem:[#allocation3 + $0x24c] sm:$0xff]
    %v3527 = vld [vmem:[#allocation3 + $0x254] sm:$0xff]
    %v3528 = vld [vmem:[#allocation3 + $0x25c] sm:$0xff]
    %v3529 = vld [vmem:[#allocation3 + $0x264] sm:$0xf]
    %v3530 = vld [vmem:[#allocation3 + $0x268] sm:$0xff]
    %v3531 = vld [vmem:[#allocation3 + $0x270] sm:$0xff]
    %v3532 = vld [vmem:[#allocation3 + $0x278] sm:$0xff]
    %v3533 = vld [vmem:[#allocation3 + $0x280] sm:$0xf]
    %v3534 = vld [vmem:[#allocation3 + $0x284] sm:$0xff]
    %v3535 = vld [vmem:[#allocation3 + $0x28c] sm:$0xff]
    %v3536 = vld [vmem:[#allocation3 + $0x294] sm:$0xff]
    %v3537 = vld [vmem:[#allocation3 + $0x29c] sm:$0xf]
    %v3538 = vld [vmem:[#allocation3 + $0x2a0] sm:$0xff]
    %v3539 = vld [vmem:[#allocation3 + $0x2a8] sm:$0xff]
    %v3540 = vld [vmem:[#allocation3 + $0x2b0] sm:$0xff]
    %v3541 = vld [vmem:[#allocation3 + $0x2b8] sm:$0xf]
    %v3542 = vld [vmem:[#allocation3 + $0x2bc] sm:$0xff]
    %v3543 = vld [vmem:[#allocation3 + $0x2c4] sm:$0xff]
    %v3544 = vld [vmem:[#allocation3 + $0x2cc] sm:$0xff]
    %v3545 = vld [vmem:[#allocation3 + $0x2d4] sm:$0xf]
    %v3546 = vld [vmem:[#allocation3 + $0x2d8] sm:$0xff]
    %v3547 = vld [vmem:[#allocation3 + $0x2e0] sm:$0xff]
    %v3548 = vld [vmem:[#allocation3 + $0x2e8] sm:$0xff]
    %v3549 = vld [vmem:[#allocation3 + $0x2f0] sm:$0xf]
    %v3550 = vld [vmem:[#allocation3 + $0x2f4] sm:$0xff]
    %v3551 = vld [vmem:[#allocation3 + $0x2fc] sm:$0xff]
    %v3552 = vld [vmem:[#allocation3 + $0x304] sm:$0xff]
    %v3553 = vld [vmem:[#allocation3 + $0x30c] sm:$0xf]
    %v3554 = vld [vmem:[#allocation3 + $0x310] sm:$0xff]
    %v3555 = vld [vmem:[#allocation3 + $0x318] sm:$0xff]
    %v3556 = vld [vmem:[#allocation3 + $0x320] sm:$0xff]
    %v3557 = vld [vmem:[#allocation3 + $0x328] sm:$0xf]
    %v3558 = vld [vmem:[#allocation3 + $0x32c] sm:$0xff]
    %v3559 = vld [vmem:[#allocation3 + $0x334] sm:$0xff]
    %v3560 = vld [vmem:[#allocation3 + $0x33c] sm:$0xff]
    %v3561 = vld [vmem:[#allocation3 + $0x344] sm:$0xf]
    %v3562 = vld [vmem:[#allocation3 + $0x348] sm:$0xff]
    %v3563 = vld [vmem:[#allocation3 + $0x350] sm:$0xff]
    %v3564 = vld [vmem:[#allocation3 + $0x358] sm:$0xff]
    %v3565 = vld [vmem:[#allocation3 + $0x360] sm:$0xf]
    %v3566 = vld [vmem:[#allocation3 + $0x364] sm:$0xff]
    %v3567 = vld [vmem:[#allocation3 + $0x36c] sm:$0xff]
    %v3568 = vld [vmem:[#allocation3 + $0x374] sm:$0xff]
    %v3569 = vld [vmem:[#allocation3 + $0x37c] sm:$0xf]
    %v3570 = vld [vmem:[#allocation3 + $0x380] sm:$0xff]
    %v3571 = vld [vmem:[#allocation3 + $0x388] sm:$0xff]
    %v3572 = vld [vmem:[#allocation3 + $0x390] sm:$0xff]
    %v3573 = vld [vmem:[#allocation3 + $0x398] sm:$0xf]
    %v3574 = vld [vmem:[#allocation3 + $0x39c] sm:$0xff]
    %v3575 = vld [vmem:[#allocation3 + $0x3a4] sm:$0xff]
    %v3576 = vld [vmem:[#allocation3 + $0x3ac] sm:$0xff]
    %v3577 = vld [vmem:[#allocation3 + $0x3b4] sm:$0xf]
    %v3578 = vld [vmem:[#allocation3 + $0x3b8] sm:$0xff]
    %v3579 = vld [vmem:[#allocation3 + $0x3c0] sm:$0xff]
    %v3580 = vld [vmem:[#allocation3 + $0x3c8] sm:$0xff]
    %v3581 = vld [vmem:[#allocation3 + $0x3d0] sm:$0xf]
    %v3582 = vld [vmem:[#allocation3 + $0x3d4] sm:$0xff]
    %v3583 = vld [vmem:[#allocation3 + $0x3dc] sm:$0xff]
    %v3584 = vld [vmem:[#allocation3 + $0x3e4] sm:$0xff]
    %v3585 = vld [vmem:[#allocation3 + $0x3ec] sm:$0xf]
    %v3586 = vld [vmem:[#allocation3 + $0x3f0] sm:$0xff]
    %v3587 = vld [vmem:[#allocation3 + $0x3f8] sm:$0xff]
    %v3588 = vld [vmem:[#allocation3 + $0x400] sm:$0xff]
    %v3589 = vld [vmem:[#allocation3 + $0x408] sm:$0xf]
    %v3590 = vld [vmem:[#allocation3 + $0x40c] sm:$0xff]
    %v3591 = vld [vmem:[#allocation3 + $0x414] sm:$0xff]
    %v3592 = vld [vmem:[#allocation3 + $0x41c] sm:$0xff]
    %v3593 = vld [vmem:[#allocation3 + $0x424] sm:$0xf]
    %v3594 = vld [vmem:[#allocation3 + $0x428] sm:$0xff]
    %v3595 = vld [vmem:[#allocation3 + $0x430] sm:$0xff]
    %v3596 = vld [vmem:[#allocation3 + $0x438] sm:$0xff]
    %v3597 = vld [vmem:[#allocation3 + $0x440] sm:$0xf]
    %v3598 = vld [vmem:[#allocation3 + $0x444] sm:$0xff]
    %v3599 = vld [vmem:[#allocation3 + $0x44c] sm:$0xff]
    %v3600 = vld [vmem:[#allocation3 + $0x454] sm:$0xff]
    %v3601 = vld [vmem:[#allocation3 + $0x45c] sm:$0xf]
    %v3602 = vld [vmem:[#allocation3 + $0x460] sm:$0xff]
    %v3603 = vld [vmem:[#allocation3 + $0x468] sm:$0xff]
    %v3604 = vld [vmem:[#allocation3 + $0x470] sm:$0xff]
    %v3605 = vld [vmem:[#allocation3 + $0x478] sm:$0xf]
    %v3606 = vld [vmem:[#allocation3 + $0x47c] sm:$0xff]
    %v3607 = vld [vmem:[#allocation3 + $0x484] sm:$0xff]
    %v3608 = vld [vmem:[#allocation3 + $0x48c] sm:$0xff]
    %v3609 = vld [vmem:[#allocation3 + $0x494] sm:$0xf]
    %v3610 = vld [vmem:[#allocation3 + $0x498] sm:$0xff]
    %v3611 = vld [vmem:[#allocation3 + $0x4a0] sm:$0xff]
    %v3612 = vld [vmem:[#allocation3 + $0x4a8] sm:$0xff]
    %v3613 = vld [vmem:[#allocation3 + $0x4b0] sm:$0xf]
    %v3614 = vld [vmem:[#allocation3 + $0x4b4] sm:$0xff]
    %v3615 = vld [vmem:[#allocation3 + $0x4bc] sm:$0xff]
    %v3616 = vld [vmem:[#allocation3 + $0x4c4] sm:$0xff]
    %v3617 = vld [vmem:[#allocation3 + $0x4cc] sm:$0xf]
    %v3618 = vld [vmem:[#allocation3 + $0x4d0] sm:$0xff]
    %v3619 = vld [vmem:[#allocation3 + $0x4d8] sm:$0xff]
    %v3620 = vld [vmem:[#allocation3 + $0x4e0] sm:$0xff]
    %v3621 = vld [vmem:[#allocation3 + $0x4e8] sm:$0xf]
    %v3622 = vld [vmem:[#allocation3 + $0x4ec] sm:$0xff]
    %v3623 = vld [vmem:[#allocation3 + $0x4f4] sm:$0xff]
    %v3624 = vld [vmem:[#allocation3 + $0x4fc] sm:$0xff]
    %v3625 = vld [vmem:[#allocation3 + $0x504] sm:$0xf]
    %v3626 = vld [vmem:[#allocation3 + $0x508] sm:$0xff]
    %v3627 = vld [vmem:[#allocation3 + $0x510] sm:$0xff]
    %v3628 = vld [vmem:[#allocation3 + $0x518] sm:$0xff]
    %v3629 = vld [vmem:[#allocation3 + $0x520] sm:$0xf]
    %v3630 = vld [vmem:[#allocation3 + $0x524] sm:$0xff]
    %v3631 = vld [vmem:[#allocation3 + $0x52c] sm:$0xff]
    %v3632 = vld [vmem:[#allocation3 + $0x534] sm:$0xff]
    %v3633 = vld [vmem:[#allocation3 + $0x53c] sm:$0xf]
    %v3634 = vld [vmem:[#allocation3 + $0x540] sm:$0xff]
    %v3635 = vld [vmem:[#allocation3 + $0x548] sm:$0xff]
    %v3636 = vld [vmem:[#allocation3 + $0x550] sm:$0xff]
    %v3637 = vld [vmem:[#allocation3 + $0x558] sm:$0xf]
    %v3638 = vld [vmem:[#allocation3 + $0x55c] sm:$0xff]
    %v3639 = vld [vmem:[#allocation3 + $0x564] sm:$0xff]
    %v3640 = vld [vmem:[#allocation3 + $0x56c] sm:$0xff]
    %v3641 = vld [vmem:[#allocation3 + $0x574] sm:$0xf]
    %v3642 = vld [vmem:[#allocation3 + $0x578] sm:$0xff]
    %v3643 = vld [vmem:[#allocation3 + $0x580] sm:$0xff]
    %v3644 = vld [vmem:[#allocation3 + $0x588] sm:$0xff]
    %v3645 = vld [vmem:[#allocation3 + $0x590] sm:$0xf]
    %v3646 = vld [vmem:[#allocation3 + $0x594] sm:$0xff]
    %v3647 = vld [vmem:[#allocation3 + $0x59c] sm:$0xff]
    %v3648 = vld [vmem:[#allocation3 + $0x5a4] sm:$0xff]
    %v3649 = vld [vmem:[#allocation3 + $0x5ac] sm:$0xf]
    %v3650 = vld [vmem:[#allocation3 + $0x5b0] sm:$0xff]
    %v3651 = vld [vmem:[#allocation3 + $0x5b8] sm:$0xff]
    %v3652 = vld [vmem:[#allocation3 + $0x5c0] sm:$0xff]
    %v3653 = vld [vmem:[#allocation3 + $0x5c8] sm:$0xf]
    %v3654 = vld [vmem:[#allocation3 + $0x5cc] sm:$0xff]
    %v3655 = vld [vmem:[#allocation3 + $0x5d4] sm:$0xff]
    %v3656 = vld [vmem:[#allocation3 + $0x5dc] sm:$0xff]
    %v3657 = vld [vmem:[#allocation3 + $0x5e4] sm:$0xf]
    %v3658 = vld [vmem:[#allocation3 + $0x5e8] sm:$0xff]
    %v3659 = vld [vmem:[#allocation3 + $0x5f0] sm:$0xff]
    %v3660 = vld [vmem:[#allocation3 + $0x5f8] sm:$0xff]
    %v3661 = vld [vmem:[#allocation3 + $0x600] sm:$0xf]
    %v3662 = vld [vmem:[#allocation3 + $0x604] sm:$0xff]
    %v3663 = vld [vmem:[#allocation3 + $0x60c] sm:$0xff]
    %v3664 = vld [vmem:[#allocation3 + $0x614] sm:$0xff]
    %v3665 = vld [vmem:[#allocation3 + $0x61c] sm:$0xf]
    %v3666 = vld [vmem:[#allocation3 + $0x620] sm:$0xff]
    %v3667 = vld [vmem:[#allocation3 + $0x628] sm:$0xff]
    %v3668 = vld [vmem:[#allocation3 + $0x630] sm:$0xff]
    %v3669 = vld [vmem:[#allocation3 + $0x638] sm:$0xf]
    %v3670 = vld [vmem:[#allocation3 + $0x63c] sm:$0xff]
    %v3671 = vld [vmem:[#allocation3 + $0x644] sm:$0xff]
    %v3672 = vld [vmem:[#allocation3 + $0x64c] sm:$0xff]
    %v3673 = vld [vmem:[#allocation3 + $0x654] sm:$0xf]
    %v3674 = vld [vmem:[#allocation3 + $0x658] sm:$0xff]
    %v3675 = vld [vmem:[#allocation3 + $0x660] sm:$0xff]
    %v3676 = vld [vmem:[#allocation3 + $0x668] sm:$0xff]
    %v3677 = vld [vmem:[#allocation3 + $0x670] sm:$0xf]
    %v3678 = vld [vmem:[#allocation3 + $0x674] sm:$0xff]
    %v3679 = vld [vmem:[#allocation3 + $0x67c] sm:$0xff]
    %v3680 = vld [vmem:[#allocation3 + $0x684] sm:$0xff]
    %v3681 = vld [vmem:[#allocation3 + $0x68c] sm:$0xf]
    %v3682 = vld [vmem:[#allocation3 + $0x690] sm:$0xff]
    %v3683 = vld [vmem:[#allocation3 + $0x698] sm:$0xff]
    %v3684 = vld [vmem:[#allocation3 + $0x6a0] sm:$0xff]
    %v3685 = vld [vmem:[#allocation3 + $0x6a8] sm:$0xf]
    %v3686 = vld [vmem:[#allocation3 + $0x6ac] sm:$0xff]
    %v3687 = vld [vmem:[#allocation3 + $0x6b4] sm:$0xff]
    %v3688 = vld [vmem:[#allocation3 + $0x6bc] sm:$0xff]
    %v3689 = vld [vmem:[#allocation3 + $0x6c4] sm:$0xf]
    %v3690 = vld [vmem:[#allocation3 + $0x6c8] sm:$0xff]
    %v3691 = vld [vmem:[#allocation3 + $0x6d0] sm:$0xff]
    %v3692 = vld [vmem:[#allocation3 + $0x6d8] sm:$0xff]
    %v3693 = vld [vmem:[#allocation3 + $0x6e0] sm:$0xf]
    %v3694 = vld [vmem:[#allocation3 + $0x6e4] sm:$0xff]
    %v3695 = vld [vmem:[#allocation3 + $0x6ec] sm:$0xff]
    %v3696 = vld [vmem:[#allocation3 + $0x6f4] sm:$0xff]
    %v3697 = vld [vmem:[#allocation3 + $0x6fc] sm:$0xf]
    %v3698 = vld [vmem:[#allocation3 + $0x700] sm:$0xff]
    %v3699 = vld [vmem:[#allocation3 + $0x708] sm:$0xff]
    %v3700 = vld [vmem:[#allocation3 + $0x710] sm:$0xff]
    %v3701 = vld [vmem:[#allocation3 + $0x718] sm:$0xf]
    %v3702 = vld [vmem:[#allocation3 + $0x71c] sm:$0xff]
    %v3703 = vld [vmem:[#allocation3 + $0x724] sm:$0xff]
    %v3704 = vld [vmem:[#allocation3 + $0x72c] sm:$0xff]
    %v3705 = vld [vmem:[#allocation3 + $0x734] sm:$0xf]
    %v3706 = vld [vmem:[#allocation3 + $0x738] sm:$0xff]
    %v3707 = vld [vmem:[#allocation3 + $0x740] sm:$0xff]
    %v3708 = vld [vmem:[#allocation3 + $0x748] sm:$0xff]
    %v3709 = vld [vmem:[#allocation3 + $0x750] sm:$0xf]
    %v3710 = vld [vmem:[#allocation3 + $0x754] sm:$0xff]
    %v3711 = vld [vmem:[#allocation3 + $0x75c] sm:$0xff]
    %v3712 = vld [vmem:[#allocation3 + $0x764] sm:$0xff]
    %v3713 = vld [vmem:[#allocation3 + $0x76c] sm:$0xf]
    %v3714 = vld [vmem:[#allocation3 + $0x770] sm:$0xff]
    %v3715 = vld [vmem:[#allocation3 + $0x778] sm:$0xff]
    %v3716 = vld [vmem:[#allocation3 + $0x780] sm:$0xff]
    %v3717 = vld [vmem:[#allocation3 + $0x788] sm:$0xf]
    %v3718 = vld [vmem:[#allocation3 + $0x78c] sm:$0xff]
    %v3719 = vld [vmem:[#allocation3 + $0x794] sm:$0xff]
    %v3720 = vld [vmem:[#allocation3 + $0x79c] sm:$0xff]
    %v3721 = vld [vmem:[#allocation3 + $0x7a4] sm:$0xf]
    %v3722 = vld [vmem:[#allocation3 + $0x7a8] sm:$0xff]
    %v3723 = vld [vmem:[#allocation3 + $0x7b0] sm:$0xff]
    %v3724 = vld [vmem:[#allocation3 + $0x7b8] sm:$0xff]
    %v3725 = vld [vmem:[#allocation3 + $0x7c0] sm:$0xf]
    %v3726 = vld [vmem:[#allocation3 + $0x7c4] sm:$0xff]
    %v3727 = vld [vmem:[#allocation3 + $0x7cc] sm:$0xff]
    %v3728 = vld [vmem:[#allocation3 + $0x7d4] sm:$0xff]
    %v3729 = vld [vmem:[#allocation3 + $0x7dc] sm:$0xf]
    %v3730 = vld [vmem:[#allocation3 + $0x7e0] sm:$0xff]
    %v3731 = vld [vmem:[#allocation3 + $0x7e8] sm:$0xff]
    %v3732 = vld [vmem:[#allocation3 + $0x7f0] sm:$0xff]
    %v3733 = vld [vmem:[#allocation3 + $0x7f8] sm:$0xf]
    %v3734 = vld [vmem:[#allocation3 + $0x7fc] sm:$0xff]
    %v3735 = vld [vmem:[#allocation3 + $0x804] sm:$0xff]
    %v3736 = vld [vmem:[#allocation3 + $0x80c] sm:$0xff]
    %v3737 = vld [vmem:[#allocation3 + $0x814] sm:$0xf]
    %v3738 = vld [vmem:[#allocation3 + $0x818] sm:$0xff]
    %v3739 = vld [vmem:[#allocation3 + $0x820] sm:$0xff]
    %v3740 = vld [vmem:[#allocation3 + $0x828] sm:$0xff]
    %v3741 = vld [vmem:[#allocation3 + $0x830] sm:$0xf]
    %v3742 = vld [vmem:[#allocation3 + $0x834] sm:$0xff]
    %v3743 = vld [vmem:[#allocation3 + $0x83c] sm:$0xff]
    %v3744 = vld [vmem:[#allocation3 + $0x844] sm:$0xff]
    %v3745 = vld [vmem:[#allocation3 + $0x84c] sm:$0xf]
    %v3746 = vld [vmem:[#allocation3 + $0x850] sm:$0xff]
    %v3747 = vld [vmem:[#allocation3 + $0x858] sm:$0xff]
    %v3748 = vld [vmem:[#allocation3 + $0x860] sm:$0xff]
    %v3749 = vld [vmem:[#allocation3 + $0x868] sm:$0xf]
    %v3750 = vld [vmem:[#allocation3 + $0x86c] sm:$0xff]
    %v3751 = vld [vmem:[#allocation3 + $0x874] sm:$0xff]
    %v3752 = vld [vmem:[#allocation3 + $0x87c] sm:$0xff]
    %v3753 = vld [vmem:[#allocation3 + $0x884] sm:$0xf]
    %v3754 = vld [vmem:[#allocation3 + $0x888] sm:$0xff]
    %v3755 = vld [vmem:[#allocation3 + $0x890] sm:$0xff]
    %v3756 = vld [vmem:[#allocation3 + $0x898] sm:$0xff]
    %v3757 = vld [vmem:[#allocation3 + $0x8a0] sm:$0xf]
    %v3758 = vld [vmem:[#allocation3 + $0x8a4] sm:$0xff]
    %v3759 = vld [vmem:[#allocation3 + $0x8ac] sm:$0xff]
    %v3760 = vld [vmem:[#allocation3 + $0x8b4] sm:$0xff]
    %v3761 = vld [vmem:[#allocation3 + $0x8bc] sm:$0xf]
    %v3762 = vld [vmem:[#allocation3 + $0x8c0] sm:$0xff]
    %v3763 = vld [vmem:[#allocation3 + $0x8c8] sm:$0xff]
    %v3764 = vld [vmem:[#allocation3 + $0x8d0] sm:$0xff]
    %v3765 = vld [vmem:[#allocation3 + $0x8d8] sm:$0xf]
    %v3766 = vld [vmem:[#allocation3 + $0x8dc] sm:$0xff]
    %v3767 = vld [vmem:[#allocation3 + $0x8e4] sm:$0xff]
    %v3768 = vld [vmem:[#allocation3 + $0x8ec] sm:$0xff]
    %v3769 = vld [vmem:[#allocation3 + $0x8f4] sm:$0xf]
    %v3770 = vld [vmem:[#allocation3 + $0x8f8] sm:$0xff]
    %v3771 = vld [vmem:[#allocation3 + $0x900] sm:$0xff]
    %v3772 = vld [vmem:[#allocation3 + $0x908] sm:$0xff]
    %v3773 = vld [vmem:[#allocation3 + $0x910] sm:$0xf]
    %v3774 = vld [vmem:[#allocation3 + $0x914] sm:$0xff]
    %v3775 = vld [vmem:[#allocation3 + $0x91c] sm:$0xff]
    %v3776 = vld [vmem:[#allocation3 + $0x924] sm:$0xff]
    %v3777 = vld [vmem:[#allocation3 + $0x92c] sm:$0xf]
    %v3778 = vld [vmem:[#allocation3 + $0x930] sm:$0xff]
    %v3779 = vld [vmem:[#allocation3 + $0x938] sm:$0xff]
    %v3780 = vld [vmem:[#allocation3 + $0x940] sm:$0xff]
    %v3781 = vld [vmem:[#allocation3 + $0x948] sm:$0xf]
    %v3782 = vld [vmem:[#allocation3 + $0x94c] sm:$0xff]
    %v3783 = vld [vmem:[#allocation3 + $0x954] sm:$0xff]
    %v3784 = vld [vmem:[#allocation3 + $0x95c] sm:$0xff]
    %v3785 = vld [vmem:[#allocation3 + $0x964] sm:$0xf]
    %v3786 = vld [vmem:[#allocation3 + $0x968] sm:$0xff]
    %v3787 = vld [vmem:[#allocation3 + $0x970] sm:$0xff]
    %v3788 = vld [vmem:[#allocation3 + $0x978] sm:$0xff]
    %v3789 = vld [vmem:[#allocation3 + $0x980] sm:$0xf]
    %v3790 = vld [vmem:[#allocation3 + $0x984] sm:$0xff]
    %v3791 = vld [vmem:[#allocation3 + $0x98c] sm:$0xff]
    %v3792 = vld [vmem:[#allocation3 + $0x994] sm:$0xff]
    %v3793 = vld [vmem:[#allocation3 + $0x99c] sm:$0xf]
    %v3794 = vld [vmem:[#allocation3 + $0x9a0] sm:$0xff]
    %v3795 = vld [vmem:[#allocation3 + $0x9a8] sm:$0xff]
    %v3796 = vld [vmem:[#allocation3 + $0x9b0] sm:$0xff]
    %v3797 = vld [vmem:[#allocation3 + $0x9b8] sm:$0xf]
    %v3798 = vld [vmem:[#allocation3 + $0x9bc] sm:$0xff]
    %v3799 = vld [vmem:[#allocation3 + $0x9c4] sm:$0xff]
    %v3800 = vld [vmem:[#allocation3 + $0x9cc] sm:$0xff]
    %v3801 = vld [vmem:[#allocation3 + $0x9d4] sm:$0xf]
    %v3802 = vld [vmem:[#allocation3 + $0x9d8] sm:$0xff]
    %v3803 = vld [vmem:[#allocation3 + $0x9e0] sm:$0xff]
    %v3804 = vld [vmem:[#allocation3 + $0x9e8] sm:$0xff]
    %v3805 = vld [vmem:[#allocation3 + $0x9f0] sm:$0xf]
    %v3806 = vld [vmem:[#allocation3 + $0x9f4] sm:$0xff]
    %v3807 = vld [vmem:[#allocation3 + $0x9fc] sm:$0xff]
    %v3808 = vld [vmem:[#allocation3 + $0xa04] sm:$0xff]
    %v3809 = vld [vmem:[#allocation3 + $0xa0c] sm:$0xf]
    %v3810 = vld [vmem:[#allocation3 + $0xa10] sm:$0xff]
    %v3811 = vld [vmem:[#allocation3 + $0xa18] sm:$0xff]
    %v3812 = vld [vmem:[#allocation3 + $0xa20] sm:$0xff]
    %v3813 = vld [vmem:[#allocation3 + $0xa28] sm:$0xf]
    %v3814 = vld [vmem:[#allocation3 + $0xa2c] sm:$0xff]
    %v3815 = vld [vmem:[#allocation3 + $0xa34] sm:$0xff]
    %v3816 = vld [vmem:[#allocation3 + $0xa3c] sm:$0xff]
    %v3817 = vld [vmem:[#allocation3 + $0xa44] sm:$0xf]
    %v3818 = vld [vmem:[#allocation3 + $0xa48] sm:$0xff]
    %v3819 = vld [vmem:[#allocation3 + $0xa50] sm:$0xff]
    %v3820 = vld [vmem:[#allocation3 + $0xa58] sm:$0xff]
    %v3821 = vld [vmem:[#allocation3 + $0xa60] sm:$0xf]
    %v3822 = vld [vmem:[#allocation3 + $0xa64] sm:$0xff]
    %v3823 = vld [vmem:[#allocation3 + $0xa6c] sm:$0xff]
    %v3824 = vld [vmem:[#allocation3 + $0xa74] sm:$0xff]
    %v3825 = vld [vmem:[#allocation3 + $0xa7c] sm:$0xf]
    %v3826 = vld [vmem:[#allocation3 + $0xa80] sm:$0xff]
    %v3827 = vld [vmem:[#allocation3 + $0xa88] sm:$0xff]
    %v3828 = vld [vmem:[#allocation3 + $0xa90] sm:$0xff]
    %v3829 = vld [vmem:[#allocation3 + $0xa98] sm:$0xf]
    %v3830 = vld [vmem:[#allocation3 + $0xa9c] sm:$0xff]
    %v3831 = vld [vmem:[#allocation3 + $0xaa4] sm:$0xff]
    %v3832 = vld [vmem:[#allocation3 + $0xaac] sm:$0xff]
    %v3833 = vld [vmem:[#allocation3 + $0xab4] sm:$0xf]
    %v3834 = vld [vmem:[#allocation3 + $0xab8] sm:$0xff]
    %v3835 = vld [vmem:[#allocation3 + $0xac0] sm:$0xff]
    %v3836 = vld [vmem:[#allocation3 + $0xac8] sm:$0xff]
    %v3837 = vld [vmem:[#allocation3 + $0xad0] sm:$0xf]
    %v3838 = vld [vmem:[#allocation3 + $0xad4] sm:$0xff]
    %v3839 = vld [vmem:[#allocation3 + $0xadc] sm:$0xff]
    %v3840 = vld [vmem:[#allocation3 + $0xae4] sm:$0xff]
    %v3841 = vld [vmem:[#allocation3 + $0xaec] sm:$0xf]
    %v3842 = vld [vmem:[#allocation3 + $0xaf0] sm:$0xff]
    %v3843 = vld [vmem:[#allocation3 + $0xaf8] sm:$0xff]
    %v3844 = vld [vmem:[#allocation3 + $0xb00] sm:$0xff]
    %v3845 = vld [vmem:[#allocation3 + $0xb08] sm:$0xf]
    %v3846 = vld [vmem:[#allocation3 + $0xb0c] sm:$0xff]
    %v3847 = vld [vmem:[#allocation3 + $0xb14] sm:$0xff]
    %v3848 = vld [vmem:[#allocation3 + $0xb1c] sm:$0xff]
    %v3849 = vld [vmem:[#allocation3 + $0xb24] sm:$0xf]
    %v3850 = vld [vmem:[#allocation3 + $0xb28] sm:$0xff]
    %v3851 = vld [vmem:[#allocation3 + $0xb30] sm:$0xff]
    %v3852 = vld [vmem:[#allocation3 + $0xb38] sm:$0xff]
    %v3853 = vld [vmem:[#allocation3 + $0xb40] sm:$0xf]
    %v3854 = vld [vmem:[#allocation3 + $0xb44] sm:$0xff]
    %v3855 = vld [vmem:[#allocation3 + $0xb4c] sm:$0xff]
    %v3856 = vld [vmem:[#allocation3 + $0xb54] sm:$0xff]
    %v3857 = vld [vmem:[#allocation3 + $0xb5c] sm:$0xf]
    %v3858 = vld [vmem:[#allocation3 + $0xb60] sm:$0xff]
    %v3859 = vld [vmem:[#allocation3 + $0xb68] sm:$0xff]
    %v3860 = vld [vmem:[#allocation3 + $0xb70] sm:$0xff]
    %v3861 = vld [vmem:[#allocation3 + $0xb78] sm:$0xf]
    %v3862 = vld [vmem:[#allocation3 + $0xb7c] sm:$0xff]
    %v3863 = vld [vmem:[#allocation3 + $0xb84] sm:$0xff]
    %v3864 = vld [vmem:[#allocation3 + $0xb8c] sm:$0xff]
    %v3865 = vld [vmem:[#allocation3 + $0xb94] sm:$0xf]
    %v3866 = vld [vmem:[#allocation3 + $0xb98] sm:$0xff]
    %v3867 = vld [vmem:[#allocation3 + $0xba0] sm:$0xff]
    %v3868 = vld [vmem:[#allocation3 + $0xba8] sm:$0xff]
    %v3869 = vld [vmem:[#allocation3 + $0xbb0] sm:$0xf]
    %v3870 = vld [vmem:[#allocation3 + $0xbb4] sm:$0xff]
    %v3871 = vld [vmem:[#allocation3 + $0xbbc] sm:$0xff]
    %v3872 = vld [vmem:[#allocation3 + $0xbc4] sm:$0xff]
    %v3873 = vld [vmem:[#allocation3 + $0xbcc] sm:$0xf]
    %v3874 = vld [vmem:[#allocation3 + $0xbd0] sm:$0xff]
    %v3875 = vld [vmem:[#allocation3 + $0xbd8] sm:$0xff]
    %v3876 = vld [vmem:[#allocation3 + $0xbe0] sm:$0xff]
    %v3877 = vld [vmem:[#allocation3 + $0xbe8] sm:$0xf]
    %v3878 = vld [vmem:[#allocation3 + $0xbec] sm:$0xff]
    %v3879 = vld [vmem:[#allocation3 + $0xbf4] sm:$0xff]
    %v3880 = vld [vmem:[#allocation3 + $0xbfc] sm:$0xff]
    %v3881 = vld [vmem:[#allocation3 + $0xc04] sm:$0xf]
    %v3882 = vld [vmem:[#allocation3 + $0xc08] sm:$0xff]
    %v3883 = vld [vmem:[#allocation3 + $0xc10] sm:$0xff]
    %v3884 = vld [vmem:[#allocation3 + $0xc18] sm:$0xff]
    %v3885 = vld [vmem:[#allocation3 + $0xc20] sm:$0xf]
    %v3886 = vld [vmem:[#allocation3 + $0xc24] sm:$0xff]
    %v3887 = vld [vmem:[#allocation3 + $0xc2c] sm:$0xff]
    %v3888 = vld [vmem:[#allocation3 + $0xc34] sm:$0xff]
    %v3889 = vld [vmem:[#allocation3 + $0xc3c] sm:$0xf]
    %v3890 = vld [vmem:[#allocation3 + $0xc40] sm:$0xff]
    %v3891 = vld [vmem:[#allocation3 + $0xc48] sm:$0xff]
    %v3892 = vld [vmem:[#allocation3 + $0xc50] sm:$0xff]
    %v3893 = vld [vmem:[#allocation3 + $0xc58] sm:$0xf]
    %v3894 = vld [vmem:[#allocation3 + $0xc5c] sm:$0xff]
    %v3895 = vld [vmem:[#allocation3 + $0xc64] sm:$0xff]
    %v3896 = vld [vmem:[#allocation3 + $0xc6c] sm:$0xff]
    %v3897 = vld [vmem:[#allocation3 + $0xc74] sm:$0xf]
    %v3898 = vld [vmem:[#allocation3 + $0xc78] sm:$0xff]
    %v3899 = vld [vmem:[#allocation3 + $0xc80] sm:$0xff]
    %v3900 = vld [vmem:[#allocation3 + $0xc88] sm:$0xff]
    %v3901 = vld [vmem:[#allocation3 + $0xc90] sm:$0xf]
    %v3902 = vld [vmem:[#allocation3 + $0xc94] sm:$0xff]
    %v3903 = vld [vmem:[#allocation3 + $0xc9c] sm:$0xff]
    %v3904 = vld [vmem:[#allocation3 + $0xca4] sm:$0xff]
    %v3905 = vld [vmem:[#allocation3 + $0xcac] sm:$0xf]
    %v3906 = vld [vmem:[#allocation3 + $0xcb0] sm:$0xff]
    %v3907 = vld [vmem:[#allocation3 + $0xcb8] sm:$0xff]
    %v3908 = vld [vmem:[#allocation3 + $0xcc0] sm:$0xff]
    %v3909 = vld [vmem:[#allocation3 + $0xcc8] sm:$0xf]
    %v3910 = vld [vmem:[#allocation3 + $0xccc] sm:$0xff]
    %v3911 = vld [vmem:[#allocation3 + $0xcd4] sm:$0xff]
    %v3912 = vld [vmem:[#allocation3 + $0xcdc] sm:$0xff]
    %v3913 = vld [vmem:[#allocation3 + $0xce4] sm:$0xf]
    %v3914 = vld [vmem:[#allocation3 + $0xce8] sm:$0xff]
    %v3915 = vld [vmem:[#allocation3 + $0xcf0] sm:$0xff]
    %v3916 = vld [vmem:[#allocation3 + $0xcf8] sm:$0xff]
    %v3917 = vld [vmem:[#allocation3 + $0xd00] sm:$0xf]
    %v3918 = vld [vmem:[#allocation3 + $0xd04] sm:$0xff]
    %v3919 = vld [vmem:[#allocation3 + $0xd0c] sm:$0xff]
    %v3920 = vld [vmem:[#allocation3 + $0xd14] sm:$0xff]
    %v3921 = vld [vmem:[#allocation3 + $0xd1c] sm:$0xf]
    %v3922 = vld [vmem:[#allocation3 + $0xd20] sm:$0xff]
    %v3923 = vld [vmem:[#allocation3 + $0xd28] sm:$0xff]
    %v3924 = vld [vmem:[#allocation3 + $0xd30] sm:$0xff]
    %v3925 = vld [vmem:[#allocation3 + $0xd38] sm:$0xf]
    %v3926 = vld [vmem:[#allocation3 + $0xd3c] sm:$0xff]
    %v3927 = vld [vmem:[#allocation3 + $0xd44] sm:$0xff]
    %v3928 = vld [vmem:[#allocation3 + $0xd4c] sm:$0xff]
    %v3929 = vld [vmem:[#allocation3 + $0xd54] sm:$0xf]
    %v3930 = vld [vmem:[#allocation3 + $0xd58] sm:$0xff]
    %v3931 = vld [vmem:[#allocation3 + $0xd60] sm:$0xff]
    %v3932 = vld [vmem:[#allocation3 + $0xd68] sm:$0xff]
    %v3933 = vld [vmem:[#allocation3 + $0xd70] sm:$0xf]
    %v3934 = vld [vmem:[#allocation3 + $0xd74] sm:$0xff]
    %v3935 = vld [vmem:[#allocation3 + $0xd7c] sm:$0xff]
    %v3936 = vld [vmem:[#allocation3 + $0xd84] sm:$0xff]
    %v3937 = vld [vmem:[#allocation3 + $0xd8c] sm:$0xf]
    %v3938 = vld [vmem:[#allocation3 + $0xd90] sm:$0xff]
    %v3939 = vld [vmem:[#allocation3 + $0xd98] sm:$0xff]
    %v3940 = vld [vmem:[#allocation3 + $0xda0] sm:$0xff]
    %v3941 = vld [vmem:[#allocation3 + $0xda8] sm:$0xf]
    %v3942 = vld [vmem:[#allocation3 + $0xdac] sm:$0xff]
    %v3943 = vld [vmem:[#allocation3 + $0xdb4] sm:$0xff]
    %v3944 = vld [vmem:[#allocation3 + $0xdbc] sm:$0xff]
    %v3945 = vld [vmem:[#allocation3 + $0xdc4] sm:$0xf]
    %v3946 = vld [vmem:[#allocation3 + $0xdc8] sm:$0xff]
    %v3947 = vld [vmem:[#allocation3 + $0xdd0] sm:$0xff]
    %v3948 = vld [vmem:[#allocation3 + $0xdd8] sm:$0xff]
    %v3949 = vld [vmem:[#allocation3 + $0xde0] sm:$0xf]
    %v3950 = vld [vmem:[#allocation3 + $0xde4] sm:$0xff]
    %v3951 = vld [vmem:[#allocation3 + $0xdec] sm:$0xff]
    %v3952 = vld [vmem:[#allocation3 + $0xdf4] sm:$0xff]
    %v3953 = vld [vmem:[#allocation3 + $0xdfc] sm:$0xf]
    %v3954 = vpack.c.bf16 %v3430, %v3430
    %v3955 = vpack.c.bf16 %v3431, %v3431
    %v3956 = vpack.c.bf16 %v3432, %v3432
    %v3957 = vpack.c.bf16 %v3433, %v3433
    %v3958 = vpack.c.bf16 %v3434, %v3434
    %v3959 = vpack.c.bf16 %v3435, %v3435
    %v3960 = vpack.c.bf16 %v3436, %v3436
    %v3961 = vpack.c.bf16 %v3437, %v3437
    %v3962 = vld [vmem:[#allocation8 + $0x1d] sm:$0xff]
    %v3964 = vperm.slane %v3962, 0
    %v3965 = vperm.slane %v3962, 1
    %v3966 = vperm.slane %v3962, 2
    %v3967 = vperm.slane %v3962, 3
    %v3968 = vperm.slane %v3962, 4
    %v3969 = vperm.slane %v3962, 5
    %v3970 = vperm.slane %v3962, 6
    %v4490 = vunpack.c.l.b16 %v3442
    %v4491 = vunpack.c.h.b16 %v3442
    %v4492 = vunpack.c.l.b16 %v3443
    %v4493 = vunpack.c.h.b16 %v3443
    %v4494 = vunpack.c.l.b16 %v3444
    %v4495 = vunpack.c.h.b16 %v3444
    %v4496 = vunpack.c.l.b16 %v3445
    %v4497 = vunpack.c.l.b16 %v3446
    %v4498 = vunpack.c.h.b16 %v3446
    %v4499 = vunpack.c.l.b16 %v3447
    %v4500 = vunpack.c.h.b16 %v3447
    %v4501 = vunpack.c.l.b16 %v3448
    %v4502 = vunpack.c.h.b16 %v3448
    %v4503 = vunpack.c.l.b16 %v3449
    %v4504 = vunpack.c.l.b16 %v3450
    %v4505 = vunpack.c.h.b16 %v3450
    %v4506 = vunpack.c.l.b16 %v3451
    %v4507 = vunpack.c.h.b16 %v3451
    %v4508 = vunpack.c.l.b16 %v3452
    %v4509 = vunpack.c.h.b16 %v3452
    %v4510 = vunpack.c.l.b16 %v3453
    %v4511 = vunpack.c.l.b16 %v3454
    %v4512 = vunpack.c.h.b16 %v3454
    %v4513 = vunpack.c.l.b16 %v3455
    %v4514 = vunpack.c.h.b16 %v3455
    %v4515 = vunpack.c.l.b16 %v3456
    %v4516 = vunpack.c.h.b16 %v3456
    %v4517 = vunpack.c.l.b16 %v3457
    %v4518 = vunpack.c.l.b16 %v3458
    %v4519 = vunpack.c.h.b16 %v3458
    %v4520 = vunpack.c.l.b16 %v3459
    %v4521 = vunpack.c.h.b16 %v3459
    %v4522 = vunpack.c.l.b16 %v3460
    %v4523 = vunpack.c.h.b16 %v3460
    %v4524 = vunpack.c.l.b16 %v3461
    %v4525 = vunpack.c.l.b16 %v3462
    %v4526 = vunpack.c.h.b16 %v3462
    %v4527 = vunpack.c.l.b16 %v3463
    %v4528 = vunpack.c.h.b16 %v3463
    %v4529 = vunpack.c.l.b16 %v3464
    %v4530 = vunpack.c.h.b16 %v3464
    %v4531 = vunpack.c.l.b16 %v3465
    %v4532 = vunpack.c.l.b16 %v3466
    %v4533 = vunpack.c.h.b16 %v3466
    %v4534 = vunpack.c.l.b16 %v3467
    %v4535 = vunpack.c.h.b16 %v3467
    %v4536 = vunpack.c.l.b16 %v3468
    %v4537 = vunpack.c.h.b16 %v3468
    %v4538 = vunpack.c.l.b16 %v3469
    %v4539 = vunpack.c.l.b16 %v3470
    %v4540 = vunpack.c.h.b16 %v3470
    %v4541 = vunpack.c.l.b16 %v3471
    %v4542 = vunpack.c.h.b16 %v3471
    %v4543 = vunpack.c.l.b16 %v3472
    %v4544 = vunpack.c.h.b16 %v3472
    %v4545 = vunpack.c.l.b16 %v3473
    %v4546 = vunpack.c.l.b16 %v3474
    %v4547 = vunpack.c.h.b16 %v3474
    %v4548 = vunpack.c.l.b16 %v3475
    %v4549 = vunpack.c.h.b16 %v3475
    %v4550 = vunpack.c.l.b16 %v3476
    %v4551 = vunpack.c.h.b16 %v3476
    %v4552 = vunpack.c.l.b16 %v3477
    %v4553 = vunpack.c.l.b16 %v3478
    %v4554 = vunpack.c.h.b16 %v3478
    %v4555 = vunpack.c.l.b16 %v3479
    %v4556 = vunpack.c.h.b16 %v3479
    %v4557 = vunpack.c.l.b16 %v3480
    %v4558 = vunpack.c.h.b16 %v3480
    %v4559 = vunpack.c.l.b16 %v3481
    %v4560 = vunpack.c.l.b16 %v3482
    %v4561 = vunpack.c.h.b16 %v3482
    %v4562 = vunpack.c.l.b16 %v3483
    %v4563 = vunpack.c.h.b16 %v3483
    %v4564 = vunpack.c.l.b16 %v3484
    %v4565 = vunpack.c.h.b16 %v3484
    %v4566 = vunpack.c.l.b16 %v3485
    %v4567 = vunpack.c.l.b16 %v3486
    %v4568 = vunpack.c.h.b16 %v3486
    %v4569 = vunpack.c.l.b16 %v3487
    %v4570 = vunpack.c.h.b16 %v3487
    %v4571 = vunpack.c.l.b16 %v3488
    %v4572 = vunpack.c.h.b16 %v3488
    %v4573 = vunpack.c.l.b16 %v3489
    %v4574 = vunpack.c.l.b16 %v3490
    %v4575 = vunpack.c.h.b16 %v3490
    %v4576 = vunpack.c.l.b16 %v3491
    %v4577 = vunpack.c.h.b16 %v3491
    %v4578 = vunpack.c.l.b16 %v3492
    %v4579 = vunpack.c.h.b16 %v3492
    %v4580 = vunpack.c.l.b16 %v3493
    %v4581 = vunpack.c.l.b16 %v3494
    %v4582 = vunpack.c.h.b16 %v3494
    %v4583 = vunpack.c.l.b16 %v3495
    %v4584 = vunpack.c.h.b16 %v3495
    %v4585 = vunpack.c.l.b16 %v3496
    %v4586 = vunpack.c.h.b16 %v3496
    %v4587 = vunpack.c.l.b16 %v3497
    %v4588 = vunpack.c.l.b16 %v3498
    %v4589 = vunpack.c.h.b16 %v3498
    %v4590 = vunpack.c.l.b16 %v3499
    %v4591 = vunpack.c.h.b16 %v3499
    %v4592 = vunpack.c.l.b16 %v3500
    %v4593 = vunpack.c.h.b16 %v3500
    %v4594 = vunpack.c.l.b16 %v3501
    %v4595 = vunpack.c.l.b16 %v3502
    %v4596 = vunpack.c.h.b16 %v3502
    %v4597 = vunpack.c.l.b16 %v3503
    %v4598 = vunpack.c.h.b16 %v3503
    %v4599 = vunpack.c.l.b16 %v3504
    %v4600 = vunpack.c.h.b16 %v3504
    %v4601 = vunpack.c.l.b16 %v3505
    %v4602 = vunpack.c.l.b16 %v3506
    %v4603 = vunpack.c.h.b16 %v3506
    %v4604 = vunpack.c.l.b16 %v3507
    %v4605 = vunpack.c.h.b16 %v3507
    %v4606 = vunpack.c.l.b16 %v3508
    %v4607 = vunpack.c.h.b16 %v3508
    %v4608 = vunpack.c.l.b16 %v3509
    %v4609 = vunpack.c.l.b16 %v3510
    %v4610 = vunpack.c.h.b16 %v3510
    %v4611 = vunpack.c.l.b16 %v3511
    %v4612 = vunpack.c.h.b16 %v3511
    %v4613 = vunpack.c.l.b16 %v3512
    %v4614 = vunpack.c.h.b16 %v3512
    %v4615 = vunpack.c.l.b16 %v3513
    %v4616 = vunpack.c.l.b16 %v3514
    %v4617 = vunpack.c.h.b16 %v3514
    %v4618 = vunpack.c.l.b16 %v3515
    %v4619 = vunpack.c.h.b16 %v3515
    %v4620 = vunpack.c.l.b16 %v3516
    %v4621 = vunpack.c.h.b16 %v3516
    %v4622 = vunpack.c.l.b16 %v3517
    %v4623 = vunpack.c.l.b16 %v3518
    %v4624 = vunpack.c.h.b16 %v3518
    %v4625 = vunpack.c.l.b16 %v3519
    %v4626 = vunpack.c.h.b16 %v3519
    %v4627 = vunpack.c.l.b16 %v3520
    %v4628 = vunpack.c.h.b16 %v3520
    %v4629 = vunpack.c.l.b16 %v3521
    %v4630 = vunpack.c.l.b16 %v3522
    %v4631 = vunpack.c.h.b16 %v3522
    %v4632 = vunpack.c.l.b16 %v3523
    %v4633 = vunpack.c.h.b16 %v3523
    %v4634 = vunpack.c.l.b16 %v3524
    %v4635 = vunpack.c.h.b16 %v3524
    %v4636 = vunpack.c.l.b16 %v3525
    %v4637 = vunpack.c.l.b16 %v3526
    %v4638 = vunpack.c.h.b16 %v3526
    %v4639 = vunpack.c.l.b16 %v3527
    %v4640 = vunpack.c.h.b16 %v3527
    %v4641 = vunpack.c.l.b16 %v3528
    %v4642 = vunpack.c.h.b16 %v3528
    %v4643 = vunpack.c.l.b16 %v3529
    %v4644 = vunpack.c.l.b16 %v3530
    %v4645 = vunpack.c.h.b16 %v3530
    %v4646 = vunpack.c.l.b16 %v3531
    %v4647 = vunpack.c.h.b16 %v3531
    %v4648 = vunpack.c.l.b16 %v3532
    %v4649 = vunpack.c.h.b16 %v3532
    %v4650 = vunpack.c.l.b16 %v3533
    %v4651 = vunpack.c.l.b16 %v3534
    %v4652 = vunpack.c.h.b16 %v3534
    %v4653 = vunpack.c.l.b16 %v3535
    %v4654 = vunpack.c.h.b16 %v3535
    %v4655 = vunpack.c.l.b16 %v3536
    %v4656 = vunpack.c.h.b16 %v3536
    %v4657 = vunpack.c.l.b16 %v3537
    %v4658 = vunpack.c.l.b16 %v3538
    %v4659 = vunpack.c.h.b16 %v3538
    %v4660 = vunpack.c.l.b16 %v3539
    %v4661 = vunpack.c.h.b16 %v3539
    %v4662 = vunpack.c.l.b16 %v3540
    %v4663 = vunpack.c.h.b16 %v3540
    %v4664 = vunpack.c.l.b16 %v3541
    %v4665 = vunpack.c.l.b16 %v3542
    %v4666 = vunpack.c.h.b16 %v3542
    %v4667 = vunpack.c.l.b16 %v3543
    %v4668 = vunpack.c.h.b16 %v3543
    %v4669 = vunpack.c.l.b16 %v3544
    %v4670 = vunpack.c.h.b16 %v3544
    %v4671 = vunpack.c.l.b16 %v3545
    %v4672 = vunpack.c.l.b16 %v3546
    %v4673 = vunpack.c.h.b16 %v3546
    %v4674 = vunpack.c.l.b16 %v3547
    %v4675 = vunpack.c.h.b16 %v3547
    %v4676 = vunpack.c.l.b16 %v3548
    %v4677 = vunpack.c.h.b16 %v3548
    %v4678 = vunpack.c.l.b16 %v3549
    %v4679 = vunpack.c.l.b16 %v3550
    %v4680 = vunpack.c.h.b16 %v3550
    %v4681 = vunpack.c.l.b16 %v3551
    %v4682 = vunpack.c.h.b16 %v3551
    %v4683 = vunpack.c.l.b16 %v3552
    %v4684 = vunpack.c.h.b16 %v3552
    %v4685 = vunpack.c.l.b16 %v3553
    %v4686 = vunpack.c.l.b16 %v3554
    %v4687 = vunpack.c.h.b16 %v3554
    %v4688 = vunpack.c.l.b16 %v3555
    %v4689 = vunpack.c.h.b16 %v3555
    %v4690 = vunpack.c.l.b16 %v3556
    %v4691 = vunpack.c.h.b16 %v3556
    %v4692 = vunpack.c.l.b16 %v3557
    %v4693 = vunpack.c.l.b16 %v3558
    %v4694 = vunpack.c.h.b16 %v3558
    %v4695 = vunpack.c.l.b16 %v3559
    %v4696 = vunpack.c.h.b16 %v3559
    %v4697 = vunpack.c.l.b16 %v3560
    %v4698 = vunpack.c.h.b16 %v3560
    %v4699 = vunpack.c.l.b16 %v3561
    %v4700 = vunpack.c.l.b16 %v3562
    %v4701 = vunpack.c.h.b16 %v3562
    %v4702 = vunpack.c.l.b16 %v3563
    %v4703 = vunpack.c.h.b16 %v3563
    %v4704 = vunpack.c.l.b16 %v3564
    %v4705 = vunpack.c.h.b16 %v3564
    %v4706 = vunpack.c.l.b16 %v3565
    %v4707 = vunpack.c.l.b16 %v3566
    %v4708 = vunpack.c.h.b16 %v3566
    %v4709 = vunpack.c.l.b16 %v3567
    %v4710 = vunpack.c.h.b16 %v3567
    %v4711 = vunpack.c.l.b16 %v3568
    %v4712 = vunpack.c.h.b16 %v3568
    %v4713 = vunpack.c.l.b16 %v3569
    %v4714 = vunpack.c.l.b16 %v3570
    %v4715 = vunpack.c.h.b16 %v3570
    %v4716 = vunpack.c.l.b16 %v3571
    %v4717 = vunpack.c.h.b16 %v3571
    %v4718 = vunpack.c.l.b16 %v3572
    %v4719 = vunpack.c.h.b16 %v3572
    %v4720 = vunpack.c.l.b16 %v3573
    %v4721 = vunpack.c.l.b16 %v3574
    %v4722 = vunpack.c.h.b16 %v3574
    %v4723 = vunpack.c.l.b16 %v3575
    %v4724 = vunpack.c.h.b16 %v3575
    %v4725 = vunpack.c.l.b16 %v3576
    %v4726 = vunpack.c.h.b16 %v3576
    %v4727 = vunpack.c.l.b16 %v3577
    %v4728 = vunpack.c.l.b16 %v3578
    %v4729 = vunpack.c.h.b16 %v3578
    %v4730 = vunpack.c.l.b16 %v3579
    %v4731 = vunpack.c.h.b16 %v3579
    %v4732 = vunpack.c.l.b16 %v3580
    %v4733 = vunpack.c.h.b16 %v3580
    %v4734 = vunpack.c.l.b16 %v3581
    %v4735 = vunpack.c.l.b16 %v3582
    %v4736 = vunpack.c.h.b16 %v3582
    %v4737 = vunpack.c.l.b16 %v3583
    %v4738 = vunpack.c.h.b16 %v3583
    %v4739 = vunpack.c.l.b16 %v3584
    %v4740 = vunpack.c.h.b16 %v3584
    %v4741 = vunpack.c.l.b16 %v3585
    %v4742 = vunpack.c.l.b16 %v3586
    %v4743 = vunpack.c.h.b16 %v3586
    %v4744 = vunpack.c.l.b16 %v3587
    %v4745 = vunpack.c.h.b16 %v3587
    %v4746 = vunpack.c.l.b16 %v3588
    %v4747 = vunpack.c.h.b16 %v3588
    %v4748 = vunpack.c.l.b16 %v3589
    %v4749 = vunpack.c.l.b16 %v3590
    %v4750 = vunpack.c.h.b16 %v3590
    %v4751 = vunpack.c.l.b16 %v3591
    %v4752 = vunpack.c.h.b16 %v3591
    %v4753 = vunpack.c.l.b16 %v3592
    %v4754 = vunpack.c.h.b16 %v3592
    %v4755 = vunpack.c.l.b16 %v3593
    %v4756 = vunpack.c.l.b16 %v3594
    %v4757 = vunpack.c.h.b16 %v3594
    %v4758 = vunpack.c.l.b16 %v3595
    %v4759 = vunpack.c.h.b16 %v3595
    %v4760 = vunpack.c.l.b16 %v3596
    %v4761 = vunpack.c.h.b16 %v3596
    %v4762 = vunpack.c.l.b16 %v3597
    %v4763 = vunpack.c.l.b16 %v3598
    %v4764 = vunpack.c.h.b16 %v3598
    %v4765 = vunpack.c.l.b16 %v3599
    %v4766 = vunpack.c.h.b16 %v3599
    %v4767 = vunpack.c.l.b16 %v3600
    %v4768 = vunpack.c.h.b16 %v3600
    %v4769 = vunpack.c.l.b16 %v3601
    %v4770 = vunpack.c.l.b16 %v3602
    %v4771 = vunpack.c.h.b16 %v3602
    %v4772 = vunpack.c.l.b16 %v3603
    %v4773 = vunpack.c.h.b16 %v3603
    %v4774 = vunpack.c.l.b16 %v3604
    %v4775 = vunpack.c.h.b16 %v3604
    %v4776 = vunpack.c.l.b16 %v3605
    %v4777 = vunpack.c.l.b16 %v3606
    %v4778 = vunpack.c.h.b16 %v3606
    %v4779 = vunpack.c.l.b16 %v3607
    %v4780 = vunpack.c.h.b16 %v3607
    %v4781 = vunpack.c.l.b16 %v3608
    %v4782 = vunpack.c.h.b16 %v3608
    %v4783 = vunpack.c.l.b16 %v3609
    %v4784 = vunpack.c.l.b16 %v3610
    %v4785 = vunpack.c.h.b16 %v3610
    %v4786 = vunpack.c.l.b16 %v3611
    %v4787 = vunpack.c.h.b16 %v3611
    %v4788 = vunpack.c.l.b16 %v3612
    %v4789 = vunpack.c.h.b16 %v3612
    %v4790 = vunpack.c.l.b16 %v3613
    %v4791 = vunpack.c.l.b16 %v3614
    %v4792 = vunpack.c.h.b16 %v3614
    %v4793 = vunpack.c.l.b16 %v3615
    %v4794 = vunpack.c.h.b16 %v3615
    %v4795 = vunpack.c.l.b16 %v3616
    %v4796 = vunpack.c.h.b16 %v3616
    %v4797 = vunpack.c.l.b16 %v3617
    %v4798 = vunpack.c.l.b16 %v3618
    %v4799 = vunpack.c.h.b16 %v3618
    %v4800 = vunpack.c.l.b16 %v3619
    %v4801 = vunpack.c.h.b16 %v3619
    %v4802 = vunpack.c.l.b16 %v3620
    %v4803 = vunpack.c.h.b16 %v3620
    %v4804 = vunpack.c.l.b16 %v3621
    %v4805 = vunpack.c.l.b16 %v3622
    %v4806 = vunpack.c.h.b16 %v3622
    %v4807 = vunpack.c.l.b16 %v3623
    %v4808 = vunpack.c.h.b16 %v3623
    %v4809 = vunpack.c.l.b16 %v3624
    %v4810 = vunpack.c.h.b16 %v3624
    %v4811 = vunpack.c.l.b16 %v3625
    %v4812 = vunpack.c.l.b16 %v3626
    %v4813 = vunpack.c.h.b16 %v3626
    %v4814 = vunpack.c.l.b16 %v3627
    %v4815 = vunpack.c.h.b16 %v3627
    %v4816 = vunpack.c.l.b16 %v3628
    %v4817 = vunpack.c.h.b16 %v3628
    %v4818 = vunpack.c.l.b16 %v3629
    %v4819 = vunpack.c.l.b16 %v3630
    %v4820 = vunpack.c.h.b16 %v3630
    %v4821 = vunpack.c.l.b16 %v3631
    %v4822 = vunpack.c.h.b16 %v3631
    %v4823 = vunpack.c.l.b16 %v3632
    %v4824 = vunpack.c.h.b16 %v3632
    %v4825 = vunpack.c.l.b16 %v3633
    %v4826 = vunpack.c.l.b16 %v3634
    %v4827 = vunpack.c.h.b16 %v3634
    %v4828 = vunpack.c.l.b16 %v3635
    %v4829 = vunpack.c.h.b16 %v3635
    %v4830 = vunpack.c.l.b16 %v3636
    %v4831 = vunpack.c.h.b16 %v3636
    %v4832 = vunpack.c.l.b16 %v3637
    %v4833 = vunpack.c.l.b16 %v3638
    %v4834 = vunpack.c.h.b16 %v3638
    %v4835 = vunpack.c.l.b16 %v3639
    %v4836 = vunpack.c.h.b16 %v3639
    %v4837 = vunpack.c.l.b16 %v3640
    %v4838 = vunpack.c.h.b16 %v3640
    %v4839 = vunpack.c.l.b16 %v3641
    %v4840 = vunpack.c.l.b16 %v3642
    %v4841 = vunpack.c.h.b16 %v3642
    %v4842 = vunpack.c.l.b16 %v3643
    %v4843 = vunpack.c.h.b16 %v3643
    %v4844 = vunpack.c.l.b16 %v3644
    %v4845 = vunpack.c.h.b16 %v3644
    %v4846 = vunpack.c.l.b16 %v3645
    %v4847 = vunpack.c.l.b16 %v3646
    %v4848 = vunpack.c.h.b16 %v3646
    %v4849 = vunpack.c.l.b16 %v3647
    %v4850 = vunpack.c.h.b16 %v3647
    %v4851 = vunpack.c.l.b16 %v3648
    %v4852 = vunpack.c.h.b16 %v3648
    %v4853 = vunpack.c.l.b16 %v3649
    %v4854 = vunpack.c.l.b16 %v3650
    %v4855 = vunpack.c.h.b16 %v3650
    %v4856 = vunpack.c.l.b16 %v3651
    %v4857 = vunpack.c.h.b16 %v3651
    %v4858 = vunpack.c.l.b16 %v3652
    %v4859 = vunpack.c.h.b16 %v3652
    %v4860 = vunpack.c.l.b16 %v3653
    %v4861 = vunpack.c.l.b16 %v3654
    %v4862 = vunpack.c.h.b16 %v3654
    %v4863 = vunpack.c.l.b16 %v3655
    %v4864 = vunpack.c.h.b16 %v3655
    %v4865 = vunpack.c.l.b16 %v3656
    %v4866 = vunpack.c.h.b16 %v3656
    %v4867 = vunpack.c.l.b16 %v3657
    %v4868 = vunpack.c.l.b16 %v3658
    %v4869 = vunpack.c.h.b16 %v3658
    %v4870 = vunpack.c.l.b16 %v3659
    %v4871 = vunpack.c.h.b16 %v3659
    %v4872 = vunpack.c.l.b16 %v3660
    %v4873 = vunpack.c.h.b16 %v3660
    %v4874 = vunpack.c.l.b16 %v3661
    %v4875 = vunpack.c.l.b16 %v3662
    %v4876 = vunpack.c.h.b16 %v3662
    %v4877 = vunpack.c.l.b16 %v3663
    %v4878 = vunpack.c.h.b16 %v3663
    %v4879 = vunpack.c.l.b16 %v3664
    %v4880 = vunpack.c.h.b16 %v3664
    %v4881 = vunpack.c.l.b16 %v3665
    %v4882 = vunpack.c.l.b16 %v3666
    %v4883 = vunpack.c.h.b16 %v3666
    %v4884 = vunpack.c.l.b16 %v3667
    %v4885 = vunpack.c.h.b16 %v3667
    %v4886 = vunpack.c.l.b16 %v3668
    %v4887 = vunpack.c.h.b16 %v3668
    %v4888 = vunpack.c.l.b16 %v3669
    %v4889 = vunpack.c.l.b16 %v3670
    %v4890 = vunpack.c.h.b16 %v3670
    %v4891 = vunpack.c.l.b16 %v3671
    %v4892 = vunpack.c.h.b16 %v3671
    %v4893 = vunpack.c.l.b16 %v3672
    %v4894 = vunpack.c.h.b16 %v3672
    %v4895 = vunpack.c.l.b16 %v3673
    %v4896 = vunpack.c.l.b16 %v3674
    %v4897 = vunpack.c.h.b16 %v3674
    %v4898 = vunpack.c.l.b16 %v3675
    %v4899 = vunpack.c.h.b16 %v3675
    %v4900 = vunpack.c.l.b16 %v3676
    %v4901 = vunpack.c.h.b16 %v3676
    %v4902 = vunpack.c.l.b16 %v3677
    %v4903 = vunpack.c.l.b16 %v3678
    %v4904 = vunpack.c.h.b16 %v3678
    %v4905 = vunpack.c.l.b16 %v3679
    %v4906 = vunpack.c.h.b16 %v3679
    %v4907 = vunpack.c.l.b16 %v3680
    %v4908 = vunpack.c.h.b16 %v3680
    %v4909 = vunpack.c.l.b16 %v3681
    %v4910 = vunpack.c.l.b16 %v3682
    %v4911 = vunpack.c.h.b16 %v3682
    %v4912 = vunpack.c.l.b16 %v3683
    %v4913 = vunpack.c.h.b16 %v3683
    %v4914 = vunpack.c.l.b16 %v3684
    %v4915 = vunpack.c.h.b16 %v3684
    %v4916 = vunpack.c.l.b16 %v3685
    %v4917 = vunpack.c.l.b16 %v3686
    %v4918 = vunpack.c.h.b16 %v3686
    %v4919 = vunpack.c.l.b16 %v3687
    %v4920 = vunpack.c.h.b16 %v3687
    %v4921 = vunpack.c.l.b16 %v3688
    %v4922 = vunpack.c.h.b16 %v3688
    %v4923 = vunpack.c.l.b16 %v3689
    %v4924 = vunpack.c.l.b16 %v3690
    %v4925 = vunpack.c.h.b16 %v3690
    %v4926 = vunpack.c.l.b16 %v3691
    %v4927 = vunpack.c.h.b16 %v3691
    %v4928 = vunpack.c.l.b16 %v3692
    %v4929 = vunpack.c.h.b16 %v3692
    %v4930 = vunpack.c.l.b16 %v3693
    %v4931 = vunpack.c.l.b16 %v3694
    %v4932 = vunpack.c.h.b16 %v3694
    %v4933 = vunpack.c.l.b16 %v3695
    %v4934 = vunpack.c.h.b16 %v3695
    %v4935 = vunpack.c.l.b16 %v3696
    %v4936 = vunpack.c.h.b16 %v3696
    %v4937 = vunpack.c.l.b16 %v3697
    %v4938 = vunpack.c.l.b16 %v3698
    %v4939 = vunpack.c.h.b16 %v3698
    %v4940 = vunpack.c.l.b16 %v3699
    %v4941 = vunpack.c.h.b16 %v3699
    %v4942 = vunpack.c.l.b16 %v3700
    %v4943 = vunpack.c.h.b16 %v3700
    %v4944 = vunpack.c.l.b16 %v3701
    %v4945 = vunpack.c.l.b16 %v3702
    %v4946 = vunpack.c.h.b16 %v3702
    %v4947 = vunpack.c.l.b16 %v3703
    %v4948 = vunpack.c.h.b16 %v3703
    %v4949 = vunpack.c.l.b16 %v3704
    %v4950 = vunpack.c.h.b16 %v3704
    %v4951 = vunpack.c.l.b16 %v3705
    %v4952 = vunpack.c.l.b16 %v3706
    %v4953 = vunpack.c.h.b16 %v3706
    %v4954 = vunpack.c.l.b16 %v3707
    %v4955 = vunpack.c.h.b16 %v3707
    %v4956 = vunpack.c.l.b16 %v3708
    %v4957 = vunpack.c.h.b16 %v3708
    %v4958 = vunpack.c.l.b16 %v3709
    %v4959 = vunpack.c.l.b16 %v3710
    %v4960 = vunpack.c.h.b16 %v3710
    %v4961 = vunpack.c.l.b16 %v3711
    %v4962 = vunpack.c.h.b16 %v3711
    %v4963 = vunpack.c.l.b16 %v3712
    %v4964 = vunpack.c.h.b16 %v3712
    %v4965 = vunpack.c.l.b16 %v3713
    %v4966 = vunpack.c.l.b16 %v3714
    %v4967 = vunpack.c.h.b16 %v3714
    %v4968 = vunpack.c.l.b16 %v3715
    %v4969 = vunpack.c.h.b16 %v3715
    %v4970 = vunpack.c.l.b16 %v3716
    %v4971 = vunpack.c.h.b16 %v3716
    %v4972 = vunpack.c.l.b16 %v3717
    %v4973 = vunpack.c.l.b16 %v3718
    %v4974 = vunpack.c.h.b16 %v3718
    %v4975 = vunpack.c.l.b16 %v3719
    %v4976 = vunpack.c.h.b16 %v3719
    %v4977 = vunpack.c.l.b16 %v3720
    %v4978 = vunpack.c.h.b16 %v3720
    %v4979 = vunpack.c.l.b16 %v3721
    %v4980 = vunpack.c.l.b16 %v3722
    %v4981 = vunpack.c.h.b16 %v3722
    %v4982 = vunpack.c.l.b16 %v3723
    %v4983 = vunpack.c.h.b16 %v3723
    %v4984 = vunpack.c.l.b16 %v3724
    %v4985 = vunpack.c.h.b16 %v3724
    %v4986 = vunpack.c.l.b16 %v3725
    %v4987 = vunpack.c.l.b16 %v3726
    %v4988 = vunpack.c.h.b16 %v3726
    %v4989 = vunpack.c.l.b16 %v3727
    %v4990 = vunpack.c.h.b16 %v3727
    %v4991 = vunpack.c.l.b16 %v3728
    %v4992 = vunpack.c.h.b16 %v3728
    %v4993 = vunpack.c.l.b16 %v3729
    %v4994 = vunpack.c.l.b16 %v3730
    %v4995 = vunpack.c.h.b16 %v3730
    %v4996 = vunpack.c.l.b16 %v3731
    %v4997 = vunpack.c.h.b16 %v3731
    %v4998 = vunpack.c.l.b16 %v3732
    %v4999 = vunpack.c.h.b16 %v3732
    %v5000 = vunpack.c.l.b16 %v3733
    %v5001 = vunpack.c.l.b16 %v3734
    %v5002 = vunpack.c.h.b16 %v3734
    %v5003 = vunpack.c.l.b16 %v3735
    %v5004 = vunpack.c.h.b16 %v3735
    %v5005 = vunpack.c.l.b16 %v3736
    %v5006 = vunpack.c.h.b16 %v3736
    %v5007 = vunpack.c.l.b16 %v3737
    %v5008 = vunpack.c.l.b16 %v3738
    %v5009 = vunpack.c.h.b16 %v3738
    %v5010 = vunpack.c.l.b16 %v3739
    %v5011 = vunpack.c.h.b16 %v3739
    %v5012 = vunpack.c.l.b16 %v3740
    %v5013 = vunpack.c.h.b16 %v3740
    %v5014 = vunpack.c.l.b16 %v3741
    %v5015 = vunpack.c.l.b16 %v3742
    %v5016 = vunpack.c.h.b16 %v3742
    %v5017 = vunpack.c.l.b16 %v3743
    %v5018 = vunpack.c.h.b16 %v3743
    %v5019 = vunpack.c.l.b16 %v3744
    %v5020 = vunpack.c.h.b16 %v3744
    %v5021 = vunpack.c.l.b16 %v3745
    %v5022 = vunpack.c.l.b16 %v3746
    %v5023 = vunpack.c.h.b16 %v3746
    %v5024 = vunpack.c.l.b16 %v3747
    %v5025 = vunpack.c.h.b16 %v3747
    %v5026 = vunpack.c.l.b16 %v3748
    %v5027 = vunpack.c.h.b16 %v3748
    %v5028 = vunpack.c.l.b16 %v3749
    %v5029 = vunpack.c.l.b16 %v3750
    %v5030 = vunpack.c.h.b16 %v3750
    %v5031 = vunpack.c.l.b16 %v3751
    %v5032 = vunpack.c.h.b16 %v3751
    %v5033 = vunpack.c.l.b16 %v3752
    %v5034 = vunpack.c.h.b16 %v3752
    %v5035 = vunpack.c.l.b16 %v3753
    %v5036 = vunpack.c.l.b16 %v3754
    %v5037 = vunpack.c.h.b16 %v3754
    %v5038 = vunpack.c.l.b16 %v3755
    %v5039 = vunpack.c.h.b16 %v3755
    %v5040 = vunpack.c.l.b16 %v3756
    %v5041 = vunpack.c.h.b16 %v3756
    %v5042 = vunpack.c.l.b16 %v3757
    %v5043 = vunpack.c.l.b16 %v3758
    %v5044 = vunpack.c.h.b16 %v3758
    %v5045 = vunpack.c.l.b16 %v3759
    %v5046 = vunpack.c.h.b16 %v3759
    %v5047 = vunpack.c.l.b16 %v3760
    %v5048 = vunpack.c.h.b16 %v3760
    %v5049 = vunpack.c.l.b16 %v3761
    %v5050 = vunpack.c.l.b16 %v3762
    %v5051 = vunpack.c.h.b16 %v3762
    %v5052 = vunpack.c.l.b16 %v3763
    %v5053 = vunpack.c.h.b16 %v3763
    %v5054 = vunpack.c.l.b16 %v3764
    %v5055 = vunpack.c.h.b16 %v3764
    %v5056 = vunpack.c.l.b16 %v3765
    %v5057 = vunpack.c.l.b16 %v3766
    %v5058 = vunpack.c.h.b16 %v3766
    %v5059 = vunpack.c.l.b16 %v3767
    %v5060 = vunpack.c.h.b16 %v3767
    %v5061 = vunpack.c.l.b16 %v3768
    %v5062 = vunpack.c.h.b16 %v3768
    %v5063 = vunpack.c.l.b16 %v3769
    %v5064 = vunpack.c.l.b16 %v3770
    %v5065 = vunpack.c.h.b16 %v3770
    %v5066 = vunpack.c.l.b16 %v3771
    %v5067 = vunpack.c.h.b16 %v3771
    %v5068 = vunpack.c.l.b16 %v3772
    %v5069 = vunpack.c.h.b16 %v3772
    %v5070 = vunpack.c.l.b16 %v3773
    %v5071 = vunpack.c.l.b16 %v3774
    %v5072 = vunpack.c.h.b16 %v3774
    %v5073 = vunpack.c.l.b16 %v3775
    %v5074 = vunpack.c.h.b16 %v3775
    %v5075 = vunpack.c.l.b16 %v3776
    %v5076 = vunpack.c.h.b16 %v3776
    %v5077 = vunpack.c.l.b16 %v3777
    %v5078 = vunpack.c.l.b16 %v3778
    %v5079 = vunpack.c.h.b16 %v3778
    %v5080 = vunpack.c.l.b16 %v3779
    %v5081 = vunpack.c.h.b16 %v3779
    %v5082 = vunpack.c.l.b16 %v3780
    %v5083 = vunpack.c.h.b16 %v3780
    %v5084 = vunpack.c.l.b16 %v3781
    %v5085 = vunpack.c.l.b16 %v3782
    %v5086 = vunpack.c.h.b16 %v3782
    %v5087 = vunpack.c.l.b16 %v3783
    %v5088 = vunpack.c.h.b16 %v3783
    %v5089 = vunpack.c.l.b16 %v3784
    %v5090 = vunpack.c.h.b16 %v3784
    %v5091 = vunpack.c.l.b16 %v3785
    %v5092 = vunpack.c.l.b16 %v3786
    %v5093 = vunpack.c.h.b16 %v3786
    %v5094 = vunpack.c.l.b16 %v3787
    %v5095 = vunpack.c.h.b16 %v3787
    %v5096 = vunpack.c.l.b16 %v3788
    %v5097 = vunpack.c.h.b16 %v3788
    %v5098 = vunpack.c.l.b16 %v3789
    %v5099 = vunpack.c.l.b16 %v3790
    %v5100 = vunpack.c.h.b16 %v3790
    %v5101 = vunpack.c.l.b16 %v3791
    %v5102 = vunpack.c.h.b16 %v3791
    %v5103 = vunpack.c.l.b16 %v3792
    %v5104 = vunpack.c.h.b16 %v3792
    %v5105 = vunpack.c.l.b16 %v3793
    %v5106 = vunpack.c.l.b16 %v3794
    %v5107 = vunpack.c.h.b16 %v3794
    %v5108 = vunpack.c.l.b16 %v3795
    %v5109 = vunpack.c.h.b16 %v3795
    %v5110 = vunpack.c.l.b16 %v3796
    %v5111 = vunpack.c.h.b16 %v3796
    %v5112 = vunpack.c.l.b16 %v3797
    %v5113 = vunpack.c.l.b16 %v3798
    %v5114 = vunpack.c.h.b16 %v3798
    %v5115 = vunpack.c.l.b16 %v3799
    %v5116 = vunpack.c.h.b16 %v3799
    %v5117 = vunpack.c.l.b16 %v3800
    %v5118 = vunpack.c.h.b16 %v3800
    %v5119 = vunpack.c.l.b16 %v3801
    %v5120 = vunpack.c.l.b16 %v3802
    %v5121 = vunpack.c.h.b16 %v3802
    %v5122 = vunpack.c.l.b16 %v3803
    %v5123 = vunpack.c.h.b16 %v3803
    %v5124 = vunpack.c.l.b16 %v3804
    %v5125 = vunpack.c.h.b16 %v3804
    %v5126 = vunpack.c.l.b16 %v3805
    %v5127 = vunpack.c.l.b16 %v3806
    %v5128 = vunpack.c.h.b16 %v3806
    %v5129 = vunpack.c.l.b16 %v3807
    %v5130 = vunpack.c.h.b16 %v3807
    %v5131 = vunpack.c.l.b16 %v3808
    %v5132 = vunpack.c.h.b16 %v3808
    %v5133 = vunpack.c.l.b16 %v3809
    %v5134 = vunpack.c.l.b16 %v3810
    %v5135 = vunpack.c.h.b16 %v3810
    %v5136 = vunpack.c.l.b16 %v3811
    %v5137 = vunpack.c.h.b16 %v3811
    %v5138 = vunpack.c.l.b16 %v3812
    %v5139 = vunpack.c.h.b16 %v3812
    %v5140 = vunpack.c.l.b16 %v3813
    %v5141 = vunpack.c.l.b16 %v3814
    %v5142 = vunpack.c.h.b16 %v3814
    %v5143 = vunpack.c.l.b16 %v3815
    %v5144 = vunpack.c.h.b16 %v3815
    %v5145 = vunpack.c.l.b16 %v3816
    %v5146 = vunpack.c.h.b16 %v3816
    %v5147 = vunpack.c.l.b16 %v3817
    %v5148 = vunpack.c.l.b16 %v3818
    %v5149 = vunpack.c.h.b16 %v3818
    %v5150 = vunpack.c.l.b16 %v3819
    %v5151 = vunpack.c.h.b16 %v3819
    %v5152 = vunpack.c.l.b16 %v3820
    %v5153 = vunpack.c.h.b16 %v3820
    %v5154 = vunpack.c.l.b16 %v3821
    %v5155 = vunpack.c.l.b16 %v3822
    %v5156 = vunpack.c.h.b16 %v3822
    %v5157 = vunpack.c.l.b16 %v3823
    %v5158 = vunpack.c.h.b16 %v3823
    %v5159 = vunpack.c.l.b16 %v3824
    %v5160 = vunpack.c.h.b16 %v3824
    %v5161 = vunpack.c.l.b16 %v3825
    %v5162 = vunpack.c.l.b16 %v3826
    %v5163 = vunpack.c.h.b16 %v3826
    %v5164 = vunpack.c.l.b16 %v3827
    %v5165 = vunpack.c.h.b16 %v3827
    %v5166 = vunpack.c.l.b16 %v3828
    %v5167 = vunpack.c.h.b16 %v3828
    %v5168 = vunpack.c.l.b16 %v3829
    %v5169 = vunpack.c.l.b16 %v3830
    %v5170 = vunpack.c.h.b16 %v3830
    %v5171 = vunpack.c.l.b16 %v3831
    %v5172 = vunpack.c.h.b16 %v3831
    %v5173 = vunpack.c.l.b16 %v3832
    %v5174 = vunpack.c.h.b16 %v3832
    %v5175 = vunpack.c.l.b16 %v3833
    %v5176 = vunpack.c.l.b16 %v3834
    %v5177 = vunpack.c.h.b16 %v3834
    %v5178 = vunpack.c.l.b16 %v3835
    %v5179 = vunpack.c.h.b16 %v3835
    %v5180 = vunpack.c.l.b16 %v3836
    %v5181 = vunpack.c.h.b16 %v3836
    %v5182 = vunpack.c.l.b16 %v3837
    %v5183 = vunpack.c.l.b16 %v3838
    %v5184 = vunpack.c.h.b16 %v3838
    %v5185 = vunpack.c.l.b16 %v3839
    %v5186 = vunpack.c.h.b16 %v3839
    %v5187 = vunpack.c.l.b16 %v3840
    %v5188 = vunpack.c.h.b16 %v3840
    %v5189 = vunpack.c.l.b16 %v3841
    %v5190 = vunpack.c.l.b16 %v3842
    %v5191 = vunpack.c.h.b16 %v3842
    %v5192 = vunpack.c.l.b16 %v3843
    %v5193 = vunpack.c.h.b16 %v3843
    %v5194 = vunpack.c.l.b16 %v3844
    %v5195 = vunpack.c.h.b16 %v3844
    %v5196 = vunpack.c.l.b16 %v3845
    %v5197 = vunpack.c.l.b16 %v3846
    %v5198 = vunpack.c.h.b16 %v3846
    %v5199 = vunpack.c.l.b16 %v3847
    %v5200 = vunpack.c.h.b16 %v3847
    %v5201 = vunpack.c.l.b16 %v3848
    %v5202 = vunpack.c.h.b16 %v3848
    %v5203 = vunpack.c.l.b16 %v3849
    %v5204 = vunpack.c.l.b16 %v3850
    %v5205 = vunpack.c.h.b16 %v3850
    %v5206 = vunpack.c.l.b16 %v3851
    %v5207 = vunpack.c.h.b16 %v3851
    %v5208 = vunpack.c.l.b16 %v3852
    %v5209 = vunpack.c.h.b16 %v3852
    %v5210 = vunpack.c.l.b16 %v3853
    %v5211 = vunpack.c.l.b16 %v3854
    %v5212 = vunpack.c.h.b16 %v3854
    %v5213 = vunpack.c.l.b16 %v3855
    %v5214 = vunpack.c.h.b16 %v3855
    %v5215 = vunpack.c.l.b16 %v3856
    %v5216 = vunpack.c.h.b16 %v3856
    %v5217 = vunpack.c.l.b16 %v3857
    %v5218 = vunpack.c.l.b16 %v3858
    %v5219 = vunpack.c.h.b16 %v3858
    %v5220 = vunpack.c.l.b16 %v3859
    %v5221 = vunpack.c.h.b16 %v3859
    %v5222 = vunpack.c.l.b16 %v3860
    %v5223 = vunpack.c.h.b16 %v3860
    %v5224 = vunpack.c.l.b16 %v3861
    %v5225 = vunpack.c.l.b16 %v3862
    %v5226 = vunpack.c.h.b16 %v3862
    %v5227 = vunpack.c.l.b16 %v3863
    %v5228 = vunpack.c.h.b16 %v3863
    %v5229 = vunpack.c.l.b16 %v3864
    %v5230 = vunpack.c.h.b16 %v3864
    %v5231 = vunpack.c.l.b16 %v3865
    %v5232 = vunpack.c.l.b16 %v3866
    %v5233 = vunpack.c.h.b16 %v3866
    %v5234 = vunpack.c.l.b16 %v3867
    %v5235 = vunpack.c.h.b16 %v3867
    %v5236 = vunpack.c.l.b16 %v3868
    %v5237 = vunpack.c.h.b16 %v3868
    %v5238 = vunpack.c.l.b16 %v3869
    %v5239 = vunpack.c.l.b16 %v3870
    %v5240 = vunpack.c.h.b16 %v3870
    %v5241 = vunpack.c.l.b16 %v3871
    %v5242 = vunpack.c.h.b16 %v3871
    %v5243 = vunpack.c.l.b16 %v3872
    %v5244 = vunpack.c.h.b16 %v3872
    %v5245 = vunpack.c.l.b16 %v3873
    %v5246 = vunpack.c.l.b16 %v3874
    %v5247 = vunpack.c.h.b16 %v3874
    %v5248 = vunpack.c.l.b16 %v3875
    %v5249 = vunpack.c.h.b16 %v3875
    %v5250 = vunpack.c.l.b16 %v3876
    %v5251 = vunpack.c.h.b16 %v3876
    %v5252 = vunpack.c.l.b16 %v3877
    %v5253 = vunpack.c.l.b16 %v3878
    %v5254 = vunpack.c.h.b16 %v3878
    %v5255 = vunpack.c.l.b16 %v3879
    %v5256 = vunpack.c.h.b16 %v3879
    %v5257 = vunpack.c.l.b16 %v3880
    %v5258 = vunpack.c.h.b16 %v3880
    %v5259 = vunpack.c.l.b16 %v3881
    %v5260 = vunpack.c.l.b16 %v3882
    %v5261 = vunpack.c.h.b16 %v3882
    %v5262 = vunpack.c.l.b16 %v3883
    %v5263 = vunpack.c.h.b16 %v3883
    %v5264 = vunpack.c.l.b16 %v3884
    %v5265 = vunpack.c.h.b16 %v3884
    %v5266 = vunpack.c.l.b16 %v3885
    %v5267 = vunpack.c.l.b16 %v3886
    %v5268 = vunpack.c.h.b16 %v3886
    %v5269 = vunpack.c.l.b16 %v3887
    %v5270 = vunpack.c.h.b16 %v3887
    %v5271 = vunpack.c.l.b16 %v3888
    %v5272 = vunpack.c.h.b16 %v3888
    %v5273 = vunpack.c.l.b16 %v3889
    %v5274 = vunpack.c.l.b16 %v3890
    %v5275 = vunpack.c.h.b16 %v3890
    %v5276 = vunpack.c.l.b16 %v3891
    %v5277 = vunpack.c.h.b16 %v3891
    %v5278 = vunpack.c.l.b16 %v3892
    %v5279 = vunpack.c.h.b16 %v3892
    %v5280 = vunpack.c.l.b16 %v3893
    %v5281 = vunpack.c.l.b16 %v3894
    %v5282 = vunpack.c.h.b16 %v3894
    %v5283 = vunpack.c.l.b16 %v3895
    %v5284 = vunpack.c.h.b16 %v3895
    %v5285 = vunpack.c.l.b16 %v3896
    %v5286 = vunpack.c.h.b16 %v3896
    %v5287 = vunpack.c.l.b16 %v3897
    %v5288 = vunpack.c.l.b16 %v3898
    %v5289 = vunpack.c.h.b16 %v3898
    %v5290 = vunpack.c.l.b16 %v3899
    %v5291 = vunpack.c.h.b16 %v3899
    %v5292 = vunpack.c.l.b16 %v3900
    %v5293 = vunpack.c.h.b16 %v3900
    %v5294 = vunpack.c.l.b16 %v3901
    %v5295 = vunpack.c.l.b16 %v3902
    %v5296 = vunpack.c.h.b16 %v3902
    %v5297 = vunpack.c.l.b16 %v3903
    %v5298 = vunpack.c.h.b16 %v3903
    %v5299 = vunpack.c.l.b16 %v3904
    %v5300 = vunpack.c.h.b16 %v3904
    %v5301 = vunpack.c.l.b16 %v3905
    %v5302 = vunpack.c.l.b16 %v3906
    %v5303 = vunpack.c.h.b16 %v3906
    %v5304 = vunpack.c.l.b16 %v3907
    %v5305 = vunpack.c.h.b16 %v3907
    %v5306 = vunpack.c.l.b16 %v3908
    %v5307 = vunpack.c.h.b16 %v3908
    %v5308 = vunpack.c.l.b16 %v3909
    %v5309 = vunpack.c.l.b16 %v3910
    %v5310 = vunpack.c.h.b16 %v3910
    %v5311 = vunpack.c.l.b16 %v3911
    %v5312 = vunpack.c.h.b16 %v3911
    %v5313 = vunpack.c.l.b16 %v3912
    %v5314 = vunpack.c.h.b16 %v3912
    %v5315 = vunpack.c.l.b16 %v3913
    %v5316 = vunpack.c.l.b16 %v3914
    %v5317 = vunpack.c.h.b16 %v3914
    %v5318 = vunpack.c.l.b16 %v3915
    %v5319 = vunpack.c.h.b16 %v3915
    %v5320 = vunpack.c.l.b16 %v3916
    %v5321 = vunpack.c.h.b16 %v3916
    %v5322 = vunpack.c.l.b16 %v3917
    %v5323 = vunpack.c.l.b16 %v3918
    %v5324 = vunpack.c.h.b16 %v3918
    %v5325 = vunpack.c.l.b16 %v3919
    %v5326 = vunpack.c.h.b16 %v3919
    %v5327 = vunpack.c.l.b16 %v3920
    %v5328 = vunpack.c.h.b16 %v3920
    %v5329 = vunpack.c.l.b16 %v3921
    %v5330 = vunpack.c.l.b16 %v3922
    %v5331 = vunpack.c.h.b16 %v3922
    %v5332 = vunpack.c.l.b16 %v3923
    %v5333 = vunpack.c.h.b16 %v3923
    %v5334 = vunpack.c.l.b16 %v3924
    %v5335 = vunpack.c.h.b16 %v3924
    %v5336 = vunpack.c.l.b16 %v3925
    %v5337 = vunpack.c.l.b16 %v3926
    %v5338 = vunpack.c.h.b16 %v3926
    %v5339 = vunpack.c.l.b16 %v3927
    %v5340 = vunpack.c.h.b16 %v3927
    %v5341 = vunpack.c.l.b16 %v3928
    %v5342 = vunpack.c.h.b16 %v3928
    %v5343 = vunpack.c.l.b16 %v3929
    %v5344 = vunpack.c.l.b16 %v3930
    %v5345 = vunpack.c.h.b16 %v3930
    %v5346 = vunpack.c.l.b16 %v3931
    %v5347 = vunpack.c.h.b16 %v3931
    %v5348 = vunpack.c.l.b16 %v3932
    %v5349 = vunpack.c.h.b16 %v3932
    %v5350 = vunpack.c.l.b16 %v3933
    %v5351 = vunpack.c.l.b16 %v3934
    %v5352 = vunpack.c.h.b16 %v3934
    %v5353 = vunpack.c.l.b16 %v3935
    %v5354 = vunpack.c.h.b16 %v3935
    %v5355 = vunpack.c.l.b16 %v3936
    %v5356 = vunpack.c.h.b16 %v3936
    %v5357 = vunpack.c.l.b16 %v3937
    %v5358 = vunpack.c.l.b16 %v3938
    %v5359 = vunpack.c.h.b16 %v3938
    %v5360 = vunpack.c.l.b16 %v3939
    %v5361 = vunpack.c.h.b16 %v3939
    %v5362 = vunpack.c.l.b16 %v3940
    %v5363 = vunpack.c.h.b16 %v3940
    %v5364 = vunpack.c.l.b16 %v3941
    %v5365 = vunpack.c.l.b16 %v3942
    %v5366 = vunpack.c.h.b16 %v3942
    %v5367 = vunpack.c.l.b16 %v3943
    %v5368 = vunpack.c.h.b16 %v3943
    %v5369 = vunpack.c.l.b16 %v3944
    %v5370 = vunpack.c.h.b16 %v3944
    %v5371 = vunpack.c.l.b16 %v3945
    %v5372 = vunpack.c.l.b16 %v3946
    %v5373 = vunpack.c.h.b16 %v3946
    %v5374 = vunpack.c.l.b16 %v3947
    %v5375 = vunpack.c.h.b16 %v3947
    %v5376 = vunpack.c.l.b16 %v3948
    %v5377 = vunpack.c.h.b16 %v3948
    %v5378 = vunpack.c.l.b16 %v3949
    %v5379 = vunpack.c.l.b16 %v3950
    %v5380 = vunpack.c.h.b16 %v3950
    %v5381 = vunpack.c.l.b16 %v3951
    %v5382 = vunpack.c.h.b16 %v3951
    %v5383 = vunpack.c.l.b16 %v3952
    %v5384 = vunpack.c.h.b16 %v3952
    %v5385 = vunpack.c.l.b16 %v3953
    %v5386 = vpack.c.b16 %v4497, %v4490
    %v5387 = vpack.c.b16 %v4498, %v4491
    %v5388 = vpack.c.b16 %v4499, %v4492
    %v5389 = vpack.c.b16 %v4500, %v4493
    %v5390 = vpack.c.b16 %v4501, %v4494
    %v5391 = vpack.c.b16 %v4502, %v4495
    %v5392 = vpack.c.b16 %v4503, %v4496
    %v5393 = vpack.c.b16 %v4511, %v4504
    %v5394 = vpack.c.b16 %v4512, %v4505
    %v5395 = vpack.c.b16 %v4513, %v4506
    %v5396 = vpack.c.b16 %v4514, %v4507
    %v5397 = vpack.c.b16 %v4515, %v4508
    %v5398 = vpack.c.b16 %v4516, %v4509
    %v5399 = vpack.c.b16 %v4517, %v4510
    %v5400 = vpack.c.b16 %v4525, %v4518
    %v5401 = vpack.c.b16 %v4526, %v4519
    %v5402 = vpack.c.b16 %v4527, %v4520
    %v5403 = vpack.c.b16 %v4528, %v4521
    %v5404 = vpack.c.b16 %v4529, %v4522
    %v5405 = vpack.c.b16 %v4530, %v4523
    %v5406 = vpack.c.b16 %v4531, %v4524
    %v5407 = vpack.c.b16 %v4539, %v4532
    %v5408 = vpack.c.b16 %v4540, %v4533
    %v5409 = vpack.c.b16 %v4541, %v4534
    %v5410 = vpack.c.b16 %v4542, %v4535
    %v5411 = vpack.c.b16 %v4543, %v4536
    %v5412 = vpack.c.b16 %v4544, %v4537
    %v5413 = vpack.c.b16 %v4545, %v4538
    %v5414 = vpack.c.b16 %v4553, %v4546
    %v5415 = vpack.c.b16 %v4554, %v4547
    %v5416 = vpack.c.b16 %v4555, %v4548
    %v5417 = vpack.c.b16 %v4556, %v4549
    %v5418 = vpack.c.b16 %v4557, %v4550
    %v5419 = vpack.c.b16 %v4558, %v4551
    %v5420 = vpack.c.b16 %v4559, %v4552
    %v5421 = vpack.c.b16 %v4567, %v4560
    %v5422 = vpack.c.b16 %v4568, %v4561
    %v5423 = vpack.c.b16 %v4569, %v4562
    %v5424 = vpack.c.b16 %v4570, %v4563
    %v5425 = vpack.c.b16 %v4571, %v4564
    %v5426 = vpack.c.b16 %v4572, %v4565
    %v5427 = vpack.c.b16 %v4573, %v4566
    %v5428 = vpack.c.b16 %v4581, %v4574
    %v5429 = vpack.c.b16 %v4582, %v4575
    %v5430 = vpack.c.b16 %v4583, %v4576
    %v5431 = vpack.c.b16 %v4584, %v4577
    %v5432 = vpack.c.b16 %v4585, %v4578
    %v5433 = vpack.c.b16 %v4586, %v4579
    %v5434 = vpack.c.b16 %v4587, %v4580
    %v5435 = vpack.c.b16 %v4595, %v4588
    %v5436 = vpack.c.b16 %v4596, %v4589
    %v5437 = vpack.c.b16 %v4597, %v4590
    %v5438 = vpack.c.b16 %v4598, %v4591
    %v5439 = vpack.c.b16 %v4599, %v4592
    %v5440 = vpack.c.b16 %v4600, %v4593
    %v5441 = vpack.c.b16 %v4601, %v4594
    %v5442 = vpack.c.b16 %v4609, %v4602
    %v5443 = vpack.c.b16 %v4610, %v4603
    %v5444 = vpack.c.b16 %v4611, %v4604
    %v5445 = vpack.c.b16 %v4612, %v4605
    %v5446 = vpack.c.b16 %v4613, %v4606
    %v5447 = vpack.c.b16 %v4614, %v4607
    %v5448 = vpack.c.b16 %v4615, %v4608
    %v5449 = vpack.c.b16 %v4623, %v4616
    %v5450 = vpack.c.b16 %v4624, %v4617
    %v5451 = vpack.c.b16 %v4625, %v4618
    %v5452 = vpack.c.b16 %v4626, %v4619
    %v5453 = vpack.c.b16 %v4627, %v4620
    %v5454 = vpack.c.b16 %v4628, %v4621
    %v5455 = vpack.c.b16 %v4629, %v4622
    %v5456 = vpack.c.b16 %v4637, %v4630
    %v5457 = vpack.c.b16 %v4638, %v4631
    %v5458 = vpack.c.b16 %v4639, %v4632
    %v5459 = vpack.c.b16 %v4640, %v4633
    %v5460 = vpack.c.b16 %v4641, %v4634
    %v5461 = vpack.c.b16 %v4642, %v4635
    %v5462 = vpack.c.b16 %v4643, %v4636
    %v5463 = vpack.c.b16 %v4651, %v4644
    %v5464 = vpack.c.b16 %v4652, %v4645
    %v5465 = vpack.c.b16 %v4653, %v4646
    %v5466 = vpack.c.b16 %v4654, %v4647
    %v5467 = vpack.c.b16 %v4655, %v4648
    %v5468 = vpack.c.b16 %v4656, %v4649
    %v5469 = vpack.c.b16 %v4657, %v4650
    %v5470 = vpack.c.b16 %v4665, %v4658
    %v5471 = vpack.c.b16 %v4666, %v4659
    %v5472 = vpack.c.b16 %v4667, %v4660
    %v5473 = vpack.c.b16 %v4668, %v4661
    %v5474 = vpack.c.b16 %v4669, %v4662
    %v5475 = vpack.c.b16 %v4670, %v4663
    %v5476 = vpack.c.b16 %v4671, %v4664
    %v5477 = vpack.c.b16 %v4679, %v4672
    %v5478 = vpack.c.b16 %v4680, %v4673
    %v5479 = vpack.c.b16 %v4681, %v4674
    %v5480 = vpack.c.b16 %v4682, %v4675
    %v5481 = vpack.c.b16 %v4683, %v4676
    %v5482 = vpack.c.b16 %v4684, %v4677
    %v5483 = vpack.c.b16 %v4685, %v4678
    %v5484 = vpack.c.b16 %v4693, %v4686
    %v5485 = vpack.c.b16 %v4694, %v4687
    %v5486 = vpack.c.b16 %v4695, %v4688
    %v5487 = vpack.c.b16 %v4696, %v4689
    %v5488 = vpack.c.b16 %v4697, %v4690
    %v5489 = vpack.c.b16 %v4698, %v4691
    %v5490 = vpack.c.b16 %v4699, %v4692
    %v5491 = vpack.c.b16 %v4707, %v4700
    %v5492 = vpack.c.b16 %v4708, %v4701
    %v5493 = vpack.c.b16 %v4709, %v4702
    %v5494 = vpack.c.b16 %v4710, %v4703
    %v5495 = vpack.c.b16 %v4711, %v4704
    %v5496 = vpack.c.b16 %v4712, %v4705
    %v5497 = vpack.c.b16 %v4713, %v4706
    %v5498 = vpack.c.b16 %v4721, %v4714
    %v5499 = vpack.c.b16 %v4722, %v4715
    %v5500 = vpack.c.b16 %v4723, %v4716
    %v5501 = vpack.c.b16 %v4724, %v4717
    %v5502 = vpack.c.b16 %v4725, %v4718
    %v5503 = vpack.c.b16 %v4726, %v4719
    %v5504 = vpack.c.b16 %v4727, %v4720
    %v5505 = vpack.c.b16 %v4735, %v4728
    %v5506 = vpack.c.b16 %v4736, %v4729
    %v5507 = vpack.c.b16 %v4737, %v4730
    %v5508 = vpack.c.b16 %v4738, %v4731
    %v5509 = vpack.c.b16 %v4739, %v4732
    %v5510 = vpack.c.b16 %v4740, %v4733
    %v5511 = vpack.c.b16 %v4741, %v4734
    %v5512 = vpack.c.b16 %v4749, %v4742
    %v5513 = vpack.c.b16 %v4750, %v4743
    %v5514 = vpack.c.b16 %v4751, %v4744
    %v5515 = vpack.c.b16 %v4752, %v4745
    %v5516 = vpack.c.b16 %v4753, %v4746
    %v5517 = vpack.c.b16 %v4754, %v4747
    %v5518 = vpack.c.b16 %v4755, %v4748
    %v5519 = vpack.c.b16 %v4763, %v4756
    %v5520 = vpack.c.b16 %v4764, %v4757
    %v5521 = vpack.c.b16 %v4765, %v4758
    %v5522 = vpack.c.b16 %v4766, %v4759
    %v5523 = vpack.c.b16 %v4767, %v4760
    %v5524 = vpack.c.b16 %v4768, %v4761
    %v5525 = vpack.c.b16 %v4769, %v4762
    %v5526 = vpack.c.b16 %v4777, %v4770
    %v5527 = vpack.c.b16 %v4778, %v4771
    %v5528 = vpack.c.b16 %v4779, %v4772
    %v5529 = vpack.c.b16 %v4780, %v4773
    %v5530 = vpack.c.b16 %v4781, %v4774
    %v5531 = vpack.c.b16 %v4782, %v4775
    %v5532 = vpack.c.b16 %v4783, %v4776
    %v5533 = vpack.c.b16 %v4791, %v4784
    %v5534 = vpack.c.b16 %v4792, %v4785
    %v5535 = vpack.c.b16 %v4793, %v4786
    %v5536 = vpack.c.b16 %v4794, %v4787
    %v5537 = vpack.c.b16 %v4795, %v4788
    %v5538 = vpack.c.b16 %v4796, %v4789
    %v5539 = vpack.c.b16 %v4797, %v4790
    %v5540 = vpack.c.b16 %v4805, %v4798
    %v5541 = vpack.c.b16 %v4806, %v4799
    %v5542 = vpack.c.b16 %v4807, %v4800
    %v5543 = vpack.c.b16 %v4808, %v4801
    %v5544 = vpack.c.b16 %v4809, %v4802
    %v5545 = vpack.c.b16 %v4810, %v4803
    %v5546 = vpack.c.b16 %v4811, %v4804
    %v5547 = vpack.c.b16 %v4819, %v4812
    %v5548 = vpack.c.b16 %v4820, %v4813
    %v5549 = vpack.c.b16 %v4821, %v4814
    %v5550 = vpack.c.b16 %v4822, %v4815
    %v5551 = vpack.c.b16 %v4823, %v4816
    %v5552 = vpack.c.b16 %v4824, %v4817
    %v5553 = vpack.c.b16 %v4825, %v4818
    %v5554 = vpack.c.b16 %v4833, %v4826
    %v5555 = vpack.c.b16 %v4834, %v4827
    %v5556 = vpack.c.b16 %v4835, %v4828
    %v5557 = vpack.c.b16 %v4836, %v4829
    %v5558 = vpack.c.b16 %v4837, %v4830
    %v5559 = vpack.c.b16 %v4838, %v4831
    %v5560 = vpack.c.b16 %v4839, %v4832
    %v5561 = vpack.c.b16 %v4847, %v4840
    %v5562 = vpack.c.b16 %v4848, %v4841
    %v5563 = vpack.c.b16 %v4849, %v4842
    %v5564 = vpack.c.b16 %v4850, %v4843
    %v5565 = vpack.c.b16 %v4851, %v4844
    %v5566 = vpack.c.b16 %v4852, %v4845
    %v5567 = vpack.c.b16 %v4853, %v4846
    %v5568 = vpack.c.b16 %v4861, %v4854
    %v5569 = vpack.c.b16 %v4862, %v4855
    %v5570 = vpack.c.b16 %v4863, %v4856
    %v5571 = vpack.c.b16 %v4864, %v4857
    %v5572 = vpack.c.b16 %v4865, %v4858
    %v5573 = vpack.c.b16 %v4866, %v4859
    %v5574 = vpack.c.b16 %v4867, %v4860
    %v5575 = vpack.c.b16 %v4875, %v4868
    %v5576 = vpack.c.b16 %v4876, %v4869
    %v5577 = vpack.c.b16 %v4877, %v4870
    %v5578 = vpack.c.b16 %v4878, %v4871
    %v5579 = vpack.c.b16 %v4879, %v4872
    %v5580 = vpack.c.b16 %v4880, %v4873
    %v5581 = vpack.c.b16 %v4881, %v4874
    %v5582 = vpack.c.b16 %v4889, %v4882
    %v5583 = vpack.c.b16 %v4890, %v4883
    %v5584 = vpack.c.b16 %v4891, %v4884
    %v5585 = vpack.c.b16 %v4892, %v4885
    %v5586 = vpack.c.b16 %v4893, %v4886
    %v5587 = vpack.c.b16 %v4894, %v4887
    %v5588 = vpack.c.b16 %v4895, %v4888
    %v5589 = vpack.c.b16 %v4903, %v4896
    %v5590 = vpack.c.b16 %v4904, %v4897
    %v5591 = vpack.c.b16 %v4905, %v4898
    %v5592 = vpack.c.b16 %v4906, %v4899
    %v5593 = vpack.c.b16 %v4907, %v4900
    %v5594 = vpack.c.b16 %v4908, %v4901
    %v5595 = vpack.c.b16 %v4909, %v4902
    %v5596 = vpack.c.b16 %v4917, %v4910
    %v5597 = vpack.c.b16 %v4918, %v4911
    %v5598 = vpack.c.b16 %v4919, %v4912
    %v5599 = vpack.c.b16 %v4920, %v4913
    %v5600 = vpack.c.b16 %v4921, %v4914
    %v5601 = vpack.c.b16 %v4922, %v4915
    %v5602 = vpack.c.b16 %v4923, %v4916
    %v5603 = vpack.c.b16 %v4931, %v4924
    %v5604 = vpack.c.b16 %v4932, %v4925
    %v5605 = vpack.c.b16 %v4933, %v4926
    %v5606 = vpack.c.b16 %v4934, %v4927
    %v5607 = vpack.c.b16 %v4935, %v4928
    %v5608 = vpack.c.b16 %v4936, %v4929
    %v5609 = vpack.c.b16 %v4937, %v4930
    %v5610 = vpack.c.b16 %v4945, %v4938
    %v5611 = vpack.c.b16 %v4946, %v4939
    %v5612 = vpack.c.b16 %v4947, %v4940
    %v5613 = vpack.c.b16 %v4948, %v4941
    %v5614 = vpack.c.b16 %v4949, %v4942
    %v5615 = vpack.c.b16 %v4950, %v4943
    %v5616 = vpack.c.b16 %v4951, %v4944
    %v5617 = vpack.c.b16 %v4959, %v4952
    %v5618 = vpack.c.b16 %v4960, %v4953
    %v5619 = vpack.c.b16 %v4961, %v4954
    %v5620 = vpack.c.b16 %v4962, %v4955
    %v5621 = vpack.c.b16 %v4963, %v4956
    %v5622 = vpack.c.b16 %v4964, %v4957
    %v5623 = vpack.c.b16 %v4965, %v4958
    %v5624 = vpack.c.b16 %v4973, %v4966
    %v5625 = vpack.c.b16 %v4974, %v4967
    %v5626 = vpack.c.b16 %v4975, %v4968
    %v5627 = vpack.c.b16 %v4976, %v4969
    %v5628 = vpack.c.b16 %v4977, %v4970
    %v5629 = vpack.c.b16 %v4978, %v4971
    %v5630 = vpack.c.b16 %v4979, %v4972
    %v5631 = vpack.c.b16 %v4987, %v4980
    %v5632 = vpack.c.b16 %v4988, %v4981
    %v5633 = vpack.c.b16 %v4989, %v4982
    %v5634 = vpack.c.b16 %v4990, %v4983
    %v5635 = vpack.c.b16 %v4991, %v4984
    %v5636 = vpack.c.b16 %v4992, %v4985
    %v5637 = vpack.c.b16 %v4993, %v4986
    %v5638 = vpack.c.b16 %v5001, %v4994
    %v5639 = vpack.c.b16 %v5002, %v4995
    %v5640 = vpack.c.b16 %v5003, %v4996
    %v5641 = vpack.c.b16 %v5004, %v4997
    %v5642 = vpack.c.b16 %v5005, %v4998
    %v5643 = vpack.c.b16 %v5006, %v4999
    %v5644 = vpack.c.b16 %v5007, %v5000
    %v5645 = vpack.c.b16 %v5015, %v5008
    %v5646 = vpack.c.b16 %v5016, %v5009
    %v5647 = vpack.c.b16 %v5017, %v5010
    %v5648 = vpack.c.b16 %v5018, %v5011
    %v5649 = vpack.c.b16 %v5019, %v5012
    %v5650 = vpack.c.b16 %v5020, %v5013
    %v5651 = vpack.c.b16 %v5021, %v5014
    %v5652 = vpack.c.b16 %v5029, %v5022
    %v5653 = vpack.c.b16 %v5030, %v5023
    %v5654 = vpack.c.b16 %v5031, %v5024
    %v5655 = vpack.c.b16 %v5032, %v5025
    %v5656 = vpack.c.b16 %v5033, %v5026
    %v5657 = vpack.c.b16 %v5034, %v5027
    %v5658 = vpack.c.b16 %v5035, %v5028
    %v5659 = vpack.c.b16 %v5043, %v5036
    %v5660 = vpack.c.b16 %v5044, %v5037
    %v5661 = vpack.c.b16 %v5045, %v5038
    %v5662 = vpack.c.b16 %v5046, %v5039
    %v5663 = vpack.c.b16 %v5047, %v5040
    %v5664 = vpack.c.b16 %v5048, %v5041
    %v5665 = vpack.c.b16 %v5049, %v5042
    %v5666 = vpack.c.b16 %v5057, %v5050
    %v5667 = vpack.c.b16 %v5058, %v5051
    %v5668 = vpack.c.b16 %v5059, %v5052
    %v5669 = vpack.c.b16 %v5060, %v5053
    %v5670 = vpack.c.b16 %v5061, %v5054
    %v5671 = vpack.c.b16 %v5062, %v5055
    %v5672 = vpack.c.b16 %v5063, %v5056
    %v5673 = vpack.c.b16 %v5071, %v5064
    %v5674 = vpack.c.b16 %v5072, %v5065
    %v5675 = vpack.c.b16 %v5073, %v5066
    %v5676 = vpack.c.b16 %v5074, %v5067
    %v5677 = vpack.c.b16 %v5075, %v5068
    %v5678 = vpack.c.b16 %v5076, %v5069
    %v5679 = vpack.c.b16 %v5077, %v5070
    %v5680 = vpack.c.b16 %v5085, %v5078
    %v5681 = vpack.c.b16 %v5086, %v5079
    %v5682 = vpack.c.b16 %v5087, %v5080
    %v5683 = vpack.c.b16 %v5088, %v5081
    %v5684 = vpack.c.b16 %v5089, %v5082
    %v5685 = vpack.c.b16 %v5090, %v5083
    %v5686 = vpack.c.b16 %v5091, %v5084
    %v5687 = vpack.c.b16 %v5099, %v5092
    %v5688 = vpack.c.b16 %v5100, %v5093
    %v5689 = vpack.c.b16 %v5101, %v5094
    %v5690 = vpack.c.b16 %v5102, %v5095
    %v5691 = vpack.c.b16 %v5103, %v5096
    %v5692 = vpack.c.b16 %v5104, %v5097
    %v5693 = vpack.c.b16 %v5105, %v5098
    %v5694 = vpack.c.b16 %v5113, %v5106
    %v5695 = vpack.c.b16 %v5114, %v5107
    %v5696 = vpack.c.b16 %v5115, %v5108
    %v5697 = vpack.c.b16 %v5116, %v5109
    %v5698 = vpack.c.b16 %v5117, %v5110
    %v5699 = vpack.c.b16 %v5118, %v5111
    %v5700 = vpack.c.b16 %v5119, %v5112
    %v5701 = vpack.c.b16 %v5127, %v5120
    %v5702 = vpack.c.b16 %v5128, %v5121
    %v5703 = vpack.c.b16 %v5129, %v5122
    %v5704 = vpack.c.b16 %v5130, %v5123
    %v5705 = vpack.c.b16 %v5131, %v5124
    %v5706 = vpack.c.b16 %v5132, %v5125
    %v5707 = vpack.c.b16 %v5133, %v5126
    %v5708 = vpack.c.b16 %v5141, %v5134
    %v5709 = vpack.c.b16 %v5142, %v5135
    %v5710 = vpack.c.b16 %v5143, %v5136
    %v5711 = vpack.c.b16 %v5144, %v5137
    %v5712 = vpack.c.b16 %v5145, %v5138
    %v5713 = vpack.c.b16 %v5146, %v5139
    %v5714 = vpack.c.b16 %v5147, %v5140
    %v5715 = vpack.c.b16 %v5155, %v5148
    %v5716 = vpack.c.b16 %v5156, %v5149
    %v5717 = vpack.c.b16 %v5157, %v5150
    %v5718 = vpack.c.b16 %v5158, %v5151
    %v5719 = vpack.c.b16 %v5159, %v5152
    %v5720 = vpack.c.b16 %v5160, %v5153
    %v5721 = vpack.c.b16 %v5161, %v5154
    %v5722 = vpack.c.b16 %v5169, %v5162
    %v5723 = vpack.c.b16 %v5170, %v5163
    %v5724 = vpack.c.b16 %v5171, %v5164
    %v5725 = vpack.c.b16 %v5172, %v5165
    %v5726 = vpack.c.b16 %v5173, %v5166
    %v5727 = vpack.c.b16 %v5174, %v5167
    %v5728 = vpack.c.b16 %v5175, %v5168
    %v5729 = vpack.c.b16 %v5183, %v5176
    %v5730 = vpack.c.b16 %v5184, %v5177
    %v5731 = vpack.c.b16 %v5185, %v5178
    %v5732 = vpack.c.b16 %v5186, %v5179
    %v5733 = vpack.c.b16 %v5187, %v5180
    %v5734 = vpack.c.b16 %v5188, %v5181
    %v5735 = vpack.c.b16 %v5189, %v5182
    %v5736 = vpack.c.b16 %v5197, %v5190
    %v5737 = vpack.c.b16 %v5198, %v5191
    %v5738 = vpack.c.b16 %v5199, %v5192
    %v5739 = vpack.c.b16 %v5200, %v5193
    %v5740 = vpack.c.b16 %v5201, %v5194
    %v5741 = vpack.c.b16 %v5202, %v5195
    %v5742 = vpack.c.b16 %v5203, %v5196
    %v5743 = vpack.c.b16 %v5211, %v5204
    %v5744 = vpack.c.b16 %v5212, %v5205
    %v5745 = vpack.c.b16 %v5213, %v5206
    %v5746 = vpack.c.b16 %v5214, %v5207
    %v5747 = vpack.c.b16 %v5215, %v5208
    %v5748 = vpack.c.b16 %v5216, %v5209
    %v5749 = vpack.c.b16 %v5217, %v5210
    %v5750 = vpack.c.b16 %v5225, %v5218
    %v5751 = vpack.c.b16 %v5226, %v5219
    %v5752 = vpack.c.b16 %v5227, %v5220
    %v5753 = vpack.c.b16 %v5228, %v5221
    %v5754 = vpack.c.b16 %v5229, %v5222
    %v5755 = vpack.c.b16 %v5230, %v5223
    %v5756 = vpack.c.b16 %v5231, %v5224
    %v5757 = vpack.c.b16 %v5239, %v5232
    %v5758 = vpack.c.b16 %v5240, %v5233
    %v5759 = vpack.c.b16 %v5241, %v5234
    %v5760 = vpack.c.b16 %v5242, %v5235
    %v5761 = vpack.c.b16 %v5243, %v5236
    %v5762 = vpack.c.b16 %v5244, %v5237
    %v5763 = vpack.c.b16 %v5245, %v5238
    %v5764 = vpack.c.b16 %v5253, %v5246
    %v5765 = vpack.c.b16 %v5254, %v5247
    %v5766 = vpack.c.b16 %v5255, %v5248
    %v5767 = vpack.c.b16 %v5256, %v5249
    %v5768 = vpack.c.b16 %v5257, %v5250
    %v5769 = vpack.c.b16 %v5258, %v5251
    %v5770 = vpack.c.b16 %v5259, %v5252
    %v5771 = vpack.c.b16 %v5267, %v5260
    %v5772 = vpack.c.b16 %v5268, %v5261
    %v5773 = vpack.c.b16 %v5269, %v5262
    %v5774 = vpack.c.b16 %v5270, %v5263
    %v5775 = vpack.c.b16 %v5271, %v5264
    %v5776 = vpack.c.b16 %v5272, %v5265
    %v5777 = vpack.c.b16 %v5273, %v5266
    %v5778 = vpack.c.b16 %v5281, %v5274
    %v5779 = vpack.c.b16 %v5282, %v5275
    %v5780 = vpack.c.b16 %v5283, %v5276
    %v5781 = vpack.c.b16 %v5284, %v5277
    %v5782 = vpack.c.b16 %v5285, %v5278
    %v5783 = vpack.c.b16 %v5286, %v5279
    %v5784 = vpack.c.b16 %v5287, %v5280
    %v5785 = vpack.c.b16 %v5295, %v5288
    %v5786 = vpack.c.b16 %v5296, %v5289
    %v5787 = vpack.c.b16 %v5297, %v5290
    %v5788 = vpack.c.b16 %v5298, %v5291
    %v5789 = vpack.c.b16 %v5299, %v5292
    %v5790 = vpack.c.b16 %v5300, %v5293
    %v5791 = vpack.c.b16 %v5301, %v5294
    %v5792 = vpack.c.b16 %v5309, %v5302
    %v5793 = vpack.c.b16 %v5310, %v5303
    %v5794 = vpack.c.b16 %v5311, %v5304
    %v5795 = vpack.c.b16 %v5312, %v5305
    %v5796 = vpack.c.b16 %v5313, %v5306
    %v5797 = vpack.c.b16 %v5314, %v5307
    %v5798 = vpack.c.b16 %v5315, %v5308
    %v5799 = vpack.c.b16 %v5323, %v5316
    %v5800 = vpack.c.b16 %v5324, %v5317
    %v5801 = vpack.c.b16 %v5325, %v5318
    %v5802 = vpack.c.b16 %v5326, %v5319
    %v5803 = vpack.c.b16 %v5327, %v5320
    %v5804 = vpack.c.b16 %v5328, %v5321
    %v5805 = vpack.c.b16 %v5329, %v5322
    %v5806 = vpack.c.b16 %v5337, %v5330
    %v5807 = vpack.c.b16 %v5338, %v5331
    %v5808 = vpack.c.b16 %v5339, %v5332
    %v5809 = vpack.c.b16 %v5340, %v5333
    %v5810 = vpack.c.b16 %v5341, %v5334
    %v5811 = vpack.c.b16 %v5342, %v5335
    %v5812 = vpack.c.b16 %v5343, %v5336
    %v5813 = vpack.c.b16 %v5351, %v5344
    %v5814 = vpack.c.b16 %v5352, %v5345
    %v5815 = vpack.c.b16 %v5353, %v5346
    %v5816 = vpack.c.b16 %v5354, %v5347
    %v5817 = vpack.c.b16 %v5355, %v5348
    %v5818 = vpack.c.b16 %v5356, %v5349
    %v5819 = vpack.c.b16 %v5357, %v5350
    %v5820 = vpack.c.b16 %v5365, %v5358
    %v5821 = vpack.c.b16 %v5366, %v5359
    %v5822 = vpack.c.b16 %v5367, %v5360
    %v5823 = vpack.c.b16 %v5368, %v5361
    %v5824 = vpack.c.b16 %v5369, %v5362
    %v5825 = vpack.c.b16 %v5370, %v5363
    %v5826 = vpack.c.b16 %v5371, %v5364
    %v5827 = vpack.c.b16 %v5379, %v5372
    %v5828 = vpack.c.b16 %v5380, %v5373
    %v5829 = vpack.c.b16 %v5381, %v5374
    %v5830 = vpack.c.b16 %v5382, %v5375
    %v5831 = vpack.c.b16 %v5383, %v5376
    %v5832 = vpack.c.b16 %v5384, %v5377
    %v5833 = vpack.c.b16 %v5385, %v5378
    %6282 = vmatpush.bf16.msra.mxu0 %v5435
    %6283 = vmatpush.bf16.msra.mxu0 %v5428
    %6284 = vmatpush.bf16.msra.mxu0 %v5421
    %6285 = vmatpush.bf16.msra.mxu0 %v5414
    %6286 = vmatpush.bf16.msra.mxu0 %v5407
    %6287 = vmatpush.bf16.msra.mxu0 %v5400
    %6288 = vmatpush.bf16.msra.mxu0 %v5393
    %6289 = vmatpush.bf16.msra.mxu0 %v5386
    %6290 = vmatmul.bf16.gmra.mxu0 %v3954
    %v6291 = vpop.f32.mrf.mxu0
    %v6292 = vadd.f32 %v3964, %v6291
    %v6293 = vpop.f32.mrf.mxu0
    %6294 = vdwg.mxu0
    %6295 = vmatpush.bf16.msra.mxu0 %v5491
    %6296 = vmatpush.bf16.msra.mxu0 %v5484
    %6297 = vmatpush.bf16.msra.mxu0 %v5477
    %6298 = vmatpush.bf16.msra.mxu0 %v5470
    %6299 = vmatpush.bf16.msra.mxu0 %v5463
    %6300 = vmatpush.bf16.msra.mxu0 %v5456
    %6301 = vmatpush.bf16.msra.mxu0 %v5449
    %6302 = vmatpush.bf16.msra.mxu0 %v5442
    %6303 = vmatmul.bf16.gmra.mxu0 %v3955
    %v6304 = vpop.f32.mrf.mxu0
    %v6305 = vadd.f32 %v6292, %v6304
    %v6306 = vpop.f32.mrf.mxu0
    %6307 = vdwg.mxu0
    %6308 = vmatpush.bf16.msra.mxu0 %v5547
    %6309 = vmatpush.bf16.msra.mxu0 %v5540
    %6310 = vmatpush.bf16.msra.mxu0 %v5533
    %6311 = vmatpush.bf16.msra.mxu0 %v5526
    %6312 = vmatpush.bf16.msra.mxu0 %v5519
    %6313 = vmatpush.bf16.msra.mxu0 %v5512
    %6314 = vmatpush.bf16.msra.mxu0 %v5505
    %6315 = vmatpush.bf16.msra.mxu0 %v5498
    %6316 = vmatmul.bf16.gmra.mxu0 %v3956
    %v6317 = vpop.f32.mrf.mxu0
    %v6318 = vadd.f32 %v6305, %v6317
    %v6319 = vpop.f32.mrf.mxu0
    %6320 = vdwg.mxu0
    %6321 = vmatpush.bf16.msra.mxu0 %v5603
    %6322 = vmatpush.bf16.msra.mxu0 %v5596
    %6323 = vmatpush.bf16.msra.mxu0 %v5589
    %6324 = vmatpush.bf16.msra.mxu0 %v5582
    %6325 = vmatpush.bf16.msra.mxu0 %v5575
    %6326 = vmatpush.bf16.msra.mxu0 %v5568
    %6327 = vmatpush.bf16.msra.mxu0 %v5561
    %6328 = vmatpush.bf16.msra.mxu0 %v5554
    %6329 = vmatmul.bf16.gmra.mxu0 %v3957
    %v6330 = vpop.f32.mrf.mxu0
    %v6331 = vadd.f32 %v6318, %v6330
    %v6332 = vpop.f32.mrf.mxu0
    %6333 = vdwg.mxu0
    %6334 = vmatpush.bf16.msra.mxu0 %v5659
    %6335 = vmatpush.bf16.msra.mxu0 %v5652
    %6336 = vmatpush.bf16.msra.mxu0 %v5645
    %6337 = vmatpush.bf16.msra.mxu0 %v5638
    %6338 = vmatpush.bf16.msra.mxu0 %v5631
    %6339 = vmatpush.bf16.msra.mxu0 %v5624
    %6340 = vmatpush.bf16.msra.mxu0 %v5617
    %6341 = vmatpush.bf16.msra.mxu0 %v5610
    %6342 = vmatmul.bf16.gmra.mxu0 %v3958
    %v6343 = vpop.f32.mrf.mxu0
    %v6344 = vadd.f32 %v6331, %v6343
    %v6345 = vpop.f32.mrf.mxu0
    %6346 = vdwg.mxu0
    %6347 = vmatpush.bf16.msra.mxu0 %v5715
    %6348 = vmatpush.bf16.msra.mxu0 %v5708
    %6349 = vmatpush.bf16.msra.mxu0 %v5701
    %6350 = vmatpush.bf16.msra.mxu0 %v5694
    %6351 = vmatpush.bf16.msra.mxu0 %v5687
    %6352 = vmatpush.bf16.msra.mxu0 %v5680
    %6353 = vmatpush.bf16.msra.mxu0 %v5673
    %6354 = vmatpush.bf16.msra.mxu0 %v5666
    %6355 = vmatmul.bf16.gmra.mxu0 %v3959
    %v6356 = vpop.f32.mrf.mxu0
    %v6357 = vadd.f32 %v6344, %v6356
    %v6358 = vpop.f32.mrf.mxu0
    %6359 = vdwg.mxu0
    %6360 = vmatpush.bf16.msra.mxu0 %v5771
    %6361 = vmatpush.bf16.msra.mxu0 %v5764
    %6362 = vmatpush.bf16.msra.mxu0 %v5757
    %6363 = vmatpush.bf16.msra.mxu0 %v5750
    %6364 = vmatpush.bf16.msra.mxu0 %v5743
    %6365 = vmatpush.bf16.msra.mxu0 %v5736
    %6366 = vmatpush.bf16.msra.mxu0 %v5729
    %6367 = vmatpush.bf16.msra.mxu0 %v5722
    %6368 = vmatmul.bf16.gmra.mxu0 %v3960
    %v6369 = vpop.f32.mrf.mxu0
    %v6370 = vadd.f32 %v6357, %v6369
    %v6371 = vpop.f32.mrf.mxu0
    %6372 = vdwg.mxu0
    %6373 = vmatpush.bf16.msra.mxu0 %v5827
    %6374 = vmatpush.bf16.msra.mxu0 %v5820
    %6375 = vmatpush.bf16.msra.mxu0 %v5813
    %6376 = vmatpush.bf16.msra.mxu0 %v5806
    %6377 = vmatpush.bf16.msra.mxu0 %v5799
    %6378 = vmatpush.bf16.msra.mxu0 %v5792
    %6379 = vmatpush.bf16.msra.mxu0 %v5785
    %6380 = vmatpush.bf16.msra.mxu0 %v5778
    %6381 = vmatmul.bf16.gmra.mxu0 %v3961
    %v6382 = vpop.f32.mrf.mxu0
    %v6383 = vadd.f32 %v6370, %v6382
    %v6384 = vpop.f32.mrf.mxu0
    %6385 = vdwg.mxu0
    %6386 = vmatpush.bf16.msra.mxu0 %v5436
    %6387 = vmatpush.bf16.msra.mxu0 %v5429
    %6388 = vmatpush.bf16.msra.mxu0 %v5422
    %6389 = vmatpush.bf16.msra.mxu0 %v5415
    %6390 = vmatpush.bf16.msra.mxu0 %v5408
    %6391 = vmatpush.bf16.msra.mxu0 %v5401
    %6392 = vmatpush.bf16.msra.mxu0 %v5394
    %6393 = vmatpush.bf16.msra.mxu0 %v5387
    %6394 = vmatmul.bf16.gmra.mxu0 %v3954
    %v6395 = vpop.f32.mrf.mxu0
    %v6396 = vadd.f32 %v3965, %v6395
    %v6397 = vpop.f32.mrf.mxu0
    %6398 = vdwg.mxu0
    %6399 = vmatpush.bf16.msra.mxu0 %v5492
    %6400 = vmatpush.bf16.msra.mxu0 %v5485
    %6401 = vmatpush.bf16.msra.mxu0 %v5478
    %6402 = vmatpush.bf16.msra.mxu0 %v5471
    %6403 = vmatpush.bf16.msra.mxu0 %v5464
    %6404 = vmatpush.bf16.msra.mxu0 %v5457
    %6405 = vmatpush.bf16.msra.mxu0 %v5450
    %6406 = vmatpush.bf16.msra.mxu0 %v5443
    %6407 = vmatmul.bf16.gmra.mxu0 %v3955
    %v6408 = vpop.f32.mrf.mxu0
    %v6409 = vadd.f32 %v6396, %v6408
    %v6410 = vpop.f32.mrf.mxu0
    %6411 = vdwg.mxu0
    %6412 = vmatpush.bf16.msra.mxu0 %v5548
    %6413 = vmatpush.bf16.msra.mxu0 %v5541
    %6414 = vmatpush.bf16.msra.mxu0 %v5534
    %6415 = vmatpush.bf16.msra.mxu0 %v5527
    %6416 = vmatpush.bf16.msra.mxu0 %v5520
    %6417 = vmatpush.bf16.msra.mxu0 %v5513
    %6418 = vmatpush.bf16.msra.mxu0 %v5506
    %6419 = vmatpush.bf16.msra.mxu0 %v5499
    %6420 = vmatmul.bf16.gmra.mxu0 %v3956
    %v6421 = vpop.f32.mrf.mxu0
    %v6422 = vadd.f32 %v6409, %v6421
    %v6423 = vpop.f32.mrf.mxu0
    %6424 = vdwg.mxu0
    %6425 = vmatpush.bf16.msra.mxu0 %v5604
    %6426 = vmatpush.bf16.msra.mxu0 %v5597
    %6427 = vmatpush.bf16.msra.mxu0 %v5590
    %6428 = vmatpush.bf16.msra.mxu0 %v5583
    %6429 = vmatpush.bf16.msra.mxu0 %v5576
    %6430 = vmatpush.bf16.msra.mxu0 %v5569
    %6431 = vmatpush.bf16.msra.mxu0 %v5562
    %6432 = vmatpush.bf16.msra.mxu0 %v5555
    %6433 = vmatmul.bf16.gmra.mxu0 %v3957
    %v6434 = vpop.f32.mrf.mxu0
    %v6435 = vadd.f32 %v6422, %v6434
    %v6436 = vpop.f32.mrf.mxu0
    %6437 = vdwg.mxu0
    %6438 = vmatpush.bf16.msra.mxu0 %v5660
    %6439 = vmatpush.bf16.msra.mxu0 %v5653
    %6440 = vmatpush.bf16.msra.mxu0 %v5646
    %6441 = vmatpush.bf16.msra.mxu0 %v5639
    %6442 = vmatpush.bf16.msra.mxu0 %v5632
    %6443 = vmatpush.bf16.msra.mxu0 %v5625
    %6444 = vmatpush.bf16.msra.mxu0 %v5618
    %6445 = vmatpush.bf16.msra.mxu0 %v5611
    %6446 = vmatmul.bf16.gmra.mxu0 %v3958
    %v6447 = vpop.f32.mrf.mxu0
    %v6448 = vadd.f32 %v6435, %v6447
    %v6449 = vpop.f32.mrf.mxu0
    %6450 = vdwg.mxu0
    %6451 = vmatpush.bf16.msra.mxu0 %v5716
    %6452 = vmatpush.bf16.msra.mxu0 %v5709
    %6453 = vmatpush.bf16.msra.mxu0 %v5702
    %6454 = vmatpush.bf16.msra.mxu0 %v5695
    %6455 = vmatpush.bf16.msra.mxu0 %v5688
    %6456 = vmatpush.bf16.msra.mxu0 %v5681
    %6457 = vmatpush.bf16.msra.mxu0 %v5674
    %6458 = vmatpush.bf16.msra.mxu0 %v5667
    %6459 = vmatmul.bf16.gmra.mxu0 %v3959
    %v6460 = vpop.f32.mrf.mxu0
    %v6461 = vadd.f32 %v6448, %v6460
    %v6462 = vpop.f32.mrf.mxu0
    %6463 = vdwg.mxu0
    %6464 = vmatpush.bf16.msra.mxu0 %v5772
    %6465 = vmatpush.bf16.msra.mxu0 %v5765
    %6466 = vmatpush.bf16.msra.mxu0 %v5758
    %6467 = vmatpush.bf16.msra.mxu0 %v5751
    %6468 = vmatpush.bf16.msra.mxu0 %v5744
    %6469 = vmatpush.bf16.msra.mxu0 %v5737
    %6470 = vmatpush.bf16.msra.mxu0 %v5730
    %6471 = vmatpush.bf16.msra.mxu0 %v5723
    %6472 = vmatmul.bf16.gmra.mxu0 %v3960
    %v6473 = vpop.f32.mrf.mxu0
    %v6474 = vadd.f32 %v6461, %v6473
    %v6475 = vpop.f32.mrf.mxu0
    %6476 = vdwg.mxu0
    %6477 = vmatpush.bf16.msra.mxu0 %v5828
    %6478 = vmatpush.bf16.msra.mxu0 %v5821
    %6479 = vmatpush.bf16.msra.mxu0 %v5814
    %6480 = vmatpush.bf16.msra.mxu0 %v5807
    %6481 = vmatpush.bf16.msra.mxu0 %v5800
    %6482 = vmatpush.bf16.msra.mxu0 %v5793
    %6483 = vmatpush.bf16.msra.mxu0 %v5786
    %6484 = vmatpush.bf16.msra.mxu0 %v5779
    %6485 = vmatmul.bf16.gmra.mxu0 %v3961
    %v6486 = vpop.f32.mrf.mxu0
    %v6487 = vadd.f32 %v6474, %v6486
    %v6488 = vpop.f32.mrf.mxu0
    %6489 = vdwg.mxu0
    %6490 = vmatpush.bf16.msra.mxu0 %v5437
    %6491 = vmatpush.bf16.msra.mxu0 %v5430
    %6492 = vmatpush.bf16.msra.mxu0 %v5423
    %6493 = vmatpush.bf16.msra.mxu0 %v5416
    %6494 = vmatpush.bf16.msra.mxu0 %v5409
    %6495 = vmatpush.bf16.msra.mxu0 %v5402
    %6496 = vmatpush.bf16.msra.mxu0 %v5395
    %6497 = vmatpush.bf16.msra.mxu0 %v5388
    %6498 = vmatmul.bf16.gmra.mxu0 %v3954
    %v6499 = vpop.f32.mrf.mxu0
    %v6500 = vadd.f32 %v3966, %v6499
    %v6501 = vpop.f32.mrf.mxu0
    %6502 = vdwg.mxu0
    %6503 = vmatpush.bf16.msra.mxu0 %v5493
    %6504 = vmatpush.bf16.msra.mxu0 %v5486
    %6505 = vmatpush.bf16.msra.mxu0 %v5479
    %6506 = vmatpush.bf16.msra.mxu0 %v5472
    %6507 = vmatpush.bf16.msra.mxu0 %v5465
    %6508 = vmatpush.bf16.msra.mxu0 %v5458
    %6509 = vmatpush.bf16.msra.mxu0 %v5451
    %6510 = vmatpush.bf16.msra.mxu0 %v5444
    %6511 = vmatmul.bf16.gmra.mxu0 %v3955
    %v6512 = vpop.f32.mrf.mxu0
    %v6513 = vadd.f32 %v6500, %v6512
    %v6514 = vpop.f32.mrf.mxu0
    %6515 = vdwg.mxu0
    %6516 = vmatpush.bf16.msra.mxu0 %v5549
    %6517 = vmatpush.bf16.msra.mxu0 %v5542
    %6518 = vmatpush.bf16.msra.mxu0 %v5535
    %6519 = vmatpush.bf16.msra.mxu0 %v5528
    %6520 = vmatpush.bf16.msra.mxu0 %v5521
    %6521 = vmatpush.bf16.msra.mxu0 %v5514
    %6522 = vmatpush.bf16.msra.mxu0 %v5507
    %6523 = vmatpush.bf16.msra.mxu0 %v5500
    %6524 = vmatmul.bf16.gmra.mxu0 %v3956
    %v6525 = vpop.f32.mrf.mxu0
    %v6526 = vadd.f32 %v6513, %v6525
    %v6527 = vpop.f32.mrf.mxu0
    %6528 = vdwg.mxu0
    %6529 = vmatpush.bf16.msra.mxu0 %v5605
    %6530 = vmatpush.bf16.msra.mxu0 %v5598
    %6531 = vmatpush.bf16.msra.mxu0 %v5591
    %6532 = vmatpush.bf16.msra.mxu0 %v5584
    %6533 = vmatpush.bf16.msra.mxu0 %v5577
    %6534 = vmatpush.bf16.msra.mxu0 %v5570
    %6535 = vmatpush.bf16.msra.mxu0 %v5563
    %6536 = vmatpush.bf16.msra.mxu0 %v5556
    %6537 = vmatmul.bf16.gmra.mxu0 %v3957
    %v6538 = vpop.f32.mrf.mxu0
    %v6539 = vadd.f32 %v6526, %v6538
    %v6540 = vpop.f32.mrf.mxu0
    %6541 = vdwg.mxu0
    %6542 = vmatpush.bf16.msra.mxu0 %v5661
    %6543 = vmatpush.bf16.msra.mxu0 %v5654
    %6544 = vmatpush.bf16.msra.mxu0 %v5647
    %6545 = vmatpush.bf16.msra.mxu0 %v5640
    %6546 = vmatpush.bf16.msra.mxu0 %v5633
    %6547 = vmatpush.bf16.msra.mxu0 %v5626
    %6548 = vmatpush.bf16.msra.mxu0 %v5619
    %6549 = vmatpush.bf16.msra.mxu0 %v5612
    %6550 = vmatmul.bf16.gmra.mxu0 %v3958
    %v6551 = vpop.f32.mrf.mxu0
    %v6552 = vadd.f32 %v6539, %v6551
    %v6553 = vpop.f32.mrf.mxu0
    %6554 = vdwg.mxu0
    %6555 = vmatpush.bf16.msra.mxu0 %v5717
    %6556 = vmatpush.bf16.msra.mxu0 %v5710
    %6557 = vmatpush.bf16.msra.mxu0 %v5703
    %6558 = vmatpush.bf16.msra.mxu0 %v5696
    %6559 = vmatpush.bf16.msra.mxu0 %v5689
    %6560 = vmatpush.bf16.msra.mxu0 %v5682
    %6561 = vmatpush.bf16.msra.mxu0 %v5675
    %6562 = vmatpush.bf16.msra.mxu0 %v5668
    %6563 = vmatmul.bf16.gmra.mxu0 %v3959
    %v6564 = vpop.f32.mrf.mxu0
    %v6565 = vadd.f32 %v6552, %v6564
    %v6566 = vpop.f32.mrf.mxu0
    %6567 = vdwg.mxu0
    %6568 = vmatpush.bf16.msra.mxu0 %v5773
    %6569 = vmatpush.bf16.msra.mxu0 %v5766
    %6570 = vmatpush.bf16.msra.mxu0 %v5759
    %6571 = vmatpush.bf16.msra.mxu0 %v5752
    %6572 = vmatpush.bf16.msra.mxu0 %v5745
    %6573 = vmatpush.bf16.msra.mxu0 %v5738
    %6574 = vmatpush.bf16.msra.mxu0 %v5731
    %6575 = vmatpush.bf16.msra.mxu0 %v5724
    %6576 = vmatmul.bf16.gmra.mxu0 %v3960
    %v6577 = vpop.f32.mrf.mxu0
    %v6578 = vadd.f32 %v6565, %v6577
    %v6579 = vpop.f32.mrf.mxu0
    %6580 = vdwg.mxu0
    %6581 = vmatpush.bf16.msra.mxu0 %v5829
    %6582 = vmatpush.bf16.msra.mxu0 %v5822
    %6583 = vmatpush.bf16.msra.mxu0 %v5815
    %6584 = vmatpush.bf16.msra.mxu0 %v5808
    %6585 = vmatpush.bf16.msra.mxu0 %v5801
    %6586 = vmatpush.bf16.msra.mxu0 %v5794
    %6587 = vmatpush.bf16.msra.mxu0 %v5787
    %6588 = vmatpush.bf16.msra.mxu0 %v5780
    %6589 = vmatmul.bf16.gmra.mxu0 %v3961
    %v6590 = vpop.f32.mrf.mxu0
    %v6591 = vadd.f32 %v6578, %v6590
    %v6592 = vpop.f32.mrf.mxu0
    %6593 = vdwg.mxu0
    %6594 = vmatpush.bf16.msra.mxu0 %v5438
    %6595 = vmatpush.bf16.msra.mxu0 %v5431
    %6596 = vmatpush.bf16.msra.mxu0 %v5424
    %6597 = vmatpush.bf16.msra.mxu0 %v5417
    %6598 = vmatpush.bf16.msra.mxu0 %v5410
    %6599 = vmatpush.bf16.msra.mxu0 %v5403
    %6600 = vmatpush.bf16.msra.mxu0 %v5396
    %6601 = vmatpush.bf16.msra.mxu0 %v5389
    %6602 = vmatmul.bf16.gmra.mxu0 %v3954
    %v6603 = vpop.f32.mrf.mxu0
    %v6604 = vadd.f32 %v3967, %v6603
    %v6605 = vpop.f32.mrf.mxu0
    %6606 = vdwg.mxu0
    %6607 = vmatpush.bf16.msra.mxu0 %v5494
    %6608 = vmatpush.bf16.msra.mxu0 %v5487
    %6609 = vmatpush.bf16.msra.mxu0 %v5480
    %6610 = vmatpush.bf16.msra.mxu0 %v5473
    %6611 = vmatpush.bf16.msra.mxu0 %v5466
    %6612 = vmatpush.bf16.msra.mxu0 %v5459
    %6613 = vmatpush.bf16.msra.mxu0 %v5452
    %6614 = vmatpush.bf16.msra.mxu0 %v5445
    %6615 = vmatmul.bf16.gmra.mxu0 %v3955
    %v6616 = vpop.f32.mrf.mxu0
    %v6617 = vadd.f32 %v6604, %v6616
    %v6618 = vpop.f32.mrf.mxu0
    %6619 = vdwg.mxu0
    %6620 = vmatpush.bf16.msra.mxu0 %v5550
    %6621 = vmatpush.bf16.msra.mxu0 %v5543
    %6622 = vmatpush.bf16.msra.mxu0 %v5536
    %6623 = vmatpush.bf16.msra.mxu0 %v5529
    %6624 = vmatpush.bf16.msra.mxu0 %v5522
    %6625 = vmatpush.bf16.msra.mxu0 %v5515
    %6626 = vmatpush.bf16.msra.mxu0 %v5508
    %6627 = vmatpush.bf16.msra.mxu0 %v5501
    %6628 = vmatmul.bf16.gmra.mxu0 %v3956
    %v6629 = vpop.f32.mrf.mxu0
    %v6630 = vadd.f32 %v6617, %v6629
    %v6631 = vpop.f32.mrf.mxu0
    %6632 = vdwg.mxu0
    %6633 = vmatpush.bf16.msra.mxu0 %v5606
    %6634 = vmatpush.bf16.msra.mxu0 %v5599
    %6635 = vmatpush.bf16.msra.mxu0 %v5592
    %6636 = vmatpush.bf16.msra.mxu0 %v5585
    %6637 = vmatpush.bf16.msra.mxu0 %v5578
    %6638 = vmatpush.bf16.msra.mxu0 %v5571
    %6639 = vmatpush.bf16.msra.mxu0 %v5564
    %6640 = vmatpush.bf16.msra.mxu0 %v5557
    %6641 = vmatmul.bf16.gmra.mxu0 %v3957
    %v6642 = vpop.f32.mrf.mxu0
    %v6643 = vadd.f32 %v6630, %v6642
    %v6644 = vpop.f32.mrf.mxu0
    %6645 = vdwg.mxu0
    %6646 = vmatpush.bf16.msra.mxu0 %v5662
    %6647 = vmatpush.bf16.msra.mxu0 %v5655
    %6648 = vmatpush.bf16.msra.mxu0 %v5648
    %6649 = vmatpush.bf16.msra.mxu0 %v5641
    %6650 = vmatpush.bf16.msra.mxu0 %v5634
    %6651 = vmatpush.bf16.msra.mxu0 %v5627
    %6652 = vmatpush.bf16.msra.mxu0 %v5620
    %6653 = vmatpush.bf16.msra.mxu0 %v5613
    %6654 = vmatmul.bf16.gmra.mxu0 %v3958
    %v6655 = vpop.f32.mrf.mxu0
    %v6656 = vadd.f32 %v6643, %v6655
    %v6657 = vpop.f32.mrf.mxu0
    %6658 = vdwg.mxu0
    %6659 = vmatpush.bf16.msra.mxu0 %v5718
    %6660 = vmatpush.bf16.msra.mxu0 %v5711
    %6661 = vmatpush.bf16.msra.mxu0 %v5704
    %6662 = vmatpush.bf16.msra.mxu0 %v5697
    %6663 = vmatpush.bf16.msra.mxu0 %v5690
    %6664 = vmatpush.bf16.msra.mxu0 %v5683
    %6665 = vmatpush.bf16.msra.mxu0 %v5676
    %6666 = vmatpush.bf16.msra.mxu0 %v5669
    %6667 = vmatmul.bf16.gmra.mxu0 %v3959
    %v6668 = vpop.f32.mrf.mxu0
    %v6669 = vadd.f32 %v6656, %v6668
    %v6670 = vpop.f32.mrf.mxu0
    %6671 = vdwg.mxu0
    %6672 = vmatpush.bf16.msra.mxu0 %v5774
    %6673 = vmatpush.bf16.msra.mxu0 %v5767
    %6674 = vmatpush.bf16.msra.mxu0 %v5760
    %6675 = vmatpush.bf16.msra.mxu0 %v5753
    %6676 = vmatpush.bf16.msra.mxu0 %v5746
    %6677 = vmatpush.bf16.msra.mxu0 %v5739
    %6678 = vmatpush.bf16.msra.mxu0 %v5732
    %6679 = vmatpush.bf16.msra.mxu0 %v5725
    %6680 = vmatmul.bf16.gmra.mxu0 %v3960
    %v6681 = vpop.f32.mrf.mxu0
    %v6682 = vadd.f32 %v6669, %v6681
    %v6683 = vpop.f32.mrf.mxu0
    %6684 = vdwg.mxu0
    %6685 = vmatpush.bf16.msra.mxu0 %v5830
    %6686 = vmatpush.bf16.msra.mxu0 %v5823
    %6687 = vmatpush.bf16.msra.mxu0 %v5816
    %6688 = vmatpush.bf16.msra.mxu0 %v5809
    %6689 = vmatpush.bf16.msra.mxu0 %v5802
    %6690 = vmatpush.bf16.msra.mxu0 %v5795
    %6691 = vmatpush.bf16.msra.mxu0 %v5788
    %6692 = vmatpush.bf16.msra.mxu0 %v5781
    %6693 = vmatmul.bf16.gmra.mxu0 %v3961
    %v6694 = vpop.f32.mrf.mxu0
    %v6695 = vadd.f32 %v6682, %v6694
    %v6696 = vpop.f32.mrf.mxu0
    %6697 = vdwg.mxu0
    %6698 = vmatpush.bf16.msra.mxu0 %v5439
    %6699 = vmatpush.bf16.msra.mxu0 %v5432
    %6700 = vmatpush.bf16.msra.mxu0 %v5425
    %6701 = vmatpush.bf16.msra.mxu0 %v5418
    %6702 = vmatpush.bf16.msra.mxu0 %v5411
    %6703 = vmatpush.bf16.msra.mxu0 %v5404
    %6704 = vmatpush.bf16.msra.mxu0 %v5397
    %6705 = vmatpush.bf16.msra.mxu0 %v5390
    %6706 = vmatmul.bf16.gmra.mxu0 %v3954
    %v6707 = vpop.f32.mrf.mxu0
    %v6708 = vadd.f32 %v3968, %v6707
    %v6709 = vpop.f32.mrf.mxu0
    %6710 = vdwg.mxu0
    %6711 = vmatpush.bf16.msra.mxu0 %v5495
    %6712 = vmatpush.bf16.msra.mxu0 %v5488
    %6713 = vmatpush.bf16.msra.mxu0 %v5481
    %6714 = vmatpush.bf16.msra.mxu0 %v5474
    %6715 = vmatpush.bf16.msra.mxu0 %v5467
    %6716 = vmatpush.bf16.msra.mxu0 %v5460
    %6717 = vmatpush.bf16.msra.mxu0 %v5453
    %6718 = vmatpush.bf16.msra.mxu0 %v5446
    %6719 = vmatmul.bf16.gmra.mxu0 %v3955
    %v6720 = vpop.f32.mrf.mxu0
    %v6721 = vadd.f32 %v6708, %v6720
    %v6722 = vpop.f32.mrf.mxu0
    %6723 = vdwg.mxu0
    %6724 = vmatpush.bf16.msra.mxu0 %v5551
    %6725 = vmatpush.bf16.msra.mxu0 %v5544
    %6726 = vmatpush.bf16.msra.mxu0 %v5537
    %6727 = vmatpush.bf16.msra.mxu0 %v5530
    %6728 = vmatpush.bf16.msra.mxu0 %v5523
    %6729 = vmatpush.bf16.msra.mxu0 %v5516
    %6730 = vmatpush.bf16.msra.mxu0 %v5509
    %6731 = vmatpush.bf16.msra.mxu0 %v5502
    %6732 = vmatmul.bf16.gmra.mxu0 %v3956
    %v6733 = vpop.f32.mrf.mxu0
    %v6734 = vadd.f32 %v6721, %v6733
    %v6735 = vpop.f32.mrf.mxu0
    %6736 = vdwg.mxu0
    %6737 = vmatpush.bf16.msra.mxu0 %v5607
    %6738 = vmatpush.bf16.msra.mxu0 %v5600
    %6739 = vmatpush.bf16.msra.mxu0 %v5593
    %6740 = vmatpush.bf16.msra.mxu0 %v5586
    %6741 = vmatpush.bf16.msra.mxu0 %v5579
    %6742 = vmatpush.bf16.msra.mxu0 %v5572
    %6743 = vmatpush.bf16.msra.mxu0 %v5565
    %6744 = vmatpush.bf16.msra.mxu0 %v5558
    %6745 = vmatmul.bf16.gmra.mxu0 %v3957
    %v6746 = vpop.f32.mrf.mxu0
    %v6747 = vadd.f32 %v6734, %v6746
    %v6748 = vpop.f32.mrf.mxu0
    %6749 = vdwg.mxu0
    %6750 = vmatpush.bf16.msra.mxu0 %v5663
    %6751 = vmatpush.bf16.msra.mxu0 %v5656
    %6752 = vmatpush.bf16.msra.mxu0 %v5649
    %6753 = vmatpush.bf16.msra.mxu0 %v5642
    %6754 = vmatpush.bf16.msra.mxu0 %v5635
    %6755 = vmatpush.bf16.msra.mxu0 %v5628
    %6756 = vmatpush.bf16.msra.mxu0 %v5621
    %6757 = vmatpush.bf16.msra.mxu0 %v5614
    %6758 = vmatmul.bf16.gmra.mxu0 %v3958
    %v6759 = vpop.f32.mrf.mxu0
    %v6760 = vadd.f32 %v6747, %v6759
    %v6761 = vpop.f32.mrf.mxu0
    %6762 = vdwg.mxu0
    %6763 = vmatpush.bf16.msra.mxu0 %v5719
    %6764 = vmatpush.bf16.msra.mxu0 %v5712
    %6765 = vmatpush.bf16.msra.mxu0 %v5705
    %6766 = vmatpush.bf16.msra.mxu0 %v5698
    %6767 = vmatpush.bf16.msra.mxu0 %v5691
    %6768 = vmatpush.bf16.msra.mxu0 %v5684
    %6769 = vmatpush.bf16.msra.mxu0 %v5677
    %6770 = vmatpush.bf16.msra.mxu0 %v5670
    %6771 = vmatmul.bf16.gmra.mxu0 %v3959
    %v6772 = vpop.f32.mrf.mxu0
    %v6773 = vadd.f32 %v6760, %v6772
    %v6774 = vpop.f32.mrf.mxu0
    %6775 = vdwg.mxu0
    %6776 = vmatpush.bf16.msra.mxu0 %v5775
    %6777 = vmatpush.bf16.msra.mxu0 %v5768
    %6778 = vmatpush.bf16.msra.mxu0 %v5761
    %6779 = vmatpush.bf16.msra.mxu0 %v5754
    %6780 = vmatpush.bf16.msra.mxu0 %v5747
    %6781 = vmatpush.bf16.msra.mxu0 %v5740
    %6782 = vmatpush.bf16.msra.mxu0 %v5733
    %6783 = vmatpush.bf16.msra.mxu0 %v5726
    %6784 = vmatmul.bf16.gmra.mxu0 %v3960
    %v6785 = vpop.f32.mrf.mxu0
    %v6786 = vadd.f32 %v6773, %v6785
    %v6787 = vpop.f32.mrf.mxu0
    %6788 = vdwg.mxu0
    %6789 = vmatpush.bf16.msra.mxu0 %v5831
    %6790 = vmatpush.bf16.msra.mxu0 %v5824
    %6791 = vmatpush.bf16.msra.mxu0 %v5817
    %6792 = vmatpush.bf16.msra.mxu0 %v5810
    %6793 = vmatpush.bf16.msra.mxu0 %v5803
    %6794 = vmatpush.bf16.msra.mxu0 %v5796
    %6795 = vmatpush.bf16.msra.mxu0 %v5789
    %6796 = vmatpush.bf16.msra.mxu0 %v5782
    %6797 = vmatmul.bf16.gmra.mxu0 %v3961
    %v6798 = vpop.f32.mrf.mxu0
    %v6799 = vadd.f32 %v6786, %v6798
    %v6800 = vpop.f32.mrf.mxu0
    %6801 = vdwg.mxu0
    %6802 = vmatpush.bf16.msra.mxu0 %v5440
    %6803 = vmatpush.bf16.msra.mxu0 %v5433
    %6804 = vmatpush.bf16.msra.mxu0 %v5426
    %6805 = vmatpush.bf16.msra.mxu0 %v5419
    %6806 = vmatpush.bf16.msra.mxu0 %v5412
    %6807 = vmatpush.bf16.msra.mxu0 %v5405
    %6808 = vmatpush.bf16.msra.mxu0 %v5398
    %6809 = vmatpush.bf16.msra.mxu0 %v5391
    %6810 = vmatmul.bf16.gmra.mxu0 %v3954
    %v6811 = vpop.f32.mrf.mxu0
    %v6812 = vadd.f32 %v3969, %v6811
    %v6813 = vpop.f32.mrf.mxu0
    %6814 = vdwg.mxu0
    %6815 = vmatpush.bf16.msra.mxu0 %v5496
    %6816 = vmatpush.bf16.msra.mxu0 %v5489
    %6817 = vmatpush.bf16.msra.mxu0 %v5482
    %6818 = vmatpush.bf16.msra.mxu0 %v5475
    %6819 = vmatpush.bf16.msra.mxu0 %v5468
    %6820 = vmatpush.bf16.msra.mxu0 %v5461
    %6821 = vmatpush.bf16.msra.mxu0 %v5454
    %6822 = vmatpush.bf16.msra.mxu0 %v5447
    %6823 = vmatmul.bf16.gmra.mxu0 %v3955
    %v6824 = vpop.f32.mrf.mxu0
    %v6825 = vadd.f32 %v6812, %v6824
    %v6826 = vpop.f32.mrf.mxu0
    %6827 = vdwg.mxu0
    %6828 = vmatpush.bf16.msra.mxu0 %v5552
    %6829 = vmatpush.bf16.msra.mxu0 %v5545
    %6830 = vmatpush.bf16.msra.mxu0 %v5538
    %6831 = vmatpush.bf16.msra.mxu0 %v5531
    %6832 = vmatpush.bf16.msra.mxu0 %v5524
    %6833 = vmatpush.bf16.msra.mxu0 %v5517
    %6834 = vmatpush.bf16.msra.mxu0 %v5510
    %6835 = vmatpush.bf16.msra.mxu0 %v5503
    %6836 = vmatmul.bf16.gmra.mxu0 %v3956
    %v6837 = vpop.f32.mrf.mxu0
    %v6838 = vadd.f32 %v6825, %v6837
    %v6839 = vpop.f32.mrf.mxu0
    %6840 = vdwg.mxu0
    %6841 = vmatpush.bf16.msra.mxu0 %v5608
    %6842 = vmatpush.bf16.msra.mxu0 %v5601
    %6843 = vmatpush.bf16.msra.mxu0 %v5594
    %6844 = vmatpush.bf16.msra.mxu0 %v5587
    %6845 = vmatpush.bf16.msra.mxu0 %v5580
    %6846 = vmatpush.bf16.msra.mxu0 %v5573
    %6847 = vmatpush.bf16.msra.mxu0 %v5566
    %6848 = vmatpush.bf16.msra.mxu0 %v5559
    %6849 = vmatmul.bf16.gmra.mxu0 %v3957
    %v6850 = vpop.f32.mrf.mxu0
    %v6851 = vadd.f32 %v6838, %v6850
    %v6852 = vpop.f32.mrf.mxu0
    %6853 = vdwg.mxu0
    %6854 = vmatpush.bf16.msra.mxu0 %v5664
    %6855 = vmatpush.bf16.msra.mxu0 %v5657
    %6856 = vmatpush.bf16.msra.mxu0 %v5650
    %6857 = vmatpush.bf16.msra.mxu0 %v5643
    %6858 = vmatpush.bf16.msra.mxu0 %v5636
    %6859 = vmatpush.bf16.msra.mxu0 %v5629
    %6860 = vmatpush.bf16.msra.mxu0 %v5622
    %6861 = vmatpush.bf16.msra.mxu0 %v5615
    %6862 = vmatmul.bf16.gmra.mxu0 %v3958
    %v6863 = vpop.f32.mrf.mxu0
    %v6864 = vadd.f32 %v6851, %v6863
    %v6865 = vpop.f32.mrf.mxu0
    %6866 = vdwg.mxu0
    %6867 = vmatpush.bf16.msra.mxu0 %v5720
    %6868 = vmatpush.bf16.msra.mxu0 %v5713
    %6869 = vmatpush.bf16.msra.mxu0 %v5706
    %6870 = vmatpush.bf16.msra.mxu0 %v5699
    %6871 = vmatpush.bf16.msra.mxu0 %v5692
    %6872 = vmatpush.bf16.msra.mxu0 %v5685
    %6873 = vmatpush.bf16.msra.mxu0 %v5678
    %6874 = vmatpush.bf16.msra.mxu0 %v5671
    %6875 = vmatmul.bf16.gmra.mxu0 %v3959
    %v6876 = vpop.f32.mrf.mxu0
    %v6877 = vadd.f32 %v6864, %v6876
    %v6878 = vpop.f32.mrf.mxu0
    %6879 = vdwg.mxu0
    %6880 = vmatpush.bf16.msra.mxu0 %v5776
    %6881 = vmatpush.bf16.msra.mxu0 %v5769
    %6882 = vmatpush.bf16.msra.mxu0 %v5762
    %6883 = vmatpush.bf16.msra.mxu0 %v5755
    %6884 = vmatpush.bf16.msra.mxu0 %v5748
    %6885 = vmatpush.bf16.msra.mxu0 %v5741
    %6886 = vmatpush.bf16.msra.mxu0 %v5734
    %6887 = vmatpush.bf16.msra.mxu0 %v5727
    %6888 = vmatmul.bf16.gmra.mxu0 %v3960
    %v6889 = vpop.f32.mrf.mxu0
    %v6890 = vadd.f32 %v6877, %v6889
    %v6891 = vpop.f32.mrf.mxu0
    %6892 = vdwg.mxu0
    %6893 = vmatpush.bf16.msra.mxu0 %v5832
    %6894 = vmatpush.bf16.msra.mxu0 %v5825
    %6895 = vmatpush.bf16.msra.mxu0 %v5818
    %6896 = vmatpush.bf16.msra.mxu0 %v5811
    %6897 = vmatpush.bf16.msra.mxu0 %v5804
    %6898 = vmatpush.bf16.msra.mxu0 %v5797
    %6899 = vmatpush.bf16.msra.mxu0 %v5790
    %6900 = vmatpush.bf16.msra.mxu0 %v5783
    %6901 = vmatmul.bf16.gmra.mxu0 %v3961
    %v6902 = vpop.f32.mrf.mxu0
    %v6903 = vadd.f32 %v6890, %v6902
    %v6904 = vpop.f32.mrf.mxu0
    %6905 = vdwg.mxu0
    %6906 = vmatpush.bf16.msra.mxu0 %v5441
    %6907 = vmatpush.bf16.msra.mxu0 %v5434
    %6908 = vmatpush.bf16.msra.mxu0 %v5427
    %6909 = vmatpush.bf16.msra.mxu0 %v5420
    %6910 = vmatpush.bf16.msra.mxu0 %v5413
    %6911 = vmatpush.bf16.msra.mxu0 %v5406
    %6912 = vmatpush.bf16.msra.mxu0 %v5399
    %6913 = vmatpush.bf16.msra.mxu0 %v5392
    %6914 = vmatmul.bf16.gmra.mxu0 %v3954
    %v6915 = vpop.f32.mrf.mxu0
    %v6916 = vadd.f32 %v3970, %v6915
    %v6917 = vpop.f32.mrf.mxu0
    %6918 = vdwg.mxu0
    %6919 = vmatpush.bf16.msra.mxu0 %v5497
    %6920 = vmatpush.bf16.msra.mxu0 %v5490
    %6921 = vmatpush.bf16.msra.mxu0 %v5483
    %6922 = vmatpush.bf16.msra.mxu0 %v5476
    %6923 = vmatpush.bf16.msra.mxu0 %v5469
    %6924 = vmatpush.bf16.msra.mxu0 %v5462
    %6925 = vmatpush.bf16.msra.mxu0 %v5455
    %6926 = vmatpush.bf16.msra.mxu0 %v5448
    %6927 = vmatmul.bf16.gmra.mxu0 %v3955
    %v6928 = vpop.f32.mrf.mxu0
    %v6929 = vadd.f32 %v6916, %v6928
    %v6930 = vpop.f32.mrf.mxu0
    %6931 = vdwg.mxu0
    %6932 = vmatpush.bf16.msra.mxu0 %v5553
    %6933 = vmatpush.bf16.msra.mxu0 %v5546
    %6934 = vmatpush.bf16.msra.mxu0 %v5539
    %6935 = vmatpush.bf16.msra.mxu0 %v5532
    %6936 = vmatpush.bf16.msra.mxu0 %v5525
    %6937 = vmatpush.bf16.msra.mxu0 %v5518
    %6938 = vmatpush.bf16.msra.mxu0 %v5511
    %6939 = vmatpush.bf16.msra.mxu0 %v5504
    %6940 = vmatmul.bf16.gmra.mxu0 %v3956
    %v6941 = vpop.f32.mrf.mxu0
    %v6942 = vadd.f32 %v6929, %v6941
    %v6943 = vpop.f32.mrf.mxu0
    %6944 = vdwg.mxu0
    %6945 = vmatpush.bf16.msra.mxu0 %v5609
    %6946 = vmatpush.bf16.msra.mxu0 %v5602
    %6947 = vmatpush.bf16.msra.mxu0 %v5595
    %6948 = vmatpush.bf16.msra.mxu0 %v5588
    %6949 = vmatpush.bf16.msra.mxu0 %v5581
    %6950 = vmatpush.bf16.msra.mxu0 %v5574
    %6951 = vmatpush.bf16.msra.mxu0 %v5567
    %6952 = vmatpush.bf16.msra.mxu0 %v5560
    %6953 = vmatmul.bf16.gmra.mxu0 %v3957
    %v6954 = vpop.f32.mrf.mxu0
    %v6955 = vadd.f32 %v6942, %v6954
    %v6956 = vpop.f32.mrf.mxu0
    %6957 = vdwg.mxu0
    %6958 = vmatpush.bf16.msra.mxu0 %v5665
    %6959 = vmatpush.bf16.msra.mxu0 %v5658
    %6960 = vmatpush.bf16.msra.mxu0 %v5651
    %6961 = vmatpush.bf16.msra.mxu0 %v5644
    %6962 = vmatpush.bf16.msra.mxu0 %v5637
    %6963 = vmatpush.bf16.msra.mxu0 %v5630
    %6964 = vmatpush.bf16.msra.mxu0 %v5623
    %6965 = vmatpush.bf16.msra.mxu0 %v5616
    %6966 = vmatmul.bf16.gmra.mxu0 %v3958
    %v6967 = vpop.f32.mrf.mxu0
    %v6968 = vadd.f32 %v6955, %v6967
    %v6969 = vpop.f32.mrf.mxu0
    %6970 = vdwg.mxu0
    %6971 = vmatpush.bf16.msra.mxu0 %v5721
    %6972 = vmatpush.bf16.msra.mxu0 %v5714
    %6973 = vmatpush.bf16.msra.mxu0 %v5707
    %6974 = vmatpush.bf16.msra.mxu0 %v5700
    %6975 = vmatpush.bf16.msra.mxu0 %v5693
    %6976 = vmatpush.bf16.msra.mxu0 %v5686
    %6977 = vmatpush.bf16.msra.mxu0 %v5679
    %6978 = vmatpush.bf16.msra.mxu0 %v5672
    %6979 = vmatmul.bf16.gmra.mxu0 %v3959
    %v6980 = vpop.f32.mrf.mxu0
    %v6981 = vadd.f32 %v6968, %v6980
    %v6982 = vpop.f32.mrf.mxu0
    %6983 = vdwg.mxu0
    %6984 = vmatpush.bf16.msra.mxu0 %v5777
    %6985 = vmatpush.bf16.msra.mxu0 %v5770
    %6986 = vmatpush.bf16.msra.mxu0 %v5763
    %6987 = vmatpush.bf16.msra.mxu0 %v5756
    %6988 = vmatpush.bf16.msra.mxu0 %v5749
    %6989 = vmatpush.bf16.msra.mxu0 %v5742
    %6990 = vmatpush.bf16.msra.mxu0 %v5735
    %6991 = vmatpush.bf16.msra.mxu0 %v5728
    %6992 = vmatmul.bf16.gmra.mxu0 %v3960
    %v6993 = vpop.f32.mrf.mxu0
    %v6994 = vadd.f32 %v6981, %v6993
    %v6995 = vpop.f32.mrf.mxu0
    %6996 = vdwg.mxu0
    %6997 = vmatpush.bf16.msra.mxu0 %v5833
    %6998 = vmatpush.bf16.msra.mxu0 %v5826
    %6999 = vmatpush.bf16.msra.mxu0 %v5819
    %7000 = vmatpush.bf16.msra.mxu0 %v5812
    %7001 = vmatpush.bf16.msra.mxu0 %v5805
    %7002 = vmatpush.bf16.msra.mxu0 %v5798
    %7003 = vmatpush.bf16.msra.mxu0 %v5791
    %7004 = vmatpush.bf16.msra.mxu0 %v5784
    %7005 = vmatmul.bf16.gmra.mxu0 %v3961
    %v7006 = vpop.f32.mrf.mxu0
    %v7007 = vadd.f32 %v6994, %v7006
    %v7008 = vpop.f32.mrf.mxu0
    %7009 = vdwg.mxu0
    %v7010 = vtanh.pop %v6383
    %v7011 = vtanh.pop %v6487
    %v7012 = vtanh.pop %v6591
    %v7013 = vtanh.pop %v6695
    %v7014 = vtanh.pop %v6799
    %v7015 = vtanh.pop %v6903
    %v7016 = vtanh.pop %v7007
    %v7023 = vrot.slane %v7011, 4
    %v7024 = vrot.slane %v7013, 4
    %v7025 = vrot.slane %v7015, 4
    %v7026 = vsel %vm334, %v7010, %v7023
    %v7027 = vsel %vm334, %v7012, %v7024
    %v7028 = vsel %vm334, %v7014, %v7025
    %7032 = vst [vmem:[#allocation14] sm:$0xff] %v7026
    %7033 = vst [vmem:[#allocation14 + $0x8] sm:$0xff] %v7027
    %7034 = vst [vmem:[#allocation14 + $0x10] sm:$0xff] %v7028
    %7035 = vst [vmem:[#allocation14 + $0x18] sm:$0xf] %v7016
    // Predicated region
    $region50: #{tpu_custom_call.1} parent=1 // pred_check
      _
    $region51: #{tpu_custom_call.1} parent=1 // pred_check_branch
      %7037 = sbr.rel (0) target = $region53
    $region52: #{tpu_custom_call.1} parent=1 // pred_region
      %7039 = vsyncadd [#allocation7], 0
      %s7041 = sshll.u32 [#allocation14], 4
      %s7042 = int_to_ptr.vmem [resolvable:$true] %s7041
      %s7043 = sshll.u32 %s7, 4
      %s7044 = int_to_ptr.hbm [resolvable:$true] %s7043
      %7046 = dma.vmem_to_hbm [thread:$0]  %s7042, 448, %s7044, [#allocation7]
    $region53: #{tpu_custom_call.1} parent=1 // pred_fallthru
      _
    // Predicated region
    $region54: #{tpu_custom_call.1} parent=1 // pred_check
      _
    $region55: #{tpu_custom_call.1} parent=1 // pred_check_branch
      %7048 = sbr.rel (0) target = $region57
    $region56: #{tpu_custom_call.1} parent=1 // pred_region
      %7050 = dma.done [#allocation7], 448
    $region57: #{tpu_custom_call.1} parent=1 // pred_fallthru
      _
    %7051 = vsyncpa [#allocation6], 1
    %7052 = vsyncpa [#allocation9], 1
    %7053 = vsyncpa [#allocation12], 1
    %7054 = vsyncpa [#allocation7], 1
  %7055 = vsyncmov [#allocation4]
  %s7056 = vpop.sfrf %7055
  %p7057 = scmp.eq.s32.totalorder %s7056, 0
  %p7058 = pneg %p7057
  %7060 = shalt.err (%p7058)
  %s7061 = scalar_lea.sflag [#allocation4], 1
  %7062 = vsyncmov %s7061
  %s7063 = vpop.sfrf %7062
  %p7064 = scmp.eq.s32.totalorder %s7063, 0
  %p7065 = pneg %p7064
  %7067 = shalt.err (%p7065)

</llo_original>
